<compile_context>
chip_gen: v7x
topology: tpu7x:2x2x1
jax: 0.10.0
libtpu: 0.0.40
codegen_flags: <defaults>
</compile_context>

<pallas_src>
import jax
import jax.numpy as jnp
from jax.experimental import pallas as pl
from jax.experimental.pallas import tpu as pltpu


# ----------------------------------------------------------------------------
# In-kernel helpers (pure jnp, traced inside the kernel)
# ----------------------------------------------------------------------------
def _pad_hw_1(x3):
    """Zero-pad an (h, w, c) slab by 1 on both spatial dims, in registers."""
    h, w, c = x3.shape
    zc = jnp.zeros((h, 1, c), x3.dtype)
    x3 = jnp.concatenate([zc, x3, zc], axis=1)            # (h, w+2, c)
    zr = jnp.zeros((1, w + 2, c), x3.dtype)
    return jnp.concatenate([zr, x3, zr], axis=0)          # (h+2, w+2, c)


# ----------------------------------------------------------------------------
# Fused kernel
# ----------------------------------------------------------------------------
def _fused_block_kernel(x_ref, w1_ref, s1_ref, b1_ref, w2_ref, s2_ref, b2_ref,
                        fc1w_ref, fc1b_ref, fc2w_ref, fc2b_ref,
                        out_ref, patch_ref):
    """conv1+BN1+ReLU -> conv2+BN2+ReLU -> SE -> +residual -> ReLU, fused.

    x_ref     : (BT, H, W, C)    bf16  input block (also reused as residual)
    w1_ref    : (9C, C)          bf16  tap-folded conv1 weight (HWIO flattened)
    s1/b1     : (1, C)           f32   folded BN1 affine
    w2_ref    : (9C, C)          bf16  tap-folded conv2 weight
    s2/b2     : (1, C)           f32   folded BN2 affine
    fc1w/fc1b : (C, CR)/(1, CR)  f32   SE fc1 (1x1 conv == dense on pooled vec)
    fc2w/fc2b : (CR, C)/(1, C)   f32   SE fc2
    out_ref   : (BT, H, W, C)    f32   output block
    patch_ref : (BT*H*W, 9C)     bf16  VMEM im2col scratch (reused by both convs)
    """
    bt, h, w, c = x_ref.shape
    hw = h * w

    def im2col_image(x3, b):
        # Write image b's 3x3 im2col patch straight into the VMEM scratch
        # (9 tap stores, no concat-built intermediate); the contraction stays
        # a single deep K=9C dot.
        xp = _pad_hw_1(x3)                                        # (h+2, w+2, c)
        for t in range(9):
            dy, dx = divmod(t, 3)
            tap = xp[dy:dy + h, dx:dx + w, :].reshape(hw, c)
            patch_ref[b * hw:(b + 1) * hw, t * c:(t + 1) * c] = tap

    # ---- conv1 + BN1 + ReLU (one K=9C MXU dot over all BT images) ----------
    for b in range(bt):
        im2col_image(x_ref[b], b)
    y1 = jnp.dot(patch_ref[...], w1_ref[...], preferred_element_type=jnp.float32)
    y1 = jnp.maximum(y1 * s1_ref[...] + b1_ref[...], 0.0)        # (bt*hw, c) f32

    # ---- conv2 + BN2 + ReLU: conv1 activation never leaves VMEM ------------
    for b in range(bt):
        y1b = y1[b * hw:(b + 1) * hw, :].astype(jnp.bfloat16).reshape(h, w, c)
        im2col_image(y1b, b)
    y2 = jnp.dot(patch_ref[...], w2_ref[...], preferred_element_type=jnp.float32)
    y2 = jnp.maximum(y2 * s2_ref[...] + b2_ref[...], 0.0)        # (bt*hw, c) f32

    # ---- SE (per-image squeeze/excite) + residual add + final ReLU ---------
    for b in range(bt):
        y2b = y2[b * hw:(b + 1) * hw, :]                         # (hw, c)
        pooled = jnp.mean(y2b, axis=0, keepdims=True)            # (1, c)
        s = jnp.dot(pooled, fc1w_ref[...], preferred_element_type=jnp.float32)
        s = jnp.maximum(s + fc1b_ref[...], 0.0)                  # (1, cr)
        s = jnp.dot(s, fc2w_ref[...], preferred_element_type=jnp.float32)
        s = jax.nn.sigmoid(s + fc2b_ref[...])                    # (1, c)
        res = x_ref[b].reshape(hw, c).astype(jnp.float32)        # resident residual
        outb = jnp.maximum(y2b * s + res, 0.0)                   # (hw, c) f32
        out_ref[b] = outb.reshape(h, w, c)


# ----------------------------------------------------------------------------
# pallas_call wrapper
# ----------------------------------------------------------------------------
_VMEM_LIMIT = 48 * 1024 * 1024   # <= v7x's 64 MiB physical VMEM; ample on v5e/v6e


def _pick_block_batch(n, h, w):
    """Images per grid step: grow the per-step matmul M at small spatial sizes
    (amortise ~0.35us grid-step overhead and weight residency) while keeping
    >=2 grid steps so the DMA pipeline / megacore batch-parallelism have work."""
    bt = max(1, min(n, 1024 // (h * w)))
    while bt > 1 and (n % bt != 0 or n // bt < 2):
        bt -= 1
    return bt


def fused_se_basic_block_nhwc(x_nhwc, w1, s1, b1, w2, s2, b2,
                              fc1w, fc1b, fc2w, fc2b, *, block_batch=None):
    """Fused ResNetBasicBlock forward on an NHWC input; returns NHWC f32."""
    n, h, w, c = x_nhwc.shape
    cr = fc1w.shape[-1]
    assert w1.shape == (9 * c, c) and w2.shape == (9 * c, c)
    bt = block_batch if block_batch is not None else _pick_block_batch(n, h, w)
    assert n % bt == 0, (n, bt)
    grid_n = n // bt

    cost = pl.CostEstimate(
        flops=int(2 * 2 * n * h * w * 9 * c * c           # two 3x3 convs
                  + 2 * 2 * n * c * cr                    # SE fc1 + fc2
                  + 8 * n * h * w * c),                   # BN/ReLU/SE/residual
        transcendentals=int(n * c),                       # sigmoid
        bytes_accessed=int(n * h * w * c * (2 + 4)        # bf16 in + f32 out
                           + 2 * 9 * c * c * 2            # conv weights (bf16)
                           + (c * cr + cr * c) * 4 + 6 * c * 4))

    return pl.pallas_call(
        _fused_block_kernel,
        out_shape=jax.ShapeDtypeStruct((n, h, w, c), jnp.float32),
        grid=(grid_n,),
        in_specs=[
            pl.BlockSpec((bt, h, w, c), lambda i: (i, 0, 0, 0)),   # x (+ residual)
            pl.BlockSpec((9 * c, c), lambda i: (0, 0)),            # conv1 weight
            pl.BlockSpec((1, c), lambda i: (0, 0)),                # bn1 scale
            pl.BlockSpec((1, c), lambda i: (0, 0)),                # bn1 bias
            pl.BlockSpec((9 * c, c), lambda i: (0, 0)),            # conv2 weight
            pl.BlockSpec((1, c), lambda i: (0, 0)),                # bn2 scale
            pl.BlockSpec((1, c), lambda i: (0, 0)),                # bn2 bias
            pl.BlockSpec((c, cr), lambda i: (0, 0)),               # se fc1 w
            pl.BlockSpec((1, cr), lambda i: (0, 0)),               # se fc1 b
            pl.BlockSpec((cr, c), lambda i: (0, 0)),               # se fc2 w
            pl.BlockSpec((1, c), lambda i: (0, 0)),                # se fc2 b
        ],
        out_specs=pl.BlockSpec((bt, h, w, c), lambda i: (i, 0, 0, 0)),
        scratch_shapes=[pltpu.VMEM((bt * h * w, 9 * c), jnp.bfloat16)],
        compiler_params=pltpu.CompilerParams(
            dimension_semantics=("parallel",),
            vmem_limit_bytes=_VMEM_LIMIT),
        cost_estimate=cost,
    )(x_nhwc.astype(jnp.bfloat16), w1, s1, b1, w2, s2, b2,
      fc1w, fc1b, fc2w, fc2b)


# ----------------------------------------------------------------------------
# Parameter init (deterministic, shapes from the module's __init__)
# ----------------------------------------------------------------------------
def init_params(key, inplanes, planes, reduction=16):
    cr = max(planes // reduction, 1)
    ks = jax.random.split(key, 16)

    def conv_w(k, cin, cout):
        # HWIO layout (PyTorch OIHW weights would need a (2,3,1,0) transpose).
        return (jax.random.normal(k, (3, 3, cin, cout), jnp.float32)
                / jnp.sqrt(9.0 * cin))

    def bn(k0, k1, k2, k3, c):
        return dict(
            gamma=1.0 + 0.1 * jax.random.normal(k0, (c,), jnp.float32),
            beta=0.1 * jax.random.normal(k1, (c,), jnp.float32),
            mean=0.1 * jax.random.normal(k2, (c,), jnp.float32),
            var=0.5 + jnp.abs(jax.random.normal(k3, (c,), jnp.float32)),
        )

    return dict(
        conv1_w=conv_w(ks[0], inplanes, planes),
        bn1=bn(ks[1], ks[2], ks[3], ks[4], planes),
        conv2_w=conv_w(ks[5], planes, planes),
        bn2=bn(ks[6], ks[7], ks[8], ks[9], planes),
        fc1_w=jax.random.normal(ks[10], (planes, cr), jnp.float32)
        / jnp.sqrt(float(planes)),
        fc1_b=0.1 * jax.random.normal(ks[11], (cr,), jnp.float32),
        fc2_w=jax.random.normal(ks[12], (cr, planes), jnp.float32)
        / jnp.sqrt(float(cr)),
        fc2_b=0.1 * jax.random.normal(ks[13], (planes,), jnp.float32),
    )


def _bn_affine(bn, eps=1e-5):
    scale = bn["gamma"] / jnp.sqrt(bn["var"] + eps)
    bias = bn["beta"] - bn["mean"] * scale
    return scale, bias


# ----------------------------------------------------------------------------
# ResNetBasicBlock forward (stride=1, downsample=None)
# ----------------------------------------------------------------------------
def resnet_basic_block(x_nchw, params):
    # NCHW -> NHWC done in bf16 (halves the transpose HBM round trip; the
    # kernel consumes bf16 anyway).
    # TODO(synk): accept NHWC end-to-end to remove both boundary transposes.
    x = jnp.transpose(x_nchw.astype(jnp.bfloat16), (0, 2, 3, 1))
    cin = x.shape[-1]
    planes = params["conv1_w"].shape[-1]
    assert cin == planes  # stride=1 / downsample=None requires matching channels
    cr = params["fc1_w"].shape[-1]

    s1, b1 = _bn_affine(params["bn1"])
    s2, b2 = _bn_affine(params["bn2"])
    out = fused_se_basic_block_nhwc(
        x,
        params["conv1_w"].reshape(9 * cin, planes).astype(jnp.bfloat16),
        s1.reshape(1, planes).astype(jnp.float32),
        b1.reshape(1, planes).astype(jnp.float32),
        params["conv2_w"].reshape(9 * planes, planes).astype(jnp.bfloat16),
        s2.reshape(1, planes).astype(jnp.float32),
        b2.reshape(1, planes).astype(jnp.float32),
        params["fc1_w"].astype(jnp.float32),
        params["fc1_b"].reshape(1, cr).astype(jnp.float32),
        params["fc2_w"].astype(jnp.float32),
        params["fc2_b"].reshape(1, planes).astype(jnp.float32))
    return jnp.transpose(out, (0, 3, 1, 2))                      # NHWC -> NCHW


# ----------------------------------------------------------------------------
# Pure-JAX reference (bf16 conv inputs like the kernel, f32 elsewhere)
# ----------------------------------------------------------------------------
def resnet_basic_block_ref(x_nchw, params):
    x = jnp.transpose(x_nchw, (0, 2, 3, 1)).astype(jnp.float32)

    def conv_bf16(v, w):
        return jax.lax.conv_general_dilated(
            v.astype(jnp.bfloat16), w.astype(jnp.bfloat16), (1, 1), "SAME",
            dimension_numbers=("NHWC", "HWIO", "NHWC"),
            preferred_element_type=jnp.float32)

    s1, b1 = _bn_affine(params["bn1"])
    out = jnp.maximum(conv_bf16(x, params["conv1_w"]) * s1 + b1, 0.0)
    s2, b2 = _bn_affine(params["bn2"])
    out = jnp.maximum(conv_bf16(out, params["conv2_w"]) * s2 + b2, 0.0)

    pooled = jnp.mean(out, axis=(1, 2))
    s = jnp.maximum(pooled @ params["fc1_w"] + params["fc1_b"], 0.0)
    s = jax.nn.sigmoid(s @ params["fc2_w"] + params["fc2_b"])
    out = jnp.maximum(out * s[:, None, None, :] + x, 0.0)
    return jnp.transpose(out, (0, 3, 1, 2))


if __name__ == "__main__":
    key = jax.random.PRNGKey(0)
    k_x, k_p = jax.random.split(key)

    # ResNet layer1-style block: inplanes = planes = 64 -> SE hidden = 64//16 = 4.
    N, C, H, W = 2, 64, 16, 16
    x = jax.random.normal(k_x, (N, C, H, W), jnp.float32)
    params = init_params(k_p, inplanes=C, planes=C)

    out = jax.block_until_ready(jax.jit(resnet_basic_block)(x, params))
    ref = jax.block_until_ready(resnet_basic_block_ref(x, params))

    assert out.shape == (N, C, H, W)
    max_err = float(jnp.max(jnp.abs(out - ref)))
    # Kernel uses bf16 conv inputs AND a bf16 residual; reference keeps the
    # residual f32, so allow a small extra margin over pure matmul noise.
    assert jnp.allclose(out, ref, atol=3e-2, rtol=3e-2), max_err

    print("KERNEL_OK")
</pallas_src>

<mosaic_0001>
module attributes {stable_mosaic.version = 11 : i64} {
  func.func @_fused_block_kernel(%arg0: i32, %arg1: memref<1x16x16x64xbf16, #tpu.memory_space<vmem>>, %arg2: memref<576x64xbf16, #tpu.memory_space<vmem>>, %arg3: memref<1x64xf32, #tpu.memory_space<vmem>>, %arg4: memref<1x64xf32, #tpu.memory_space<vmem>>, %arg5: memref<576x64xbf16, #tpu.memory_space<vmem>>, %arg6: memref<1x64xf32, #tpu.memory_space<vmem>>, %arg7: memref<1x64xf32, #tpu.memory_space<vmem>>, %arg8: memref<64x4xf32, #tpu.memory_space<vmem>>, %arg9: memref<1x4xf32, #tpu.memory_space<vmem>>, %arg10: memref<4x64xf32, #tpu.memory_space<vmem>>, %arg11: memref<1x64xf32, #tpu.memory_space<vmem>>, %arg12: memref<1x16x16x64xf32, #tpu.memory_space<vmem>>, %arg13: memref<256x576xbf16, #tpu.memory_space<vmem>>) attributes {dimension_semantics = [#tpu.dimension_semantics<parallel>], iteration_bounds = array<i64: 2>, scalar_prefetch = 0 : i64, scratch_operands = 1 : i64, tpu.core_type = #tpu.core_type<tc>, window_params = [{transform_indices = @transform_0, window_bounds = array<i64: 1, 16, 16, 64>}, {pipeline_mode = #tpu.pipeline_mode<synchronous>, transform_indices = @transform_1, window_bounds = array<i64: 576, 64>}, {pipeline_mode = #tpu.pipeline_mode<synchronous>, transform_indices = @transform_2, window_bounds = array<i64: 1, 64>}, {pipeline_mode = #tpu.pipeline_mode<synchronous>, transform_indices = @transform_3, window_bounds = array<i64: 1, 64>}, {pipeline_mode = #tpu.pipeline_mode<synchronous>, transform_indices = @transform_4, window_bounds = array<i64: 576, 64>}, {pipeline_mode = #tpu.pipeline_mode<synchronous>, transform_indices = @transform_5, window_bounds = array<i64: 1, 64>}, {pipeline_mode = #tpu.pipeline_mode<synchronous>, transform_indices = @transform_6, window_bounds = array<i64: 1, 64>}, {pipeline_mode = #tpu.pipeline_mode<synchronous>, transform_indices = @transform_7, window_bounds = array<i64: 64, 4>}, {pipeline_mode = #tpu.pipeline_mode<synchronous>, transform_indices = @transform_8, window_bounds = array<i64: 1, 4>}, {pipeline_mode = #tpu.pipeline_mode<synchronous>, transform_indices = @transform_9, window_bounds = array<i64: 4, 64>}, {pipeline_mode = #tpu.pipeline_mode<synchronous>, transform_indices = @transform_10, window_bounds = array<i64: 1, 64>}, {transform_indices = @transform_11, window_bounds = array<i64: 1, 16, 16, 64>}]} {
    %c0 = arith.constant 0 : index
    %c0_0 = arith.constant 0 : index
    %c0_1 = arith.constant 0 : index
    %c0_2 = arith.constant 0 : index
    %0 = vector.load %arg1[%c0, %c0_0, %c0_1, %c0_2] : memref<1x16x16x64xbf16, #tpu.memory_space<vmem>>, vector<1x16x16x64xbf16>
    %1 = vector.shape_cast %0 : vector<1x16x16x64xbf16> to vector<16x16x64xbf16>
    %cst = arith.constant 0.000000e+00 : bf16
    %2 = vector.broadcast %cst : bf16 to vector<16x1x64xbf16>
    %3 = tpu.concatenate %2, %1, %2 in 1 : vector<16x1x64xbf16>, vector<16x16x64xbf16>, vector<16x1x64xbf16> -> vector<16x18x64xbf16>
    %cst_3 = arith.constant 0.000000e+00 : bf16
    %4 = vector.broadcast %cst_3 : bf16 to vector<1x18x64xbf16>
    %5 = tpu.concatenate %4, %3, %4 in 0 : vector<1x18x64xbf16>, vector<16x18x64xbf16>, vector<1x18x64xbf16> -> vector<18x18x64xbf16>
    %6 = vector.extract_strided_slice %5 {offsets = [0, 0, 0], sizes = [16, 16, 64], strides = [1, 1, 1]} : vector<18x18x64xbf16> to vector<16x16x64xbf16>
    %7 = vector.shape_cast %6 : vector<16x16x64xbf16> to vector<256x64xbf16>
    %c0_4 = arith.constant 0 : index
    %c0_5 = arith.constant 0 : index
    %8 = vector.load %arg13[%c0_4, %c0_5] : memref<256x576xbf16, #tpu.memory_space<vmem>>, vector<256x64xbf16>
    tpu.vector_store %arg13[%c0_4, %c0_5], %7 {strides = array<i32>} : memref<256x576xbf16, #tpu.memory_space<vmem>>, vector<256x64xbf16>,
    %9 = vector.extract_strided_slice %5 {offsets = [0, 1, 0], sizes = [16, 16, 64], strides = [1, 1, 1]} : vector<18x18x64xbf16> to vector<16x16x64xbf16>
    %10 = vector.shape_cast %9 : vector<16x16x64xbf16> to vector<256x64xbf16>
    %c0_6 = arith.constant 0 : index
    %c64 = arith.constant 64 : index
    %11 = vector.load %arg13[%c0_6, %c64] : memref<256x576xbf16, #tpu.memory_space<vmem>>, vector<256x64xbf16>
    tpu.vector_store %arg13[%c0_6, %c64], %10 {strides = array<i32>} : memref<256x576xbf16, #tpu.memory_space<vmem>>, vector<256x64xbf16>,
    %12 = vector.extract_strided_slice %5 {offsets = [0, 2, 0], sizes = [16, 16, 64], strides = [1, 1, 1]} : vector<18x18x64xbf16> to vector<16x16x64xbf16>
    %13 = vector.shape_cast %12 : vector<16x16x64xbf16> to vector<256x64xbf16>
    %c0_7 = arith.constant 0 : index
    %c128 = arith.constant 128 : index
    %14 = vector.load %arg13[%c0_7, %c128] : memref<256x576xbf16, #tpu.memory_space<vmem>>, vector<256x64xbf16>
    tpu.vector_store %arg13[%c0_7, %c128], %13 {strides = array<i32>} : memref<256x576xbf16, #tpu.memory_space<vmem>>, vector<256x64xbf16>,
    %15 = vector.extract_strided_slice %5 {offsets = [1, 0, 0], sizes = [16, 16, 64], strides = [1, 1, 1]} : vector<18x18x64xbf16> to vector<16x16x64xbf16>
    %16 = vector.shape_cast %15 : vector<16x16x64xbf16> to vector<256x64xbf16>
    %c0_8 = arith.constant 0 : index
    %c192 = arith.constant 192 : index
    %17 = vector.load %arg13[%c0_8, %c192] : memref<256x576xbf16, #tpu.memory_space<vmem>>, vector<256x64xbf16>
    tpu.vector_store %arg13[%c0_8, %c192], %16 {strides = array<i32>} : memref<256x576xbf16, #tpu.memory_space<vmem>>, vector<256x64xbf16>,
    %18 = vector.extract_strided_slice %5 {offsets = [1, 1, 0], sizes = [16, 16, 64], strides = [1, 1, 1]} : vector<18x18x64xbf16> to vector<16x16x64xbf16>
    %19 = vector.shape_cast %18 : vector<16x16x64xbf16> to vector<256x64xbf16>
    %c0_9 = arith.constant 0 : index
    %c256 = arith.constant 256 : index
    %20 = vector.load %arg13[%c0_9, %c256] : memref<256x576xbf16, #tpu.memory_space<vmem>>, vector<256x64xbf16>
    tpu.vector_store %arg13[%c0_9, %c256], %19 {strides = array<i32>} : memref<256x576xbf16, #tpu.memory_space<vmem>>, vector<256x64xbf16>,
    %21 = vector.extract_strided_slice %5 {offsets = [1, 2, 0], sizes = [16, 16, 64], strides = [1, 1, 1]} : vector<18x18x64xbf16> to vector<16x16x64xbf16>
    %22 = vector.shape_cast %21 : vector<16x16x64xbf16> to vector<256x64xbf16>
    %c0_10 = arith.constant 0 : index
    %c320 = arith.constant 320 : index
    %23 = vector.load %arg13[%c0_10, %c320] : memref<256x576xbf16, #tpu.memory_space<vmem>>, vector<256x64xbf16>
    tpu.vector_store %arg13[%c0_10, %c320], %22 {strides = array<i32>} : memref<256x576xbf16, #tpu.memory_space<vmem>>, vector<256x64xbf16>,
    %24 = vector.extract_strided_slice %5 {offsets = [2, 0, 0], sizes = [16, 16, 64], strides = [1, 1, 1]} : vector<18x18x64xbf16> to vector<16x16x64xbf16>
    %25 = vector.shape_cast %24 : vector<16x16x64xbf16> to vector<256x64xbf16>
    %c0_11 = arith.constant 0 : index
    %c384 = arith.constant 384 : index
    %26 = vector.load %arg13[%c0_11, %c384] : memref<256x576xbf16, #tpu.memory_space<vmem>>, vector<256x64xbf16>
    tpu.vector_store %arg13[%c0_11, %c384], %25 {strides = array<i32>} : memref<256x576xbf16, #tpu.memory_space<vmem>>, vector<256x64xbf16>,
    %27 = vector.extract_strided_slice %5 {offsets = [2, 1, 0], sizes = [16, 16, 64], strides = [1, 1, 1]} : vector<18x18x64xbf16> to vector<16x16x64xbf16>
    %28 = vector.shape_cast %27 : vector<16x16x64xbf16> to vector<256x64xbf16>
    %c0_12 = arith.constant 0 : index
    %c448 = arith.constant 448 : index
    %29 = vector.load %arg13[%c0_12, %c448] : memref<256x576xbf16, #tpu.memory_space<vmem>>, vector<256x64xbf16>
    tpu.vector_store %arg13[%c0_12, %c448], %28 {strides = array<i32>} : memref<256x576xbf16, #tpu.memory_space<vmem>>, vector<256x64xbf16>,
    %30 = vector.extract_strided_slice %5 {offsets = [2, 2, 0], sizes = [16, 16, 64], strides = [1, 1, 1]} : vector<18x18x64xbf16> to vector<16x16x64xbf16>
    %31 = vector.shape_cast %30 : vector<16x16x64xbf16> to vector<256x64xbf16>
    %c0_13 = arith.constant 0 : index
    %c512 = arith.constant 512 : index
    %32 = vector.load %arg13[%c0_13, %c512] : memref<256x576xbf16, #tpu.memory_space<vmem>>, vector<256x64xbf16>
    tpu.vector_store %arg13[%c0_13, %c512], %31 {strides = array<i32>} : memref<256x576xbf16, #tpu.memory_space<vmem>>, vector<256x64xbf16>,
    %c0_14 = arith.constant 0 : index
    %c0_15 = arith.constant 0 : index
    %33 = vector.load %arg13[%c0_14, %c0_15] : memref<256x576xbf16, #tpu.memory_space<vmem>>, vector<256x576xbf16>
    %c0_16 = arith.constant 0 : index
    %c0_17 = arith.constant 0 : index
    %34 = vector.load %arg2[%c0_16, %c0_17] : memref<576x64xbf16, #tpu.memory_space<vmem>>, vector<576x64xbf16>
    %cst_18 = arith.constant dense<0.000000e+00> : vector<256x64xf32>
    %35 = tpu.matmul %33, %34, %cst_18 {dimension_numbers = #tpu.dot_dimension_numbers<[1], [0], [0], [1], [0, 0, 1, 1], [], []>} : vector<256x576xbf16>, vector<576x64xbf16>, vector<256x64xf32> -> vector<256x64xf32>
    %c0_19 = arith.constant 0 : index
    %c0_20 = arith.constant 0 : index
    %36 = vector.load %arg3[%c0_19, %c0_20] : memref<1x64xf32, #tpu.memory_space<vmem>>, vector<1x64xf32>
    %37 = vector.broadcast %36 : vector<1x64xf32> to vector<256x64xf32>
    %38 = arith.mulf %35, %37 : vector<256x64xf32>
    %c0_21 = arith.constant 0 : index
    %c0_22 = arith.constant 0 : index
    %39 = vector.load %arg4[%c0_21, %c0_22] : memref<1x64xf32, #tpu.memory_space<vmem>>, vector<1x64xf32>
    %40 = vector.broadcast %39 : vector<1x64xf32> to vector<256x64xf32>
    %41 = arith.addf %38, %40 : vector<256x64xf32>
    %cst_23 = arith.constant 0.000000e+00 : f32
    %42 = vector.broadcast %cst_23 : f32 to vector<256x64xf32>
    %43 = arith.maximumf %41, %42 : vector<256x64xf32>
    %44 = arith.truncf %43 : vector<256x64xf32> to vector<256x64xbf16>
    %45 = vector.shape_cast %44 : vector<256x64xbf16> to vector<16x16x64xbf16>
    %cst_24 = arith.constant 0.000000e+00 : bf16
    %46 = vector.broadcast %cst_24 : bf16 to vector<16x1x64xbf16>
    %47 = tpu.concatenate %46, %45, %46 in 1 : vector<16x1x64xbf16>, vector<16x16x64xbf16>, vector<16x1x64xbf16> -> vector<16x18x64xbf16>
    %cst_25 = arith.constant 0.000000e+00 : bf16
    %48 = vector.broadcast %cst_25 : bf16 to vector<1x18x64xbf16>
    %49 = tpu.concatenate %48, %47, %48 in 0 : vector<1x18x64xbf16>, vector<16x18x64xbf16>, vector<1x18x64xbf16> -> vector<18x18x64xbf16>
    %50 = vector.extract_strided_slice %49 {offsets = [0, 0, 0], sizes = [16, 16, 64], strides = [1, 1, 1]} : vector<18x18x64xbf16> to vector<16x16x64xbf16>
    %51 = vector.shape_cast %50 : vector<16x16x64xbf16> to vector<256x64xbf16>
    %c0_26 = arith.constant 0 : index
    %c0_27 = arith.constant 0 : index
    %52 = vector.load %arg13[%c0_26, %c0_27] : memref<256x576xbf16, #tpu.memory_space<vmem>>, vector<256x64xbf16>
    tpu.vector_store %arg13[%c0_26, %c0_27], %51 {strides = array<i32>} : memref<256x576xbf16, #tpu.memory_space<vmem>>, vector<256x64xbf16>,
    %53 = vector.extract_strided_slice %49 {offsets = [0, 1, 0], sizes = [16, 16, 64], strides = [1, 1, 1]} : vector<18x18x64xbf16> to vector<16x16x64xbf16>
    %54 = vector.shape_cast %53 : vector<16x16x64xbf16> to vector<256x64xbf16>
    %c0_28 = arith.constant 0 : index
    %c64_29 = arith.constant 64 : index
    %55 = vector.load %arg13[%c0_28, %c64_29] : memref<256x576xbf16, #tpu.memory_space<vmem>>, vector<256x64xbf16>
    tpu.vector_store %arg13[%c0_28, %c64_29], %54 {strides = array<i32>} : memref<256x576xbf16, #tpu.memory_space<vmem>>, vector<256x64xbf16>,
    %56 = vector.extract_strided_slice %49 {offsets = [0, 2, 0], sizes = [16, 16, 64], strides = [1, 1, 1]} : vector<18x18x64xbf16> to vector<16x16x64xbf16>
    %57 = vector.shape_cast %56 : vector<16x16x64xbf16> to vector<256x64xbf16>
    %c0_30 = arith.constant 0 : index
    %c128_31 = arith.constant 128 : index
    %58 = vector.load %arg13[%c0_30, %c128_31] : memref<256x576xbf16, #tpu.memory_space<vmem>>, vector<256x64xbf16>
    tpu.vector_store %arg13[%c0_30, %c128_31], %57 {strides = array<i32>} : memref<256x576xbf16, #tpu.memory_space<vmem>>, vector<256x64xbf16>,
    %59 = vector.extract_strided_slice %49 {offsets = [1, 0, 0], sizes = [16, 16, 64], strides = [1, 1, 1]} : vector<18x18x64xbf16> to vector<16x16x64xbf16>
    %60 = vector.shape_cast %59 : vector<16x16x64xbf16> to vector<256x64xbf16>
    %c0_32 = arith.constant 0 : index
    %c192_33 = arith.constant 192 : index
    %61 = vector.load %arg13[%c0_32, %c192_33] : memref<256x576xbf16, #tpu.memory_space<vmem>>, vector<256x64xbf16>
    tpu.vector_store %arg13[%c0_32, %c192_33], %60 {strides = array<i32>} : memref<256x576xbf16, #tpu.memory_space<vmem>>, vector<256x64xbf16>,
    %62 = vector.extract_strided_slice %49 {offsets = [1, 1, 0], sizes = [16, 16, 64], strides = [1, 1, 1]} : vector<18x18x64xbf16> to vector<16x16x64xbf16>
    %63 = vector.shape_cast %62 : vector<16x16x64xbf16> to vector<256x64xbf16>
    %c0_34 = arith.constant 0 : index
    %c256_35 = arith.constant 256 : index
    %64 = vector.load %arg13[%c0_34, %c256_35] : memref<256x576xbf16, #tpu.memory_space<vmem>>, vector<256x64xbf16>
    tpu.vector_store %arg13[%c0_34, %c256_35], %63 {strides = array<i32>} : memref<256x576xbf16, #tpu.memory_space<vmem>>, vector<256x64xbf16>,
    %65 = vector.extract_strided_slice %49 {offsets = [1, 2, 0], sizes = [16, 16, 64], strides = [1, 1, 1]} : vector<18x18x64xbf16> to vector<16x16x64xbf16>
    %66 = vector.shape_cast %65 : vector<16x16x64xbf16> to vector<256x64xbf16>
    %c0_36 = arith.constant 0 : index
    %c320_37 = arith.constant 320 : index
    %67 = vector.load %arg13[%c0_36, %c320_37] : memref<256x576xbf16, #tpu.memory_space<vmem>>, vector<256x64xbf16>
    tpu.vector_store %arg13[%c0_36, %c320_37], %66 {strides = array<i32>} : memref<256x576xbf16, #tpu.memory_space<vmem>>, vector<256x64xbf16>,
    %68 = vector.extract_strided_slice %49 {offsets = [2, 0, 0], sizes = [16, 16, 64], strides = [1, 1, 1]} : vector<18x18x64xbf16> to vector<16x16x64xbf16>
    %69 = vector.shape_cast %68 : vector<16x16x64xbf16> to vector<256x64xbf16>
    %c0_38 = arith.constant 0 : index
    %c384_39 = arith.constant 384 : index
    %70 = vector.load %arg13[%c0_38, %c384_39] : memref<256x576xbf16, #tpu.memory_space<vmem>>, vector<256x64xbf16>
    tpu.vector_store %arg13[%c0_38, %c384_39], %69 {strides = array<i32>} : memref<256x576xbf16, #tpu.memory_space<vmem>>, vector<256x64xbf16>,
    %71 = vector.extract_strided_slice %49 {offsets = [2, 1, 0], sizes = [16, 16, 64], strides = [1, 1, 1]} : vector<18x18x64xbf16> to vector<16x16x64xbf16>
    %72 = vector.shape_cast %71 : vector<16x16x64xbf16> to vector<256x64xbf16>
    %c0_40 = arith.constant 0 : index
    %c448_41 = arith.constant 448 : index
    %73 = vector.load %arg13[%c0_40, %c448_41] : memref<256x576xbf16, #tpu.memory_space<vmem>>, vector<256x64xbf16>
    tpu.vector_store %arg13[%c0_40, %c448_41], %72 {strides = array<i32>} : memref<256x576xbf16, #tpu.memory_space<vmem>>, vector<256x64xbf16>,
    %74 = vector.extract_strided_slice %49 {offsets = [2, 2, 0], sizes = [16, 16, 64], strides = [1, 1, 1]} : vector<18x18x64xbf16> to vector<16x16x64xbf16>
    %75 = vector.shape_cast %74 : vector<16x16x64xbf16> to vector<256x64xbf16>
    %c0_42 = arith.constant 0 : index
    %c512_43 = arith.constant 512 : index
    %76 = vector.load %arg13[%c0_42, %c512_43] : memref<256x576xbf16, #tpu.memory_space<vmem>>, vector<256x64xbf16>
    tpu.vector_store %arg13[%c0_42, %c512_43], %75 {strides = array<i32>} : memref<256x576xbf16, #tpu.memory_space<vmem>>, vector<256x64xbf16>,
    %c0_44 = arith.constant 0 : index
    %c0_45 = arith.constant 0 : index
    %77 = vector.load %arg13[%c0_44, %c0_45] : memref<256x576xbf16, #tpu.memory_space<vmem>>, vector<256x576xbf16>
    %c0_46 = arith.constant 0 : index
    %c0_47 = arith.constant 0 : index
    %78 = vector.load %arg5[%c0_46, %c0_47] : memref<576x64xbf16, #tpu.memory_space<vmem>>, vector<576x64xbf16>
    %cst_48 = arith.constant dense<0.000000e+00> : vector<256x64xf32>
    %79 = tpu.matmul %77, %78, %cst_48 {dimension_numbers = #tpu.dot_dimension_numbers<[1], [0], [0], [1], [0, 0, 1, 1], [], []>} : vector<256x576xbf16>, vector<576x64xbf16>, vector<256x64xf32> -> vector<256x64xf32>
    %c0_49 = arith.constant 0 : index
    %c0_50 = arith.constant 0 : index
    %80 = vector.load %arg6[%c0_49, %c0_50] : memref<1x64xf32, #tpu.memory_space<vmem>>, vector<1x64xf32>
    %81 = vector.broadcast %80 : vector<1x64xf32> to vector<256x64xf32>
    %82 = arith.mulf %79, %81 : vector<256x64xf32>
    %c0_51 = arith.constant 0 : index
    %c0_52 = arith.constant 0 : index
    %83 = vector.load %arg7[%c0_51, %c0_52] : memref<1x64xf32, #tpu.memory_space<vmem>>, vector<1x64xf32>
    %84 = vector.broadcast %83 : vector<1x64xf32> to vector<256x64xf32>
    %85 = arith.addf %82, %84 : vector<256x64xf32>
    %cst_53 = arith.constant 0.000000e+00 : f32
    %86 = vector.broadcast %cst_53 : f32 to vector<256x64xf32>
    %87 = arith.maximumf %85, %86 : vector<256x64xf32>
    %cst_54 = arith.constant dense<0.000000e+00> : vector<64xf32>
    %88 = vector.multi_reduction <add>, %87, %cst_54 [0] : vector<256x64xf32> to vector<64xf32>
    %89 = vector.shape_cast %88 : vector<64xf32> to vector<1x64xf32>
    %cst_55 = arith.constant 2.560000e+02 : f32
    %90 = vector.broadcast %cst_55 : f32 to vector<1x64xf32>
    %91 = arith.divf %89, %90 : vector<1x64xf32>
    %c0_56 = arith.constant 0 : index
    %c0_57 = arith.constant 0 : index
    %92 = vector.load %arg8[%c0_56, %c0_57] : memref<64x4xf32, #tpu.memory_space<vmem>>, vector<64x4xf32>
    %cst_58 = arith.constant dense<0.000000e+00> : vector<1x4xf32>
    %93 = tpu.matmul %91, %92, %cst_58 {dimension_numbers = #tpu.dot_dimension_numbers<[1], [0], [0], [1], [0, 0, 1, 1], [], []>} : vector<1x64xf32>, vector<64x4xf32>, vector<1x4xf32> -> vector<1x4xf32>
    %c0_59 = arith.constant 0 : index
    %c0_60 = arith.constant 0 : index
    %94 = vector.load %arg9[%c0_59, %c0_60] : memref<1x4xf32, #tpu.memory_space<vmem>>, vector<1x4xf32>
    %95 = arith.addf %93, %94 : vector<1x4xf32>
    %cst_61 = arith.constant 0.000000e+00 : f32
    %96 = vector.broadcast %cst_61 : f32 to vector<1x4xf32>
    %97 = arith.maximumf %95, %96 : vector<1x4xf32>
    %c0_62 = arith.constant 0 : index
    %c0_63 = arith.constant 0 : index
    %98 = vector.load %arg10[%c0_62, %c0_63] : memref<4x64xf32, #tpu.memory_space<vmem>>, vector<4x64xf32>
    %cst_64 = arith.constant dense<0.000000e+00> : vector<1x64xf32>
    %99 = tpu.matmul %97, %98, %cst_64 {dimension_numbers = #tpu.dot_dimension_numbers<[1], [0], [0], [1], [0, 0, 1, 1], [], []>} : vector<1x4xf32>, vector<4x64xf32>, vector<1x64xf32> -> vector<1x64xf32>
    %c0_65 = arith.constant 0 : index
    %c0_66 = arith.constant 0 : index
    %100 = vector.load %arg11[%c0_65, %c0_66] : memref<1x64xf32, #tpu.memory_space<vmem>>, vector<1x64xf32>
    %101 = arith.addf %99, %100 : vector<1x64xf32>
    %102 = arith.negf %101 : vector<1x64xf32>
    %103 = math.exp %102 : vector<1x64xf32>
    %cst_67 = arith.constant 1.000000e+00 : f32
    %104 = vector.broadcast %cst_67 : f32 to vector<1x64xf32>
    %105 = arith.addf %104, %103 : vector<1x64xf32>
    %106 = arith.divf %104, %105 : vector<1x64xf32>
    %c0_68 = arith.constant 0 : index
    %c0_69 = arith.constant 0 : index
    %c0_70 = arith.constant 0 : index
    %c0_71 = arith.constant 0 : index
    %107 = vector.load %arg1[%c0_68, %c0_69, %c0_70, %c0_71] : memref<1x16x16x64xbf16, #tpu.memory_space<vmem>>, vector<1x16x16x64xbf16>
    %108 = vector.shape_cast %107 : vector<1x16x16x64xbf16> to vector<16x16x64xbf16>
    %109 = vector.shape_cast %108 : vector<16x16x64xbf16> to vector<256x64xbf16>
    %110 = arith.extf %109 : vector<256x64xbf16> to vector<256x64xf32>
    %111 = vector.broadcast %106 : vector<1x64xf32> to vector<256x64xf32>
    %112 = arith.mulf %87, %111 : vector<256x64xf32>
    %113 = arith.addf %112, %110 : vector<256x64xf32>
    %cst_72 = arith.constant 0.000000e+00 : f32
    %114 = vector.broadcast %cst_72 : f32 to vector<256x64xf32>
    %115 = arith.maximumf %113, %114 : vector<256x64xf32>
    %116 = vector.shape_cast %115 : vector<256x64xf32> to vector<16x16x64xf32>
    %c0_73 = arith.constant 0 : index
    %c0_74 = arith.constant 0 : index
    %c0_75 = arith.constant 0 : index
    %c0_76 = arith.constant 0 : index
    %117 = vector.load %arg12[%c0_73, %c0_74, %c0_75, %c0_76] : memref<1x16x16x64xf32, #tpu.memory_space<vmem>>, vector<1x16x16x64xf32>
    %118 = vector.shape_cast %117 : vector<1x16x16x64xf32> to vector<16x16x64xf32>
    %119 = vector.shape_cast %116 : vector<16x16x64xf32> to vector<1x16x16x64xf32>
    tpu.vector_store %arg12[%c0_73, %c0_74, %c0_75, %c0_76], %119 {strides = array<i32>} : memref<1x16x16x64xf32, #tpu.memory_space<vmem>>, vector<1x16x16x64xf32>,
    return
  }
  func.func @transform_0(%arg0: i32) -> (i32, i32, i32, i32) {
    %c0_i32 = arith.constant 0 : i32
    %c0_i32_0 = arith.constant 0 : i32
    %c0_i32_1 = arith.constant 0 : i32
    %c0_i32_2 = arith.constant 0 : i32
    return %arg0, %c0_i32, %c0_i32_0, %c0_i32_1 : i32, i32, i32, i32
  }
  func.func @transform_1(%arg0: i32) -> (i32, i32) {
    %c0_i32 = arith.constant 0 : i32
    %c0_i32_0 = arith.constant 0 : i32
    %c0_i32_1 = arith.constant 0 : i32
    return %c0_i32, %c0_i32_0 : i32, i32
  }
  func.func @transform_2(%arg0: i32) -> (i32, i32) {
    %c0_i32 = arith.constant 0 : i32
    %c0_i32_0 = arith.constant 0 : i32
    %c0_i32_1 = arith.constant 0 : i32
    return %c0_i32, %c0_i32_0 : i32, i32
  }
  func.func @transform_3(%arg0: i32) -> (i32, i32) {
    %c0_i32 = arith.constant 0 : i32
    %c0_i32_0 = arith.constant 0 : i32
    %c0_i32_1 = arith.constant 0 : i32
    return %c0_i32, %c0_i32_0 : i32, i32
  }
  func.func @transform_4(%arg0: i32) -> (i32, i32) {
    %c0_i32 = arith.constant 0 : i32
    %c0_i32_0 = arith.constant 0 : i32
    %c0_i32_1 = arith.constant 0 : i32
    return %c0_i32, %c0_i32_0 : i32, i32
  }
  func.func @transform_5(%arg0: i32) -> (i32, i32) {
    %c0_i32 = arith.constant 0 : i32
    %c0_i32_0 = arith.constant 0 : i32
    %c0_i32_1 = arith.constant 0 : i32
    return %c0_i32, %c0_i32_0 : i32, i32
  }
  func.func @transform_6(%arg0: i32) -> (i32, i32) {
    %c0_i32 = arith.constant 0 : i32
    %c0_i32_0 = arith.constant 0 : i32
    %c0_i32_1 = arith.constant 0 : i32
    return %c0_i32, %c0_i32_0 : i32, i32
  }
  func.func @transform_7(%arg0: i32) -> (i32, i32) {
    %c0_i32 = arith.constant 0 : i32
    %c0_i32_0 = arith.constant 0 : i32
    %c0_i32_1 = arith.constant 0 : i32
    return %c0_i32, %c0_i32_0 : i32, i32
  }
  func.func @transform_8(%arg0: i32) -> (i32, i32) {
    %c0_i32 = arith.constant 0 : i32
    %c0_i32_0 = arith.constant 0 : i32
    %c0_i32_1 = arith.constant 0 : i32
    return %c0_i32, %c0_i32_0 : i32, i32
  }
  func.func @transform_9(%arg0: i32) -> (i32, i32) {
    %c0_i32 = arith.constant 0 : i32
    %c0_i32_0 = arith.constant 0 : i32
    %c0_i32_1 = arith.constant 0 : i32
    return %c0_i32, %c0_i32_0 : i32, i32
  }
  func.func @transform_10(%arg0: i32) -> (i32, i32) {
    %c0_i32 = arith.constant 0 : i32
    %c0_i32_0 = arith.constant 0 : i32
    %c0_i32_1 = arith.constant 0 : i32
    return %c0_i32, %c0_i32_0 : i32, i32
  }
  func.func @transform_11(%arg0: i32) -> (i32, i32, i32, i32) {
    %c0_i32 = arith.constant 0 : i32
    %c0_i32_0 = arith.constant 0 : i32
    %c0_i32_1 = arith.constant 0 : i32
    %c0_i32_2 = arith.constant 0 : i32
    return %arg0, %c0_i32, %c0_i32_0, %c0_i32_1 : i32, i32, i32, i32
  }
}

</mosaic_0001>

<llo_original>
// kernel: resnet_basic_block.1
$region0: #{resnet_basic_block.1}
  #allocation0 [shape = 'u32[]', space=smem, size = 0x4, offset = 0x4, fixed_abs, tag = 'smem constant byte address 0x4 - core index']
  #allocation1 [shape = 'u32[144,128]{1,0:T(1,128)}', space=vmem, size = 0x12000, scoped, tag = 'internal scratch']
  #allocation2 [shape = 'bf16[256,576]{1,0:T(16,128)(2,1)}', space=vmem, size = 0x50000, scoped, tag = 'scratch operand']
  %s0 = inlined_call_operand.vmem [shape: bf16[2,16,16,64], index: 0, kind: input, shape index: {}]
  %s1 = inlined_call_operand.vmem [shape: bf16[576,64], index: 1, kind: input, shape index: {}]
  %s2 = inlined_call_operand.vmem [shape: f32[1,64], index: 2, kind: input, shape index: {}]
  %s3 = inlined_call_operand.vmem [shape: f32[1,64], index: 3, kind: input, shape index: {}]
  %s4 = inlined_call_operand.vmem [shape: bf16[576,64], index: 4, kind: input, shape index: {}]
  %s5 = inlined_call_operand.vmem [shape: f32[1,64], index: 5, kind: input, shape index: {}]
  %s6 = inlined_call_operand.vmem [shape: f32[1,64], index: 6, kind: input, shape index: {}]
  %s7 = inlined_call_operand.vmem [shape: f32[64,4], index: 7, kind: input, shape index: {}]
  %s8 = inlined_call_operand.vmem [shape: f32[1,4], index: 8, kind: input, shape index: {}]
  %s9 = inlined_call_operand.vmem [shape: f32[4,64], index: 9, kind: input, shape index: {}]
  %s10 = inlined_call_operand.vmem [shape: f32[1,64], index: 10, kind: input, shape index: {}]
  %s11 = inlined_call_operand.hbm [shape: f32[2,16,16,64], index: 11, kind: output, shape index: {}]
  %s12 = sld [smem:[#allocation0]]
  $region77: #{resnet_basic_block.1} parent=0
    _
  %s14 = ssub.s32 1, %s12
  %s15 = scalar_select 0, %s14, %s12
  $region1: #{resnet_basic_block.1} parent=0
    #allocation3 [shape = 'u8[262144]{0}', space=vmem, size = 0x40000, scoped, tag = 'output window, operand 0']
    #allocation4 [shape = 's32[2]{0}', space=sflag, size = 0x8, scoped, tag = 'scoped memory for resnet_basic_block.1']
    %16 = vsyncpa [#allocation4], 0
    %s17 = scalar_lea.sflag [#allocation4], 1
    %18 = vsyncpa %s17, 0
    loop: start=0, step=1, limit=4
    $region2: #{resnet_basic_block.1} parent=1 // loop_pre_header
      _
    $region3: #{resnet_basic_block.1} parent=1 // loop_header
      %s20 = sphi 0, %s24
      %p21 = scmp.ge.s32.totalorder %s20, 4
      %s30 = sphi 0, %s32
      %s33 = sphi 0, %s30
      %s34 = sphi 0, %s33
      %s50 = sphi 0, %s34
      %s54 = sphi 0, %s54
      %s56 = sphi 0, %s54
      %s57 = sphi 0, %s56
      %s71 = sphi 0, %s57
      %s75 = sphi 0, %s75
      %s77 = sphi 0, %s75
      %s78 = sphi 0, %s77
      %s92 = sphi 0, %s78
      %s96 = sphi 0, %s96
      %s98 = sphi 0, %s96
      %s99 = sphi 0, %s98
      %s113 = sphi 0, %s99
      %s117 = sphi 0, %s117
      %s119 = sphi 0, %s117
      %s120 = sphi 0, %s119
      %s134 = sphi 0, %s120
      %s138 = sphi 0, %s138
      %s140 = sphi 0, %s138
      %s141 = sphi 0, %s140
      %s155 = sphi 0, %s141
      %s159 = sphi 0, %s159
      %s161 = sphi 0, %s159
      %s162 = sphi 0, %s161
      %s176 = sphi 0, %s162
      %s180 = sphi 0, %s180
      %s182 = sphi 0, %s180
      %s183 = sphi 0, %s182
      %s197 = sphi 0, %s183
      %s201 = sphi 0, %s201
      %s203 = sphi 0, %s201
      %s204 = sphi 0, %s203
      %s218 = sphi 0, %s204
      %s222 = sphi 0, %s222
      %s224 = sphi 0, %s222
      %s225 = sphi 0, %s224
      %s239 = sphi 0, %s225
      %s243 = sphi 0, %s243
      %s245 = sphi 0, %s243
      %s246 = sphi 0, %s245
      %s260 = sphi 0, %s246
      %s266 = sphi 0, %s268
      %s269 = sphi 0, %s266
      %s270 = sphi 0, %s269
      %s286 = sphi 0, %s270
    $region4: #{resnet_basic_block.1} parent=1 // loop_header_branch
      %23 = sbr.rel (%p21) target = $region8
    $region5: #{resnet_basic_block.1} parent=1 // loop_body
      %s25 = ssub.s32 %s20, 1
      %s26 = ssub.s32 %s20, 2
      %s27 = sadd.s32 %s20, 1
      %s28 = ssub.s32 %s20, %s27
      %p29 = scmp.eq.s32.totalorder %s28, 0
      %s31 = sadd.s32 %s30, 1
      %s32 = scalar_select %p29, %s30, %s31
      %p35 = pneg %p29
      %p36 = scmp.eq.s32.totalorder %s20, 1
      %p37 = por %p35, %p36
      %p38 = scmp.ne.s32.totalorder %s30, %s33
      %p39 = scmp.eq.s32.totalorder %s20, 0
      %p40 = por %p38, %p39
      %p41 = scmp.ne.s32.totalorder %s30, %s33
      %p42 = scmp.eq.s32.totalorder %s25, 1
      %p43 = por %p41, %p42
      %p44 = scmp.ne.s32.totalorder %s33, %s34
      %p45 = scmp.eq.s32.totalorder %s25, 0
      %p46 = por %p44, %p45
      %p47 = scmp.ne.s32.totalorder %s33, %s34
      %p48 = scmp.eq.s32.totalorder %s26, 1
      %p49 = por %p47, %p48
      %p51 = scmp.ne.s32.totalorder %s34, %s50
      %p52 = scmp.eq.s32.totalorder %s26, 0
      %p53 = por %p51, %p52
      %s55 = sadd.s32 %s54, 1
      %p58 = scmp.eq.s32.totalorder %s20, 1
      %p59 = scmp.ne.s32.totalorder %s54, %s56
      %p60 = scmp.eq.s32.totalorder %s20, 0
      %p61 = por %p59, %p60
      %p62 = scmp.ne.s32.totalorder %s54, %s56
      %p63 = scmp.eq.s32.totalorder %s25, 1
      %p64 = por %p62, %p63
      %p65 = scmp.ne.s32.totalorder %s56, %s57
      %p66 = scmp.eq.s32.totalorder %s25, 0
      %p67 = por %p65, %p66
      %p68 = scmp.ne.s32.totalorder %s56, %s57
      %p69 = scmp.eq.s32.totalorder %s26, 1
      %p70 = por %p68, %p69
      %p72 = scmp.ne.s32.totalorder %s57, %s71
      %p73 = scmp.eq.s32.totalorder %s26, 0
      %p74 = por %p72, %p73
      %s76 = sadd.s32 %s75, 1
      %p79 = scmp.eq.s32.totalorder %s20, 1
      %p80 = scmp.ne.s32.totalorder %s75, %s77
      %p81 = scmp.eq.s32.totalorder %s20, 0
      %p82 = por %p80, %p81
      %p83 = scmp.ne.s32.totalorder %s75, %s77
      %p84 = scmp.eq.s32.totalorder %s25, 1
      %p85 = por %p83, %p84
      %p86 = scmp.ne.s32.totalorder %s77, %s78
      %p87 = scmp.eq.s32.totalorder %s25, 0
      %p88 = por %p86, %p87
      %p89 = scmp.ne.s32.totalorder %s77, %s78
      %p90 = scmp.eq.s32.totalorder %s26, 1
      %p91 = por %p89, %p90
      %p93 = scmp.ne.s32.totalorder %s78, %s92
      %p94 = scmp.eq.s32.totalorder %s26, 0
      %p95 = por %p93, %p94
      %s97 = sadd.s32 %s96, 1
      %p100 = scmp.eq.s32.totalorder %s20, 1
      %p101 = scmp.ne.s32.totalorder %s96, %s98
      %p102 = scmp.eq.s32.totalorder %s20, 0
      %p103 = por %p101, %p102
      %p104 = scmp.ne.s32.totalorder %s96, %s98
      %p105 = scmp.eq.s32.totalorder %s25, 1
      %p106 = por %p104, %p105
      %p107 = scmp.ne.s32.totalorder %s98, %s99
      %p108 = scmp.eq.s32.totalorder %s25, 0
      %p109 = por %p107, %p108
      %p110 = scmp.ne.s32.totalorder %s98, %s99
      %p111 = scmp.eq.s32.totalorder %s26, 1
      %p112 = por %p110, %p111
      %p114 = scmp.ne.s32.totalorder %s99, %s113
      %p115 = scmp.eq.s32.totalorder %s26, 0
      %p116 = por %p114, %p115
      %s118 = sadd.s32 %s117, 1
      %p121 = scmp.eq.s32.totalorder %s20, 1
      %p122 = scmp.ne.s32.totalorder %s117, %s119
      %p123 = scmp.eq.s32.totalorder %s20, 0
      %p124 = por %p122, %p123
      %p125 = scmp.ne.s32.totalorder %s117, %s119
      %p126 = scmp.eq.s32.totalorder %s25, 1
      %p127 = por %p125, %p126
      %p128 = scmp.ne.s32.totalorder %s119, %s120
      %p129 = scmp.eq.s32.totalorder %s25, 0
      %p130 = por %p128, %p129
      %p131 = scmp.ne.s32.totalorder %s119, %s120
      %p132 = scmp.eq.s32.totalorder %s26, 1
      %p133 = por %p131, %p132
      %p135 = scmp.ne.s32.totalorder %s120, %s134
      %p136 = scmp.eq.s32.totalorder %s26, 0
      %p137 = por %p135, %p136
      %s139 = sadd.s32 %s138, 1
      %p142 = scmp.eq.s32.totalorder %s20, 1
      %p143 = scmp.ne.s32.totalorder %s138, %s140
      %p144 = scmp.eq.s32.totalorder %s20, 0
      %p145 = por %p143, %p144
      %p146 = scmp.ne.s32.totalorder %s138, %s140
      %p147 = scmp.eq.s32.totalorder %s25, 1
      %p148 = por %p146, %p147
      %p149 = scmp.ne.s32.totalorder %s140, %s141
      %p150 = scmp.eq.s32.totalorder %s25, 0
      %p151 = por %p149, %p150
      %p152 = scmp.ne.s32.totalorder %s140, %s141
      %p153 = scmp.eq.s32.totalorder %s26, 1
      %p154 = por %p152, %p153
      %p156 = scmp.ne.s32.totalorder %s141, %s155
      %p157 = scmp.eq.s32.totalorder %s26, 0
      %p158 = por %p156, %p157
      %s160 = sadd.s32 %s159, 1
      %p163 = scmp.eq.s32.totalorder %s20, 1
      %p164 = scmp.ne.s32.totalorder %s159, %s161
      %p165 = scmp.eq.s32.totalorder %s20, 0
      %p166 = por %p164, %p165
      %p167 = scmp.ne.s32.totalorder %s159, %s161
      %p168 = scmp.eq.s32.totalorder %s25, 1
      %p169 = por %p167, %p168
      %p170 = scmp.ne.s32.totalorder %s161, %s162
      %p171 = scmp.eq.s32.totalorder %s25, 0
      %p172 = por %p170, %p171
      %p173 = scmp.ne.s32.totalorder %s161, %s162
      %p174 = scmp.eq.s32.totalorder %s26, 1
      %p175 = por %p173, %p174
      %p177 = scmp.ne.s32.totalorder %s162, %s176
      %p178 = scmp.eq.s32.totalorder %s26, 0
      %p179 = por %p177, %p178
      %s181 = sadd.s32 %s180, 1
      %p184 = scmp.eq.s32.totalorder %s20, 1
      %p185 = scmp.ne.s32.totalorder %s180, %s182
      %p186 = scmp.eq.s32.totalorder %s20, 0
      %p187 = por %p185, %p186
      %p188 = scmp.ne.s32.totalorder %s180, %s182
      %p189 = scmp.eq.s32.totalorder %s25, 1
      %p190 = por %p188, %p189
      %p191 = scmp.ne.s32.totalorder %s182, %s183
      %p192 = scmp.eq.s32.totalorder %s25, 0
      %p193 = por %p191, %p192
      %p194 = scmp.ne.s32.totalorder %s182, %s183
      %p195 = scmp.eq.s32.totalorder %s26, 1
      %p196 = por %p194, %p195
      %p198 = scmp.ne.s32.totalorder %s183, %s197
      %p199 = scmp.eq.s32.totalorder %s26, 0
      %p200 = por %p198, %p199
      %s202 = sadd.s32 %s201, 1
      %p205 = scmp.eq.s32.totalorder %s20, 1
      %p206 = scmp.ne.s32.totalorder %s201, %s203
      %p207 = scmp.eq.s32.totalorder %s20, 0
      %p208 = por %p206, %p207
      %p209 = scmp.ne.s32.totalorder %s201, %s203
      %p210 = scmp.eq.s32.totalorder %s25, 1
      %p211 = por %p209, %p210
      %p212 = scmp.ne.s32.totalorder %s203, %s204
      %p213 = scmp.eq.s32.totalorder %s25, 0
      %p214 = por %p212, %p213
      %p215 = scmp.ne.s32.totalorder %s203, %s204
      %p216 = scmp.eq.s32.totalorder %s26, 1
      %p217 = por %p215, %p216
      %p219 = scmp.ne.s32.totalorder %s204, %s218
      %p220 = scmp.eq.s32.totalorder %s26, 0
      %p221 = por %p219, %p220
      %s223 = sadd.s32 %s222, 1
      %p226 = scmp.eq.s32.totalorder %s20, 1
      %p227 = scmp.ne.s32.totalorder %s222, %s224
      %p228 = scmp.eq.s32.totalorder %s20, 0
      %p229 = por %p227, %p228
      %p230 = scmp.ne.s32.totalorder %s222, %s224
      %p231 = scmp.eq.s32.totalorder %s25, 1
      %p232 = por %p230, %p231
      %p233 = scmp.ne.s32.totalorder %s224, %s225
      %p234 = scmp.eq.s32.totalorder %s25, 0
      %p235 = por %p233, %p234
      %p236 = scmp.ne.s32.totalorder %s224, %s225
      %p237 = scmp.eq.s32.totalorder %s26, 1
      %p238 = por %p236, %p237
      %p240 = scmp.ne.s32.totalorder %s225, %s239
      %p241 = scmp.eq.s32.totalorder %s26, 0
      %p242 = por %p240, %p241
      %s244 = sadd.s32 %s243, 1
      %p247 = scmp.eq.s32.totalorder %s20, 1
      %p248 = scmp.ne.s32.totalorder %s243, %s245
      %p249 = scmp.eq.s32.totalorder %s20, 0
      %p250 = por %p248, %p249
      %p251 = scmp.ne.s32.totalorder %s243, %s245
      %p252 = scmp.eq.s32.totalorder %s25, 1
      %p253 = por %p251, %p252
      %p254 = scmp.ne.s32.totalorder %s245, %s246
      %p255 = scmp.eq.s32.totalorder %s25, 0
      %p256 = por %p254, %p255
      %p257 = scmp.ne.s32.totalorder %s245, %s246
      %p258 = scmp.eq.s32.totalorder %s26, 1
      %p259 = por %p257, %p258
      %p261 = scmp.ne.s32.totalorder %s246, %s260
      %p262 = scmp.eq.s32.totalorder %s26, 0
      %p263 = por %p261, %p262
      %s264 = ssub.s32 %s20, %s27
      %p265 = scmp.eq.s32.totalorder %s264, 0
      %s267 = sadd.s32 %s266, 1
      %s268 = scalar_select %p265, %s266, %s267
      %p271 = pneg %p265
      %p272 = scmp.eq.s32.totalorder %s20, 1
      %p273 = por %p271, %p272
      %p274 = scmp.ne.s32.totalorder %s266, %s269
      %p275 = scmp.eq.s32.totalorder %s20, 0
      %p276 = por %p274, %p275
      %p277 = scmp.ne.s32.totalorder %s266, %s269
      %p278 = scmp.eq.s32.totalorder %s25, 1
      %p279 = por %p277, %p278
      %p280 = scmp.ne.s32.totalorder %s269, %s270
      %p281 = scmp.eq.s32.totalorder %s25, 0
      %p282 = por %p280, %p281
      %p283 = scmp.ne.s32.totalorder %s269, %s270
      %p284 = scmp.eq.s32.totalorder %s26, 1
      %p285 = por %p283, %p284
      %p287 = scmp.ne.s32.totalorder %s270, %s286
      %p288 = scmp.eq.s32.totalorder %s26, 0
      %p289 = por %p287, %p288
      %p290 = scmp.le.s32.totalorder 1, %s20
      %p291 = scmp.lt.s32.totalorder %s20, 3
      %p292 = pnand %p290, %p291
      %p293 = pneg %p292
      // Predicated region
      $region9: #{resnet_basic_block.1} parent=5 // pred_check
        _
      $region10: #{resnet_basic_block.1} parent=5 // pred_check_branch
        %295 = sbr.rel (%p292) target = $region12
      $region11: #{resnet_basic_block.1} parent=5 // pred_region
        %s296 = ssub.s32 %s20, 1
        // Predicated region
        $region13: #{resnet_basic_block.1} parent=11 // pred_check
          %p297 = pneg %p67
        $region14: #{resnet_basic_block.1} parent=11 // pred_check_branch
          %299 = sbr.rel (%p297) target = $region16
        $region15: #{resnet_basic_block.1} parent=11 // pred_region
          _
        $region16: #{resnet_basic_block.1} parent=11 // pred_fallthru
          _
        // Predicated region
        $region17: #{resnet_basic_block.1} parent=11 // pred_check
          %p300 = pneg %p88
        $region18: #{resnet_basic_block.1} parent=11 // pred_check_branch
          %302 = sbr.rel (%p300) target = $region20
        $region19: #{resnet_basic_block.1} parent=11 // pred_region
          _
        $region20: #{resnet_basic_block.1} parent=11 // pred_fallthru
          _
        // Predicated region
        $region21: #{resnet_basic_block.1} parent=11 // pred_check
          %p303 = pneg %p109
        $region22: #{resnet_basic_block.1} parent=11 // pred_check_branch
          %305 = sbr.rel (%p303) target = $region24
        $region23: #{resnet_basic_block.1} parent=11 // pred_region
          _
        $region24: #{resnet_basic_block.1} parent=11 // pred_fallthru
          _
        // Predicated region
        $region25: #{resnet_basic_block.1} parent=11 // pred_check
          %p306 = pneg %p130
        $region26: #{resnet_basic_block.1} parent=11 // pred_check_branch
          %308 = sbr.rel (%p306) target = $region28
        $region27: #{resnet_basic_block.1} parent=11 // pred_region
          _
        $region28: #{resnet_basic_block.1} parent=11 // pred_fallthru
          _
        // Predicated region
        $region29: #{resnet_basic_block.1} parent=11 // pred_check
          %p309 = pneg %p151
        $region30: #{resnet_basic_block.1} parent=11 // pred_check_branch
          %311 = sbr.rel (%p309) target = $region32
        $region31: #{resnet_basic_block.1} parent=11 // pred_region
          _
        $region32: #{resnet_basic_block.1} parent=11 // pred_fallthru
          _
        // Predicated region
        $region33: #{resnet_basic_block.1} parent=11 // pred_check
          %p312 = pneg %p172
        $region34: #{resnet_basic_block.1} parent=11 // pred_check_branch
          %314 = sbr.rel (%p312) target = $region36
        $region35: #{resnet_basic_block.1} parent=11 // pred_region
          _
        $region36: #{resnet_basic_block.1} parent=11 // pred_fallthru
          _
        // Predicated region
        $region37: #{resnet_basic_block.1} parent=11 // pred_check
          %p315 = pneg %p193
        $region38: #{resnet_basic_block.1} parent=11 // pred_check_branch
          %317 = sbr.rel (%p315) target = $region40
        $region39: #{resnet_basic_block.1} parent=11 // pred_region
          _
        $region40: #{resnet_basic_block.1} parent=11 // pred_fallthru
          _
        // Predicated region
        $region41: #{resnet_basic_block.1} parent=11 // pred_check
          %p318 = pneg %p214
        $region42: #{resnet_basic_block.1} parent=11 // pred_check_branch
          %320 = sbr.rel (%p318) target = $region44
        $region43: #{resnet_basic_block.1} parent=11 // pred_region
          _
        $region44: #{resnet_basic_block.1} parent=11 // pred_fallthru
          _
        // Predicated region
        $region45: #{resnet_basic_block.1} parent=11 // pred_check
          %p321 = pneg %p235
        $region46: #{resnet_basic_block.1} parent=11 // pred_check_branch
          %323 = sbr.rel (%p321) target = $region48
        $region47: #{resnet_basic_block.1} parent=11 // pred_region
          _
        $region48: #{resnet_basic_block.1} parent=11 // pred_fallthru
          _
        // Predicated region
        $region49: #{resnet_basic_block.1} parent=11 // pred_check
          %p324 = pneg %p256
        $region50: #{resnet_basic_block.1} parent=11 // pred_check_branch
          %326 = sbr.rel (%p324) target = $region52
        $region51: #{resnet_basic_block.1} parent=11 // pred_region
          _
        $region52: #{resnet_basic_block.1} parent=11 // pred_fallthru
          _
      $region12: #{resnet_basic_block.1} parent=5 // pred_fallthru
        _
      %p327 = scmp.lt.s32.totalorder %s20, 2
      // Predicated region
      $region53: #{resnet_basic_block.1} parent=5 // pred_check
        %p328 = pneg %p327
      $region54: #{resnet_basic_block.1} parent=5 // pred_check_branch
        %330 = sbr.rel (%p328) target = $region56
      $region55: #{resnet_basic_block.1} parent=5 // pred_region
        // Predicated region
        $region57: #{resnet_basic_block.1} parent=55 // pred_check
          %p331 = pneg %p40
        $region58: #{resnet_basic_block.1} parent=55 // pred_check_branch
          %333 = sbr.rel (%p331) target = $region60
        $region59: #{resnet_basic_block.1} parent=55 // pred_region
          %p334 = scmp.lt.s32.totalorder %s20, 1
          %s335 = scalar_select %p334, %s20, 1
          %s336 = smul.addr %s335, 32
          %s337 = smul.addr %s336, 4
          %s338 = scalar_lea.vmem %s0, %s337
        $region60: #{resnet_basic_block.1} parent=55 // pred_fallthru
          _
      $region56: #{resnet_basic_block.1} parent=5 // pred_fallthru
        _
      %p339 = scmp.le.s32.totalorder 1, %s20
      %p340 = scmp.lt.s32.totalorder %s20, 3
      %p341 = pnand %p339, %p340
      %p342 = pneg %p341
      // Predicated region
      $region61: #{resnet_basic_block.1} parent=5 // pred_check
        _
      $region62: #{resnet_basic_block.1} parent=5 // pred_check_branch
        %344 = sbr.rel (%p341) target = $region64
      $region63: #{resnet_basic_block.1} parent=5 // pred_region
        %s345 = ssub.s32 %s20, 1
        %p346 = scmp.lt.s32.totalorder %s25, 1
        %s347 = scalar_select %p346, %s25, 1
        %s348 = smul.addr %s347, 32
        %s349 = smul.addr %s348, 4
        %s350 = scalar_lea.vmem %s0, %s349
        %p351 = pneg %p46
        %p352 = pneg %p43
        %p353 = pneg %p67
        %p354 = pneg %p64
        %p355 = pneg %p88
        %p356 = pneg %p85
        %p357 = pneg %p109
        %p358 = pneg %p106
        %p359 = pneg %p130
        %p360 = pneg %p127
        %p361 = pneg %p151
        %p362 = pneg %p148
        %p363 = pneg %p172
        %p364 = pneg %p169
        %p365 = pneg %p193
        %p366 = pneg %p190
        %p367 = pneg %p214
        %p368 = pneg %p211
        %p369 = pneg %p235
        %p370 = pneg %p232
        %p371 = pneg %p256
        %p372 = pneg %p253
        %p373 = pneg %p282
        %p374 = pneg %p279
        %s375 = sand.u32 %s269, 1
        %s376 = scalar_lea.sflag [#allocation4], %s375
        %s377 = sand.u32 %s269, 1
        %s378 = smul.addr %s377, 256
        %s379 = scalar_lea.vmem [#allocation3], %s378
        %p380 = scmp.lt.s32.totalorder %s25, 1
        %s381 = scalar_select %p380, %s25, 1
        %s382 = smul.addr %s381, 32
        %s383 = smul.addr %s382, 4
        %s384 = scalar_lea.vmem %s0, %s383
        %v386 = vld [vmem:[%s384] sm:$0xf]
        %v387 = vld [vmem:[%s384 + $0x4] sm:$0xf]
        %v388 = vld [vmem:[%s384 + $0x8] sm:$0xf]
        %v389 = vld [vmem:[%s384 + $0xc] sm:$0xf]
        %v390 = vld [vmem:[%s384 + $0x10] sm:$0xf]
        %v391 = vld [vmem:[%s384 + $0x14] sm:$0xf]
        %v392 = vld [vmem:[%s384 + $0x18] sm:$0xf]
        %v393 = vld [vmem:[%s384 + $0x1c] sm:$0xf]
        %v394 = vld [vmem:[%s384 + $0x20] sm:$0xf]
        %v395 = vld [vmem:[%s384 + $0x24] sm:$0xf]
        %v396 = vld [vmem:[%s384 + $0x28] sm:$0xf]
        %v397 = vld [vmem:[%s384 + $0x2c] sm:$0xf]
        %v398 = vld [vmem:[%s384 + $0x30] sm:$0xf]
        %v399 = vld [vmem:[%s384 + $0x34] sm:$0xf]
        %v400 = vld [vmem:[%s384 + $0x38] sm:$0xf]
        %v401 = vld [vmem:[%s384 + $0x3c] sm:$0xf]
        %v402 = vld [vmem:[%s384 + $0x40] sm:$0xf]
        %v403 = vld [vmem:[%s384 + $0x44] sm:$0xf]
        %v404 = vld [vmem:[%s384 + $0x48] sm:$0xf]
        %v405 = vld [vmem:[%s384 + $0x4c] sm:$0xf]
        %v406 = vld [vmem:[%s384 + $0x50] sm:$0xf]
        %v407 = vld [vmem:[%s384 + $0x54] sm:$0xf]
        %v408 = vld [vmem:[%s384 + $0x58] sm:$0xf]
        %v409 = vld [vmem:[%s384 + $0x5c] sm:$0xf]
        %v410 = vld [vmem:[%s384 + $0x60] sm:$0xf]
        %v411 = vld [vmem:[%s384 + $0x64] sm:$0xf]
        %v412 = vld [vmem:[%s384 + $0x68] sm:$0xf]
        %v413 = vld [vmem:[%s384 + $0x6c] sm:$0xf]
        %v414 = vld [vmem:[%s384 + $0x70] sm:$0xf]
        %v415 = vld [vmem:[%s384 + $0x74] sm:$0xf]
        %v416 = vld [vmem:[%s384 + $0x78] sm:$0xf]
        %v417 = vld [vmem:[%s384 + $0x7c] sm:$0xf]
        %v450 = vunpack.c.l.b16 %v386
        %v451 = vunpack.c.l.b16 %v387
        %v452 = vunpack.c.l.b16 %v388
        %v453 = vunpack.c.l.b16 %v389
        %v454 = vunpack.c.l.b16 %v390
        %v455 = vunpack.c.l.b16 %v391
        %v456 = vunpack.c.l.b16 %v392
        %v457 = vunpack.c.l.b16 %v393
        %v458 = vunpack.c.l.b16 %v394
        %v459 = vunpack.c.l.b16 %v395
        %v460 = vunpack.c.l.b16 %v396
        %v461 = vunpack.c.l.b16 %v397
        %v462 = vunpack.c.l.b16 %v398
        %v463 = vunpack.c.l.b16 %v399
        %v464 = vunpack.c.l.b16 %v400
        %v465 = vunpack.c.l.b16 %v401
        %v466 = vunpack.c.l.b16 %v402
        %v467 = vunpack.c.l.b16 %v403
        %v468 = vunpack.c.l.b16 %v404
        %v469 = vunpack.c.l.b16 %v405
        %v470 = vunpack.c.l.b16 %v406
        %v471 = vunpack.c.l.b16 %v407
        %v472 = vunpack.c.l.b16 %v408
        %v473 = vunpack.c.l.b16 %v409
        %v474 = vunpack.c.l.b16 %v410
        %v475 = vunpack.c.l.b16 %v411
        %v476 = vunpack.c.l.b16 %v412
        %v477 = vunpack.c.l.b16 %v413
        %v478 = vunpack.c.l.b16 %v414
        %v479 = vunpack.c.l.b16 %v415
        %v480 = vunpack.c.l.b16 %v416
        %v481 = vunpack.c.l.b16 %v417
        %v482 = vpack.c.b16 %v451, %v450
        %v483 = vpack.c.b16 %v453, %v452
        %v484 = vpack.c.b16 %v455, %v454
        %v485 = vpack.c.b16 %v457, %v456
        %v486 = vpack.c.b16 %v459, %v458
        %v487 = vpack.c.b16 %v461, %v460
        %v488 = vpack.c.b16 %v463, %v462
        %v489 = vpack.c.b16 %v465, %v464
        %v490 = vpack.c.b16 %v467, %v466
        %v491 = vpack.c.b16 %v469, %v468
        %v492 = vpack.c.b16 %v471, %v470
        %v493 = vpack.c.b16 %v473, %v472
        %v494 = vpack.c.b16 %v475, %v474
        %v495 = vpack.c.b16 %v477, %v476
        %v496 = vpack.c.b16 %v479, %v478
        %v497 = vpack.c.b16 %v481, %v480
        %v499 = vshrl.u32 %v482, 16
        %v501 = vrot.slane %v499, 7
        %v502 = vshll.u32 %v482, 16
        %v504 = vor.u32 %v501, %v502
        %v506 = vshrl.u32 %v483, 16
        %v508 = vrot.slane %v506, 7
        %v509 = vshll.u32 %v483, 16
        %v511 = vor.u32 %v508, %v509
        %v513 = vshrl.u32 %v484, 16
        %v515 = vrot.slane %v513, 7
        %v516 = vshll.u32 %v484, 16
        %v518 = vor.u32 %v515, %v516
        %v520 = vshrl.u32 %v485, 16
        %v522 = vrot.slane %v520, 7
        %v523 = vshll.u32 %v485, 16
        %v525 = vor.u32 %v522, %v523
        %v527 = vshrl.u32 %v486, 16
        %v529 = vrot.slane %v527, 7
        %v530 = vshll.u32 %v486, 16
        %v532 = vor.u32 %v529, %v530
        %v534 = vshrl.u32 %v487, 16
        %v536 = vrot.slane %v534, 7
        %v537 = vshll.u32 %v487, 16
        %v539 = vor.u32 %v536, %v537
        %v541 = vshrl.u32 %v488, 16
        %v543 = vrot.slane %v541, 7
        %v544 = vshll.u32 %v488, 16
        %v546 = vor.u32 %v543, %v544
        %v548 = vshrl.u32 %v489, 16
        %v550 = vrot.slane %v548, 7
        %v551 = vshll.u32 %v489, 16
        %v553 = vor.u32 %v550, %v551
        %v555 = vshrl.u32 %v490, 16
        %v557 = vrot.slane %v555, 7
        %v558 = vshll.u32 %v490, 16
        %v560 = vor.u32 %v557, %v558
        %v562 = vshrl.u32 %v491, 16
        %v564 = vrot.slane %v562, 7
        %v565 = vshll.u32 %v491, 16
        %v567 = vor.u32 %v564, %v565
        %v569 = vshrl.u32 %v492, 16
        %v571 = vrot.slane %v569, 7
        %v572 = vshll.u32 %v492, 16
        %v574 = vor.u32 %v571, %v572
        %v576 = vshrl.u32 %v493, 16
        %v578 = vrot.slane %v576, 7
        %v579 = vshll.u32 %v493, 16
        %v581 = vor.u32 %v578, %v579
        %v583 = vshrl.u32 %v494, 16
        %v585 = vrot.slane %v583, 7
        %v586 = vshll.u32 %v494, 16
        %v588 = vor.u32 %v585, %v586
        %v590 = vshrl.u32 %v495, 16
        %v592 = vrot.slane %v590, 7
        %v593 = vshll.u32 %v495, 16
        %v595 = vor.u32 %v592, %v593
        %v597 = vshrl.u32 %v496, 16
        %v599 = vrot.slane %v597, 7
        %v600 = vshll.u32 %v496, 16
        %v602 = vor.u32 %v599, %v600
        %v604 = vshrl.u32 %v497, 16
        %v606 = vrot.slane %v604, 7
        %v607 = vshll.u32 %v497, 16
        %v609 = vor.u32 %v606, %v607
        %vm642 = vcmask 1040384
        %vm643 = vsmask.f32 256
        %vm644 = vmand %vm642, %vm643
        %v645 = vsel %vm644, 0, %v504
        %v646 = vsel %vm644, 0, %v511
        %v647 = vsel %vm644, 0, %v518
        %v648 = vsel %vm644, 0, %v525
        %v649 = vsel %vm644, 0, %v532
        %v650 = vsel %vm644, 0, %v539
        %v651 = vsel %vm644, 0, %v546
        %v652 = vsel %vm644, 0, %v553
        %v653 = vsel %vm644, 0, %v560
        %v654 = vsel %vm644, 0, %v567
        %v655 = vsel %vm644, 0, %v574
        %v656 = vsel %vm644, 0, %v581
        %v657 = vsel %vm644, 0, %v588
        %v658 = vsel %vm644, 0, %v595
        %v659 = vsel %vm644, 0, %v602
        %v660 = vsel %vm644, 0, %v609
        %v661 = vsel %vm644, %v501, 0
        %v662 = vsel %vm644, %v508, 0
        %v663 = vsel %vm644, %v515, 0
        %v664 = vsel %vm644, %v522, 0
        %v665 = vsel %vm644, %v529, 0
        %v666 = vsel %vm644, %v536, 0
        %v667 = vsel %vm644, %v543, 0
        %v668 = vsel %vm644, %v550, 0
        %v669 = vsel %vm644, %v557, 0
        %v670 = vsel %vm644, %v564, 0
        %v671 = vsel %vm644, %v571, 0
        %v672 = vsel %vm644, %v578, 0
        %v673 = vsel %vm644, %v585, 0
        %v674 = vsel %vm644, %v592, 0
        %v675 = vsel %vm644, %v599, 0
        %v676 = vsel %vm644, %v606, 0
        %vm677 = vcmask 523264
        %678 = vst.msk [vmem:[#allocation2] sm:$0xff] %vm677, 0
        %679 = vst.msk [vmem:[#allocation2 + $0x28] sm:$0xff] %vm677, %v645
        %680 = vst.msk [vmem:[#allocation2 + $0x50] sm:$0xff] %vm677, %v646
        %681 = vst.msk [vmem:[#allocation2 + $0x78] sm:$0xff] %vm677, %v647
        %682 = vst.msk [vmem:[#allocation2 + $0xa0] sm:$0xff] %vm677, %v648
        %683 = vst.msk [vmem:[#allocation2 + $0xc8] sm:$0xff] %vm677, %v649
        %684 = vst.msk [vmem:[#allocation2 + $0xf0] sm:$0xff] %vm677, %v650
        %685 = vst.msk [vmem:[#allocation2 + $0x118] sm:$0xff] %vm677, %v651
        %686 = vst.msk [vmem:[#allocation2 + $0x140] sm:$0xff] %vm677, %v652
        %687 = vst.msk [vmem:[#allocation2 + $0x168] sm:$0xff] %vm677, %v653
        %688 = vst.msk [vmem:[#allocation2 + $0x190] sm:$0xff] %vm677, %v654
        %689 = vst.msk [vmem:[#allocation2 + $0x1b8] sm:$0xff] %vm677, %v655
        %690 = vst.msk [vmem:[#allocation2 + $0x1e0] sm:$0xff] %vm677, %v656
        %691 = vst.msk [vmem:[#allocation2 + $0x208] sm:$0xff] %vm677, %v657
        %692 = vst.msk [vmem:[#allocation2 + $0x230] sm:$0xff] %vm677, %v658
        %693 = vst.msk [vmem:[#allocation2 + $0x258] sm:$0xff] %vm677, %v659
        %vm694 = vsmask.f32 7424
        %v696 = vshrl.u32 0, 16
        %v698 = vshll.u32 0, 16
        %v700 = vrot.slane %v698, 1
        %v701 = vor.u32 %v696, %v700
        %v702 = vsel %vm694, %v701, %v700
        %v704 = vshrl.u32 %v645, 16
        %v706 = vshll.u32 %v645, 16
        %v708 = vrot.slane %v706, 1
        %v709 = vor.u32 %v704, %v708
        %v711 = vshll.u32 %v661, 16
        %v713 = vrot.slane %v711, 1
        %v714 = vsel %vm694, %v709, %v713
        %v716 = vshrl.u32 %v646, 16
        %v718 = vshll.u32 %v646, 16
        %v720 = vrot.slane %v718, 1
        %v721 = vor.u32 %v716, %v720
        %v723 = vshll.u32 %v662, 16
        %v725 = vrot.slane %v723, 1
        %v726 = vsel %vm694, %v721, %v725
        %v728 = vshrl.u32 %v647, 16
        %v730 = vshll.u32 %v647, 16
        %v732 = vrot.slane %v730, 1
        %v733 = vor.u32 %v728, %v732
        %v735 = vshll.u32 %v663, 16
        %v737 = vrot.slane %v735, 1
        %v738 = vsel %vm694, %v733, %v737
        %v740 = vshrl.u32 %v648, 16
        %v742 = vshll.u32 %v648, 16
        %v744 = vrot.slane %v742, 1
        %v745 = vor.u32 %v740, %v744
        %v747 = vshll.u32 %v664, 16
        %v749 = vrot.slane %v747, 1
        %v750 = vsel %vm694, %v745, %v749
        %v752 = vshrl.u32 %v649, 16
        %v754 = vshll.u32 %v649, 16
        %v756 = vrot.slane %v754, 1
        %v757 = vor.u32 %v752, %v756
        %v759 = vshll.u32 %v665, 16
        %v761 = vrot.slane %v759, 1
        %v762 = vsel %vm694, %v757, %v761
        %v764 = vshrl.u32 %v650, 16
        %v766 = vshll.u32 %v650, 16
        %v768 = vrot.slane %v766, 1
        %v769 = vor.u32 %v764, %v768
        %v771 = vshll.u32 %v666, 16
        %v773 = vrot.slane %v771, 1
        %v774 = vsel %vm694, %v769, %v773
        %v776 = vshrl.u32 %v651, 16
        %v778 = vshll.u32 %v651, 16
        %v780 = vrot.slane %v778, 1
        %v781 = vor.u32 %v776, %v780
        %v783 = vshll.u32 %v667, 16
        %v785 = vrot.slane %v783, 1
        %v786 = vsel %vm694, %v781, %v785
        %v788 = vshrl.u32 %v652, 16
        %v790 = vshll.u32 %v652, 16
        %v792 = vrot.slane %v790, 1
        %v793 = vor.u32 %v788, %v792
        %v795 = vshll.u32 %v668, 16
        %v797 = vrot.slane %v795, 1
        %v798 = vsel %vm694, %v793, %v797
        %v800 = vshrl.u32 %v653, 16
        %v802 = vshll.u32 %v653, 16
        %v804 = vrot.slane %v802, 1
        %v805 = vor.u32 %v800, %v804
        %v807 = vshll.u32 %v669, 16
        %v809 = vrot.slane %v807, 1
        %v810 = vsel %vm694, %v805, %v809
        %v812 = vshrl.u32 %v654, 16
        %v814 = vshll.u32 %v654, 16
        %v816 = vrot.slane %v814, 1
        %v817 = vor.u32 %v812, %v816
        %v819 = vshll.u32 %v670, 16
        %v821 = vrot.slane %v819, 1
        %v822 = vsel %vm694, %v817, %v821
        %v824 = vshrl.u32 %v655, 16
        %v826 = vshll.u32 %v655, 16
        %v828 = vrot.slane %v826, 1
        %v829 = vor.u32 %v824, %v828
        %v831 = vshll.u32 %v671, 16
        %v833 = vrot.slane %v831, 1
        %v834 = vsel %vm694, %v829, %v833
        %v836 = vshrl.u32 %v656, 16
        %v838 = vshll.u32 %v656, 16
        %v840 = vrot.slane %v838, 1
        %v841 = vor.u32 %v836, %v840
        %v843 = vshll.u32 %v672, 16
        %v845 = vrot.slane %v843, 1
        %v846 = vsel %vm694, %v841, %v845
        %v848 = vshrl.u32 %v657, 16
        %v850 = vshll.u32 %v657, 16
        %v852 = vrot.slane %v850, 1
        %v853 = vor.u32 %v848, %v852
        %v855 = vshll.u32 %v673, 16
        %v857 = vrot.slane %v855, 1
        %v858 = vsel %vm694, %v853, %v857
        %v860 = vshrl.u32 %v658, 16
        %v862 = vshll.u32 %v658, 16
        %v864 = vrot.slane %v862, 1
        %v865 = vor.u32 %v860, %v864
        %v867 = vshll.u32 %v674, 16
        %v869 = vrot.slane %v867, 1
        %v870 = vsel %vm694, %v865, %v869
        %v872 = vshrl.u32 %v659, 16
        %v874 = vshll.u32 %v659, 16
        %v876 = vrot.slane %v874, 1
        %v877 = vor.u32 %v872, %v876
        %v879 = vshll.u32 %v675, 16
        %v881 = vrot.slane %v879, 1
        %v882 = vsel %vm694, %v877, %v881
        %883 = vrot.lane.b32.xlu0 %v702, 64
        %v884 = vpop.permute.xlu0 %883
        %885 = vrot.lane.b32.xlu0 %v714, 64
        %v886 = vpop.permute.xlu0 %885
        %887 = vrot.lane.b32.xlu0 %v726, 64
        %v888 = vpop.permute.xlu0 %887
        %889 = vrot.lane.b32.xlu0 %v738, 64
        %v890 = vpop.permute.xlu0 %889
        %891 = vrot.lane.b32.xlu0 %v750, 64
        %v892 = vpop.permute.xlu0 %891
        %893 = vrot.lane.b32.xlu0 %v762, 64
        %v894 = vpop.permute.xlu0 %893
        %895 = vrot.lane.b32.xlu0 %v774, 64
        %v896 = vpop.permute.xlu0 %895
        %897 = vrot.lane.b32.xlu0 %v786, 64
        %v898 = vpop.permute.xlu0 %897
        %899 = vrot.lane.b32.xlu0 %v798, 64
        %v900 = vpop.permute.xlu0 %899
        %901 = vrot.lane.b32.xlu0 %v810, 64
        %v902 = vpop.permute.xlu0 %901
        %903 = vrot.lane.b32.xlu0 %v822, 64
        %v904 = vpop.permute.xlu0 %903
        %905 = vrot.lane.b32.xlu0 %v834, 64
        %v906 = vpop.permute.xlu0 %905
        %907 = vrot.lane.b32.xlu0 %v846, 64
        %v908 = vpop.permute.xlu0 %907
        %909 = vrot.lane.b32.xlu0 %v858, 64
        %v910 = vpop.permute.xlu0 %909
        %911 = vrot.lane.b32.xlu0 %v870, 64
        %v912 = vpop.permute.xlu0 %911
        %913 = vrot.lane.b32.xlu0 %v882, 64
        %v914 = vpop.permute.xlu0 %913
        %vm931 = vcmask 1048064
        %932 = vst.msk [vmem:[#allocation2] sm:$0xff] %vm931, %v884
        %933 = vst.msk [vmem:[#allocation2 + $0x28] sm:$0xff] %vm931, %v886
        %934 = vst.msk [vmem:[#allocation2 + $0x50] sm:$0xff] %vm931, %v888
        %935 = vst.msk [vmem:[#allocation2 + $0x78] sm:$0xff] %vm931, %v890
        %936 = vst.msk [vmem:[#allocation2 + $0xa0] sm:$0xff] %vm931, %v892
        %937 = vst.msk [vmem:[#allocation2 + $0xc8] sm:$0xff] %vm931, %v894
        %938 = vst.msk [vmem:[#allocation2 + $0xf0] sm:$0xff] %vm931, %v896
        %939 = vst.msk [vmem:[#allocation2 + $0x118] sm:$0xff] %vm931, %v898
        %940 = vst.msk [vmem:[#allocation2 + $0x140] sm:$0xff] %vm931, %v900
        %941 = vst.msk [vmem:[#allocation2 + $0x168] sm:$0xff] %vm931, %v902
        %942 = vst.msk [vmem:[#allocation2 + $0x190] sm:$0xff] %vm931, %v904
        %943 = vst.msk [vmem:[#allocation2 + $0x1b8] sm:$0xff] %vm931, %v906
        %944 = vst.msk [vmem:[#allocation2 + $0x1e0] sm:$0xff] %vm931, %v908
        %945 = vst.msk [vmem:[#allocation2 + $0x208] sm:$0xff] %vm931, %v910
        %946 = vst.msk [vmem:[#allocation2 + $0x230] sm:$0xff] %vm931, %v912
        %947 = vst.msk [vmem:[#allocation2 + $0x258] sm:$0xff] %vm931, %v914
        %vm979 = vcmask 1046528
        %v980 = vrot.slane 0, 1
        %v981 = vsel %vm979, %v980, %v980
        %v982 = vrot.slane %v645, 1
        %v983 = vrot.slane %v661, 1
        %v984 = vsel %vm979, %v982, %v983
        %v985 = vrot.slane %v646, 1
        %v986 = vrot.slane %v662, 1
        %v987 = vsel %vm979, %v985, %v986
        %v988 = vrot.slane %v647, 1
        %v989 = vrot.slane %v663, 1
        %v990 = vsel %vm979, %v988, %v989
        %v991 = vrot.slane %v648, 1
        %v992 = vrot.slane %v664, 1
        %v993 = vsel %vm979, %v991, %v992
        %v994 = vrot.slane %v649, 1
        %v995 = vrot.slane %v665, 1
        %v996 = vsel %vm979, %v994, %v995
        %v997 = vrot.slane %v650, 1
        %v998 = vrot.slane %v666, 1
        %v999 = vsel %vm979, %v997, %v998
        %v1000 = vrot.slane %v651, 1
        %v1001 = vrot.slane %v667, 1
        %v1002 = vsel %vm979, %v1000, %v1001
        %v1003 = vrot.slane %v652, 1
        %v1004 = vrot.slane %v668, 1
        %v1005 = vsel %vm979, %v1003, %v1004
        %v1006 = vrot.slane %v653, 1
        %v1007 = vrot.slane %v669, 1
        %v1008 = vsel %vm979, %v1006, %v1007
        %v1009 = vrot.slane %v654, 1
        %v1010 = vrot.slane %v670, 1
        %v1011 = vsel %vm979, %v1009, %v1010
        %v1012 = vrot.slane %v655, 1
        %v1013 = vrot.slane %v671, 1
        %v1014 = vsel %vm979, %v1012, %v1013
        %v1015 = vrot.slane %v656, 1
        %v1016 = vrot.slane %v672, 1
        %v1017 = vsel %vm979, %v1015, %v1016
        %v1018 = vrot.slane %v657, 1
        %v1019 = vrot.slane %v673, 1
        %v1020 = vsel %vm979, %v1018, %v1019
        %v1021 = vrot.slane %v658, 1
        %v1022 = vrot.slane %v674, 1
        %v1023 = vsel %vm979, %v1021, %v1022
        %v1024 = vrot.slane %v659, 1
        %v1025 = vrot.slane %v675, 1
        %v1026 = vsel %vm979, %v1024, %v1025
        %1043 = vst.msk [vmem:[#allocation2 + $0x8] sm:$0xff] %vm677, %v981
        %1044 = vst.msk [vmem:[#allocation2 + $0x30] sm:$0xff] %vm677, %v984
        %1045 = vst.msk [vmem:[#allocation2 + $0x58] sm:$0xff] %vm677, %v987
        %1046 = vst.msk [vmem:[#allocation2 + $0x80] sm:$0xff] %vm677, %v990
        %1047 = vst.msk [vmem:[#allocation2 + $0xa8] sm:$0xff] %vm677, %v993
        %1048 = vst.msk [vmem:[#allocation2 + $0xd0] sm:$0xff] %vm677, %v996
        %1049 = vst.msk [vmem:[#allocation2 + $0xf8] sm:$0xff] %vm677, %v999
        %1050 = vst.msk [vmem:[#allocation2 + $0x120] sm:$0xff] %vm677, %v1002
        %1051 = vst.msk [vmem:[#allocation2 + $0x148] sm:$0xff] %vm677, %v1005
        %1052 = vst.msk [vmem:[#allocation2 + $0x170] sm:$0xff] %vm677, %v1008
        %1053 = vst.msk [vmem:[#allocation2 + $0x198] sm:$0xff] %vm677, %v1011
        %1054 = vst.msk [vmem:[#allocation2 + $0x1c0] sm:$0xff] %vm677, %v1014
        %1055 = vst.msk [vmem:[#allocation2 + $0x1e8] sm:$0xff] %vm677, %v1017
        %1056 = vst.msk [vmem:[#allocation2 + $0x210] sm:$0xff] %vm677, %v1020
        %1057 = vst.msk [vmem:[#allocation2 + $0x238] sm:$0xff] %vm677, %v1023
        %1058 = vst.msk [vmem:[#allocation2 + $0x260] sm:$0xff] %vm677, %v1026
        %1060 = vrot.lane.b32.xlu0 %v645, 64
        %v1061 = vpop.permute.xlu0 %1060
        %1062 = vrot.lane.b32.xlu0 %v646, 64
        %v1063 = vpop.permute.xlu0 %1062
        %1064 = vrot.lane.b32.xlu0 %v647, 64
        %v1065 = vpop.permute.xlu0 %1064
        %1066 = vrot.lane.b32.xlu0 %v648, 64
        %v1067 = vpop.permute.xlu0 %1066
        %1068 = vrot.lane.b32.xlu0 %v649, 64
        %v1069 = vpop.permute.xlu0 %1068
        %1070 = vrot.lane.b32.xlu0 %v650, 64
        %v1071 = vpop.permute.xlu0 %1070
        %1072 = vrot.lane.b32.xlu0 %v651, 64
        %v1073 = vpop.permute.xlu0 %1072
        %1074 = vrot.lane.b32.xlu0 %v652, 64
        %v1075 = vpop.permute.xlu0 %1074
        %1076 = vrot.lane.b32.xlu0 %v653, 64
        %v1077 = vpop.permute.xlu0 %1076
        %1078 = vrot.lane.b32.xlu0 %v654, 64
        %v1079 = vpop.permute.xlu0 %1078
        %1080 = vrot.lane.b32.xlu0 %v655, 64
        %v1081 = vpop.permute.xlu0 %1080
        %1082 = vrot.lane.b32.xlu0 %v656, 64
        %v1083 = vpop.permute.xlu0 %1082
        %1084 = vrot.lane.b32.xlu0 %v657, 64
        %v1085 = vpop.permute.xlu0 %1084
        %1086 = vrot.lane.b32.xlu0 %v658, 64
        %v1087 = vpop.permute.xlu0 %1086
        %1088 = vrot.lane.b32.xlu0 %v659, 64
        %v1089 = vpop.permute.xlu0 %1088
        %1090 = vrot.lane.b32.xlu0 %v660, 64
        %v1091 = vpop.permute.xlu0 %1090
        %1108 = vst.msk [vmem:[#allocation2 + $0x8] sm:$0xff] %vm931, %v1061
        %1109 = vst.msk [vmem:[#allocation2 + $0x30] sm:$0xff] %vm931, %v1063
        %1110 = vst.msk [vmem:[#allocation2 + $0x58] sm:$0xff] %vm931, %v1065
        %1111 = vst.msk [vmem:[#allocation2 + $0x80] sm:$0xff] %vm931, %v1067
        %1112 = vst.msk [vmem:[#allocation2 + $0xa8] sm:$0xff] %vm931, %v1069
        %1113 = vst.msk [vmem:[#allocation2 + $0xd0] sm:$0xff] %vm931, %v1071
        %1114 = vst.msk [vmem:[#allocation2 + $0xf8] sm:$0xff] %vm931, %v1073
        %1115 = vst.msk [vmem:[#allocation2 + $0x120] sm:$0xff] %vm931, %v1075
        %1116 = vst.msk [vmem:[#allocation2 + $0x148] sm:$0xff] %vm931, %v1077
        %1117 = vst.msk [vmem:[#allocation2 + $0x170] sm:$0xff] %vm931, %v1079
        %1118 = vst.msk [vmem:[#allocation2 + $0x198] sm:$0xff] %vm931, %v1081
        %1119 = vst.msk [vmem:[#allocation2 + $0x1c0] sm:$0xff] %vm931, %v1083
        %1120 = vst.msk [vmem:[#allocation2 + $0x1e8] sm:$0xff] %vm931, %v1085
        %1121 = vst.msk [vmem:[#allocation2 + $0x210] sm:$0xff] %vm931, %v1087
        %1122 = vst.msk [vmem:[#allocation2 + $0x238] sm:$0xff] %vm931, %v1089
        %1123 = vst.msk [vmem:[#allocation2 + $0x260] sm:$0xff] %vm931, %v1091
        %v1125 = vshrl.u32 %v660, 16
        %v1127 = vshll.u32 %v660, 16
        %v1129 = vrot.slane %v1127, 1
        %v1130 = vor.u32 %v1125, %v1129
        %v1132 = vshll.u32 %v676, 16
        %v1134 = vrot.slane %v1132, 1
        %v1135 = vsel %vm694, %v1130, %v1134
        %1152 = vst.msk [vmem:[#allocation2 + $0x10] sm:$0xff] %vm677, %v714
        %1153 = vst.msk [vmem:[#allocation2 + $0x38] sm:$0xff] %vm677, %v726
        %1154 = vst.msk [vmem:[#allocation2 + $0x60] sm:$0xff] %vm677, %v738
        %1155 = vst.msk [vmem:[#allocation2 + $0x88] sm:$0xff] %vm677, %v750
        %1156 = vst.msk [vmem:[#allocation2 + $0xb0] sm:$0xff] %vm677, %v762
        %1157 = vst.msk [vmem:[#allocation2 + $0xd8] sm:$0xff] %vm677, %v774
        %1158 = vst.msk [vmem:[#allocation2 + $0x100] sm:$0xff] %vm677, %v786
        %1159 = vst.msk [vmem:[#allocation2 + $0x128] sm:$0xff] %vm677, %v798
        %1160 = vst.msk [vmem:[#allocation2 + $0x150] sm:$0xff] %vm677, %v810
        %1161 = vst.msk [vmem:[#allocation2 + $0x178] sm:$0xff] %vm677, %v822
        %1162 = vst.msk [vmem:[#allocation2 + $0x1a0] sm:$0xff] %vm677, %v834
        %1163 = vst.msk [vmem:[#allocation2 + $0x1c8] sm:$0xff] %vm677, %v846
        %1164 = vst.msk [vmem:[#allocation2 + $0x1f0] sm:$0xff] %vm677, %v858
        %1165 = vst.msk [vmem:[#allocation2 + $0x218] sm:$0xff] %vm677, %v870
        %1166 = vst.msk [vmem:[#allocation2 + $0x240] sm:$0xff] %vm677, %v882
        %1167 = vst.msk [vmem:[#allocation2 + $0x268] sm:$0xff] %vm677, %v1135
        %v1169 = vrot.slane %v660, 1
        %v1170 = vrot.slane %v676, 1
        %v1171 = vsel %vm979, %v1169, %v1170
        %1172 = vrot.lane.b32.xlu0 %v984, 64
        %v1173 = vpop.permute.xlu0 %1172
        %1174 = vrot.lane.b32.xlu0 %v987, 64
        %v1175 = vpop.permute.xlu0 %1174
        %1176 = vrot.lane.b32.xlu0 %v990, 64
        %v1177 = vpop.permute.xlu0 %1176
        %1178 = vrot.lane.b32.xlu0 %v993, 64
        %v1179 = vpop.permute.xlu0 %1178
        %1180 = vrot.lane.b32.xlu0 %v996, 64
        %v1181 = vpop.permute.xlu0 %1180
        %1182 = vrot.lane.b32.xlu0 %v999, 64
        %v1183 = vpop.permute.xlu0 %1182
        %1184 = vrot.lane.b32.xlu0 %v1002, 64
        %v1185 = vpop.permute.xlu0 %1184
        %1186 = vrot.lane.b32.xlu0 %v1005, 64
        %v1187 = vpop.permute.xlu0 %1186
        %1188 = vrot.lane.b32.xlu0 %v1008, 64
        %v1189 = vpop.permute.xlu0 %1188
        %1190 = vrot.lane.b32.xlu0 %v1011, 64
        %v1191 = vpop.permute.xlu0 %1190
        %1192 = vrot.lane.b32.xlu0 %v1014, 64
        %v1193 = vpop.permute.xlu0 %1192
        %1194 = vrot.lane.b32.xlu0 %v1017, 64
        %v1195 = vpop.permute.xlu0 %1194
        %1196 = vrot.lane.b32.xlu0 %v1020, 64
        %v1197 = vpop.permute.xlu0 %1196
        %1198 = vrot.lane.b32.xlu0 %v1023, 64
        %v1199 = vpop.permute.xlu0 %1198
        %1200 = vrot.lane.b32.xlu0 %v1026, 64
        %v1201 = vpop.permute.xlu0 %1200
        %1202 = vrot.lane.b32.xlu0 %v1171, 64
        %v1203 = vpop.permute.xlu0 %1202
        %1220 = vst.msk [vmem:[#allocation2 + $0x10] sm:$0xff] %vm931, %v1173
        %1221 = vst.msk [vmem:[#allocation2 + $0x38] sm:$0xff] %vm931, %v1175
        %1222 = vst.msk [vmem:[#allocation2 + $0x60] sm:$0xff] %vm931, %v1177
        %1223 = vst.msk [vmem:[#allocation2 + $0x88] sm:$0xff] %vm931, %v1179
        %1224 = vst.msk [vmem:[#allocation2 + $0xb0] sm:$0xff] %vm931, %v1181
        %1225 = vst.msk [vmem:[#allocation2 + $0xd8] sm:$0xff] %vm931, %v1183
        %1226 = vst.msk [vmem:[#allocation2 + $0x100] sm:$0xff] %vm931, %v1185
        %1227 = vst.msk [vmem:[#allocation2 + $0x128] sm:$0xff] %vm931, %v1187
        %1228 = vst.msk [vmem:[#allocation2 + $0x150] sm:$0xff] %vm931, %v1189
        %1229 = vst.msk [vmem:[#allocation2 + $0x178] sm:$0xff] %vm931, %v1191
        %1230 = vst.msk [vmem:[#allocation2 + $0x1a0] sm:$0xff] %vm931, %v1193
        %1231 = vst.msk [vmem:[#allocation2 + $0x1c8] sm:$0xff] %vm931, %v1195
        %1232 = vst.msk [vmem:[#allocation2 + $0x1f0] sm:$0xff] %vm931, %v1197
        %1233 = vst.msk [vmem:[#allocation2 + $0x218] sm:$0xff] %vm931, %v1199
        %1234 = vst.msk [vmem:[#allocation2 + $0x240] sm:$0xff] %vm931, %v1201
        %1235 = vst.msk [vmem:[#allocation2 + $0x268] sm:$0xff] %vm931, %v1203
        %1236 = vst.msk [vmem:[#allocation2 + $0x18] sm:$0xff] %vm677, %v646
        %1237 = vst.msk [vmem:[#allocation2 + $0x40] sm:$0xff] %vm677, %v647
        %1238 = vst.msk [vmem:[#allocation2 + $0x68] sm:$0xff] %vm677, %v648
        %1239 = vst.msk [vmem:[#allocation2 + $0x90] sm:$0xff] %vm677, %v649
        %1240 = vst.msk [vmem:[#allocation2 + $0xb8] sm:$0xff] %vm677, %v650
        %1241 = vst.msk [vmem:[#allocation2 + $0xe0] sm:$0xff] %vm677, %v651
        %1242 = vst.msk [vmem:[#allocation2 + $0x108] sm:$0xff] %vm677, %v652
        %1243 = vst.msk [vmem:[#allocation2 + $0x130] sm:$0xff] %vm677, %v653
        %1244 = vst.msk [vmem:[#allocation2 + $0x158] sm:$0xff] %vm677, %v654
        %1245 = vst.msk [vmem:[#allocation2 + $0x180] sm:$0xff] %vm677, %v655
        %1246 = vst.msk [vmem:[#allocation2 + $0x1a8] sm:$0xff] %vm677, %v656
        %1247 = vst.msk [vmem:[#allocation2 + $0x1d0] sm:$0xff] %vm677, %v657
        %1248 = vst.msk [vmem:[#allocation2 + $0x1f8] sm:$0xff] %vm677, %v658
        %1249 = vst.msk [vmem:[#allocation2 + $0x220] sm:$0xff] %vm677, %v659
        %1250 = vst.msk [vmem:[#allocation2 + $0x248] sm:$0xff] %vm677, %v660
        %1251 = vst.msk [vmem:[#allocation2 + $0x270] sm:$0xff] %vm677, 0
        %1252 = vrot.lane.b32.xlu0 %v1135, 64
        %v1253 = vpop.permute.xlu0 %1252
        %1255 = vst.msk [vmem:[#allocation2 + $0x18] sm:$0xff] %vm931, %v888
        %1256 = vst.msk [vmem:[#allocation2 + $0x40] sm:$0xff] %vm931, %v890
        %1257 = vst.msk [vmem:[#allocation2 + $0x68] sm:$0xff] %vm931, %v892
        %1258 = vst.msk [vmem:[#allocation2 + $0x90] sm:$0xff] %vm931, %v894
        %1259 = vst.msk [vmem:[#allocation2 + $0xb8] sm:$0xff] %vm931, %v896
        %1260 = vst.msk [vmem:[#allocation2 + $0xe0] sm:$0xff] %vm931, %v898
        %1261 = vst.msk [vmem:[#allocation2 + $0x108] sm:$0xff] %vm931, %v900
        %1262 = vst.msk [vmem:[#allocation2 + $0x130] sm:$0xff] %vm931, %v902
        %1263 = vst.msk [vmem:[#allocation2 + $0x158] sm:$0xff] %vm931, %v904
        %1264 = vst.msk [vmem:[#allocation2 + $0x180] sm:$0xff] %vm931, %v906
        %1265 = vst.msk [vmem:[#allocation2 + $0x1a8] sm:$0xff] %vm931, %v908
        %1266 = vst.msk [vmem:[#allocation2 + $0x1d0] sm:$0xff] %vm931, %v910
        %1267 = vst.msk [vmem:[#allocation2 + $0x1f8] sm:$0xff] %vm931, %v912
        %1268 = vst.msk [vmem:[#allocation2 + $0x220] sm:$0xff] %vm931, %v914
        %1269 = vst.msk [vmem:[#allocation2 + $0x248] sm:$0xff] %vm931, %v1253
        %1270 = vst.msk [vmem:[#allocation2 + $0x270] sm:$0xff] %vm931, %v884
        %1272 = vst.msk [vmem:[#allocation2 + $0x20] sm:$0xff] %vm677, %v987
        %1273 = vst.msk [vmem:[#allocation2 + $0x48] sm:$0xff] %vm677, %v990
        %1274 = vst.msk [vmem:[#allocation2 + $0x70] sm:$0xff] %vm677, %v993
        %1275 = vst.msk [vmem:[#allocation2 + $0x98] sm:$0xff] %vm677, %v996
        %1276 = vst.msk [vmem:[#allocation2 + $0xc0] sm:$0xff] %vm677, %v999
        %1277 = vst.msk [vmem:[#allocation2 + $0xe8] sm:$0xff] %vm677, %v1002
        %1278 = vst.msk [vmem:[#allocation2 + $0x110] sm:$0xff] %vm677, %v1005
        %1279 = vst.msk [vmem:[#allocation2 + $0x138] sm:$0xff] %vm677, %v1008
        %1280 = vst.msk [vmem:[#allocation2 + $0x160] sm:$0xff] %vm677, %v1011
        %1281 = vst.msk [vmem:[#allocation2 + $0x188] sm:$0xff] %vm677, %v1014
        %1282 = vst.msk [vmem:[#allocation2 + $0x1b0] sm:$0xff] %vm677, %v1017
        %1283 = vst.msk [vmem:[#allocation2 + $0x1d8] sm:$0xff] %vm677, %v1020
        %1284 = vst.msk [vmem:[#allocation2 + $0x200] sm:$0xff] %vm677, %v1023
        %1285 = vst.msk [vmem:[#allocation2 + $0x228] sm:$0xff] %vm677, %v1026
        %1286 = vst.msk [vmem:[#allocation2 + $0x250] sm:$0xff] %vm677, %v1171
        %1287 = vst.msk [vmem:[#allocation2 + $0x278] sm:$0xff] %vm677, %v981
        %v1288 = vld [vmem:[#allocation2] sm:$0xff]
        %v1289 = vld [vmem:[#allocation2 + $0x8] sm:$0xff]
        %v1290 = vld [vmem:[#allocation2 + $0x10] sm:$0xff]
        %v1291 = vld [vmem:[#allocation2 + $0x18] sm:$0xff]
        %v1292 = vld [vmem:[#allocation2 + $0x20] sm:$0xff]
        %v1293 = vld [vmem:[#allocation2 + $0x28] sm:$0xff]
        %v1294 = vld [vmem:[#allocation2 + $0x30] sm:$0xff]
        %v1295 = vld [vmem:[#allocation2 + $0x38] sm:$0xff]
        %v1296 = vld [vmem:[#allocation2 + $0x40] sm:$0xff]
        %v1297 = vld [vmem:[#allocation2 + $0x48] sm:$0xff]
        %v1298 = vld [vmem:[#allocation2 + $0x50] sm:$0xff]
        %v1299 = vld [vmem:[#allocation2 + $0x58] sm:$0xff]
        %v1300 = vld [vmem:[#allocation2 + $0x60] sm:$0xff]
        %v1301 = vld [vmem:[#allocation2 + $0x68] sm:$0xff]
        %v1302 = vld [vmem:[#allocation2 + $0x70] sm:$0xff]
        %v1303 = vld [vmem:[#allocation2 + $0x78] sm:$0xff]
        %v1304 = vld [vmem:[#allocation2 + $0x80] sm:$0xff]
        %v1305 = vld [vmem:[#allocation2 + $0x88] sm:$0xff]
        %v1306 = vld [vmem:[#allocation2 + $0x90] sm:$0xff]
        %v1307 = vld [vmem:[#allocation2 + $0x98] sm:$0xff]
        %v1308 = vld [vmem:[#allocation2 + $0xa0] sm:$0xff]
        %v1309 = vld [vmem:[#allocation2 + $0xa8] sm:$0xff]
        %v1310 = vld [vmem:[#allocation2 + $0xb0] sm:$0xff]
        %v1311 = vld [vmem:[#allocation2 + $0xb8] sm:$0xff]
        %v1312 = vld [vmem:[#allocation2 + $0xc0] sm:$0xff]
        %v1313 = vld [vmem:[#allocation2 + $0xc8] sm:$0xff]
        %v1314 = vld [vmem:[#allocation2 + $0xd0] sm:$0xff]
        %v1315 = vld [vmem:[#allocation2 + $0xd8] sm:$0xff]
        %v1316 = vld [vmem:[#allocation2 + $0xe0] sm:$0xff]
        %v1317 = vld [vmem:[#allocation2 + $0xe8] sm:$0xff]
        %v1318 = vld [vmem:[#allocation2 + $0xf0] sm:$0xff]
        %v1319 = vld [vmem:[#allocation2 + $0xf8] sm:$0xff]
        %v1320 = vld [vmem:[#allocation2 + $0x100] sm:$0xff]
        %v1321 = vld [vmem:[#allocation2 + $0x108] sm:$0xff]
        %v1322 = vld [vmem:[#allocation2 + $0x110] sm:$0xff]
        %v1323 = vld [vmem:[#allocation2 + $0x118] sm:$0xff]
        %v1324 = vld [vmem:[#allocation2 + $0x120] sm:$0xff]
        %v1325 = vld [vmem:[#allocation2 + $0x128] sm:$0xff]
        %v1326 = vld [vmem:[#allocation2 + $0x130] sm:$0xff]
        %v1327 = vld [vmem:[#allocation2 + $0x138] sm:$0xff]
        %v1328 = vld [vmem:[#allocation2 + $0x140] sm:$0xff]
        %v1329 = vld [vmem:[#allocation2 + $0x148] sm:$0xff]
        %v1330 = vld [vmem:[#allocation2 + $0x150] sm:$0xff]
        %v1331 = vld [vmem:[#allocation2 + $0x158] sm:$0xff]
        %v1332 = vld [vmem:[#allocation2 + $0x160] sm:$0xff]
        %v1333 = vld [vmem:[#allocation2 + $0x168] sm:$0xff]
        %v1334 = vld [vmem:[#allocation2 + $0x170] sm:$0xff]
        %v1335 = vld [vmem:[#allocation2 + $0x178] sm:$0xff]
        %v1336 = vld [vmem:[#allocation2 + $0x180] sm:$0xff]
        %v1337 = vld [vmem:[#allocation2 + $0x188] sm:$0xff]
        %v1338 = vld [vmem:[#allocation2 + $0x190] sm:$0xff]
        %v1339 = vld [vmem:[#allocation2 + $0x198] sm:$0xff]
        %v1340 = vld [vmem:[#allocation2 + $0x1a0] sm:$0xff]
        %v1341 = vld [vmem:[#allocation2 + $0x1a8] sm:$0xff]
        %v1342 = vld [vmem:[#allocation2 + $0x1b0] sm:$0xff]
        %v1343 = vld [vmem:[#allocation2 + $0x1b8] sm:$0xff]
        %v1344 = vld [vmem:[#allocation2 + $0x1c0] sm:$0xff]
        %v1345 = vld [vmem:[#allocation2 + $0x1c8] sm:$0xff]
        %v1346 = vld [vmem:[#allocation2 + $0x1d0] sm:$0xff]
        %v1347 = vld [vmem:[#allocation2 + $0x1d8] sm:$0xff]
        %v1348 = vld [vmem:[#allocation2 + $0x1e0] sm:$0xff]
        %v1349 = vld [vmem:[#allocation2 + $0x1e8] sm:$0xff]
        %v1350 = vld [vmem:[#allocation2 + $0x1f0] sm:$0xff]
        %v1351 = vld [vmem:[#allocation2 + $0x1f8] sm:$0xff]
        %v1352 = vld [vmem:[#allocation2 + $0x200] sm:$0xff]
        %v1353 = vld [vmem:[#allocation2 + $0x208] sm:$0xff]
        %v1354 = vld [vmem:[#allocation2 + $0x210] sm:$0xff]
        %v1355 = vld [vmem:[#allocation2 + $0x218] sm:$0xff]
        %v1356 = vld [vmem:[#allocation2 + $0x220] sm:$0xff]
        %v1357 = vld [vmem:[#allocation2 + $0x228] sm:$0xff]
        %v1358 = vld [vmem:[#allocation2 + $0x230] sm:$0xff]
        %v1359 = vld [vmem:[#allocation2 + $0x238] sm:$0xff]
        %v1360 = vld [vmem:[#allocation2 + $0x240] sm:$0xff]
        %v1361 = vld [vmem:[#allocation2 + $0x248] sm:$0xff]
        %v1362 = vld [vmem:[#allocation2 + $0x250] sm:$0xff]
        %v1363 = vld [vmem:[#allocation2 + $0x258] sm:$0xff]
        %v1364 = vld [vmem:[#allocation2 + $0x260] sm:$0xff]
        %v1365 = vld [vmem:[#allocation2 + $0x268] sm:$0xff]
        %v1366 = vld [vmem:[#allocation2 + $0x270] sm:$0xff]
        %v1367 = vld [vmem:[#allocation2 + $0x278] sm:$0xff]
        %v1368 = vld [vmem:[%s1] sm:$0xf]
        %v1369 = vld [vmem:[%s1 + $0x4] sm:$0xf]
        %v1370 = vld [vmem:[%s1 + $0x8] sm:$0xf]
        %v1371 = vld [vmem:[%s1 + $0xc] sm:$0xf]
        %v1372 = vld [vmem:[%s1 + $0x10] sm:$0xf]
        %v1373 = vld [vmem:[%s1 + $0x14] sm:$0xf]
        %v1374 = vld [vmem:[%s1 + $0x18] sm:$0xf]
        %v1375 = vld [vmem:[%s1 + $0x1c] sm:$0xf]
        %v1376 = vld [vmem:[%s1 + $0x20] sm:$0xf]
        %v1377 = vld [vmem:[%s1 + $0x24] sm:$0xf]
        %v1378 = vld [vmem:[%s1 + $0x28] sm:$0xf]
        %v1379 = vld [vmem:[%s1 + $0x2c] sm:$0xf]
        %v1380 = vld [vmem:[%s1 + $0x30] sm:$0xf]
        %v1381 = vld [vmem:[%s1 + $0x34] sm:$0xf]
        %v1382 = vld [vmem:[%s1 + $0x38] sm:$0xf]
        %v1383 = vld [vmem:[%s1 + $0x3c] sm:$0xf]
        %v1384 = vld [vmem:[%s1 + $0x40] sm:$0xf]
        %v1385 = vld [vmem:[%s1 + $0x44] sm:$0xf]
        %v1386 = vld [vmem:[%s1 + $0x48] sm:$0xf]
        %v1387 = vld [vmem:[%s1 + $0x4c] sm:$0xf]
        %v1388 = vld [vmem:[%s1 + $0x50] sm:$0xf]
        %v1389 = vld [vmem:[%s1 + $0x54] sm:$0xf]
        %v1390 = vld [vmem:[%s1 + $0x58] sm:$0xf]
        %v1391 = vld [vmem:[%s1 + $0x5c] sm:$0xf]
        %v1392 = vld [vmem:[%s1 + $0x60] sm:$0xf]
        %v1393 = vld [vmem:[%s1 + $0x64] sm:$0xf]
        %v1394 = vld [vmem:[%s1 + $0x68] sm:$0xf]
        %v1395 = vld [vmem:[%s1 + $0x6c] sm:$0xf]
        %v1396 = vld [vmem:[%s1 + $0x70] sm:$0xf]
        %v1397 = vld [vmem:[%s1 + $0x74] sm:$0xf]
        %v1398 = vld [vmem:[%s1 + $0x78] sm:$0xf]
        %v1399 = vld [vmem:[%s1 + $0x7c] sm:$0xf]
        %v1400 = vld [vmem:[%s1 + $0x80] sm:$0xf]
        %v1401 = vld [vmem:[%s1 + $0x84] sm:$0xf]
        %v1402 = vld [vmem:[%s1 + $0x88] sm:$0xf]
        %v1403 = vld [vmem:[%s1 + $0x8c] sm:$0xf]
        %v1404 = vld [vmem:[%s1 + $0x90] sm:$0xf]
        %v1405 = vld [vmem:[%s1 + $0x94] sm:$0xf]
        %v1406 = vld [vmem:[%s1 + $0x98] sm:$0xf]
        %v1407 = vld [vmem:[%s1 + $0x9c] sm:$0xf]
        %v1408 = vld [vmem:[%s1 + $0xa0] sm:$0xf]
        %v1409 = vld [vmem:[%s1 + $0xa4] sm:$0xf]
        %v1410 = vld [vmem:[%s1 + $0xa8] sm:$0xf]
        %v1411 = vld [vmem:[%s1 + $0xac] sm:$0xf]
        %v1412 = vld [vmem:[%s1 + $0xb0] sm:$0xf]
        %v1413 = vld [vmem:[%s1 + $0xb4] sm:$0xf]
        %v1414 = vld [vmem:[%s1 + $0xb8] sm:$0xf]
        %v1415 = vld [vmem:[%s1 + $0xbc] sm:$0xf]
        %v1416 = vld [vmem:[%s1 + $0xc0] sm:$0xf]
        %v1417 = vld [vmem:[%s1 + $0xc4] sm:$0xf]
        %v1418 = vld [vmem:[%s1 + $0xc8] sm:$0xf]
        %v1419 = vld [vmem:[%s1 + $0xcc] sm:$0xf]
        %v1420 = vld [vmem:[%s1 + $0xd0] sm:$0xf]
        %v1421 = vld [vmem:[%s1 + $0xd4] sm:$0xf]
        %v1422 = vld [vmem:[%s1 + $0xd8] sm:$0xf]
        %v1423 = vld [vmem:[%s1 + $0xdc] sm:$0xf]
        %v1424 = vld [vmem:[%s1 + $0xe0] sm:$0xf]
        %v1425 = vld [vmem:[%s1 + $0xe4] sm:$0xf]
        %v1426 = vld [vmem:[%s1 + $0xe8] sm:$0xf]
        %v1427 = vld [vmem:[%s1 + $0xec] sm:$0xf]
        %v1428 = vld [vmem:[%s1 + $0xf0] sm:$0xf]
        %v1429 = vld [vmem:[%s1 + $0xf4] sm:$0xf]
        %v1430 = vld [vmem:[%s1 + $0xf8] sm:$0xf]
        %v1431 = vld [vmem:[%s1 + $0xfc] sm:$0xf]
        %v1432 = vld [vmem:[%s1 + $0x100] sm:$0xf]
        %v1433 = vld [vmem:[%s1 + $0x104] sm:$0xf]
        %v1434 = vld [vmem:[%s1 + $0x108] sm:$0xf]
        %v1435 = vld [vmem:[%s1 + $0x10c] sm:$0xf]
        %v1436 = vld [vmem:[%s1 + $0x110] sm:$0xf]
        %v1437 = vld [vmem:[%s1 + $0x114] sm:$0xf]
        %v1438 = vld [vmem:[%s1 + $0x118] sm:$0xf]
        %v1439 = vld [vmem:[%s1 + $0x11c] sm:$0xf]
        %v1512 = vunpack.c.l.b16 %v1368
        %v1513 = vunpack.c.l.b16 %v1369
        %v1514 = vunpack.c.l.b16 %v1370
        %v1515 = vunpack.c.l.b16 %v1371
        %v1516 = vunpack.c.l.b16 %v1372
        %v1517 = vunpack.c.l.b16 %v1373
        %v1518 = vunpack.c.l.b16 %v1374
        %v1519 = vunpack.c.l.b16 %v1375
        %v1520 = vunpack.c.l.b16 %v1376
        %v1521 = vunpack.c.l.b16 %v1377
        %v1522 = vunpack.c.l.b16 %v1378
        %v1523 = vunpack.c.l.b16 %v1379
        %v1524 = vunpack.c.l.b16 %v1380
        %v1525 = vunpack.c.l.b16 %v1381
        %v1526 = vunpack.c.l.b16 %v1382
        %v1527 = vunpack.c.l.b16 %v1383
        %v1528 = vunpack.c.l.b16 %v1384
        %v1529 = vunpack.c.l.b16 %v1385
        %v1530 = vunpack.c.l.b16 %v1386
        %v1531 = vunpack.c.l.b16 %v1387
        %v1532 = vunpack.c.l.b16 %v1388
        %v1533 = vunpack.c.l.b16 %v1389
        %v1534 = vunpack.c.l.b16 %v1390
        %v1535 = vunpack.c.l.b16 %v1391
        %v1536 = vunpack.c.l.b16 %v1392
        %v1537 = vunpack.c.l.b16 %v1393
        %v1538 = vunpack.c.l.b16 %v1394
        %v1539 = vunpack.c.l.b16 %v1395
        %v1540 = vunpack.c.l.b16 %v1396
        %v1541 = vunpack.c.l.b16 %v1397
        %v1542 = vunpack.c.l.b16 %v1398
        %v1543 = vunpack.c.l.b16 %v1399
        %v1544 = vunpack.c.l.b16 %v1400
        %v1545 = vunpack.c.l.b16 %v1401
        %v1546 = vunpack.c.l.b16 %v1402
        %v1547 = vunpack.c.l.b16 %v1403
        %v1548 = vunpack.c.l.b16 %v1404
        %v1549 = vunpack.c.l.b16 %v1405
        %v1550 = vunpack.c.l.b16 %v1406
        %v1551 = vunpack.c.l.b16 %v1407
        %v1552 = vunpack.c.l.b16 %v1408
        %v1553 = vunpack.c.l.b16 %v1409
        %v1554 = vunpack.c.l.b16 %v1410
        %v1555 = vunpack.c.l.b16 %v1411
        %v1556 = vunpack.c.l.b16 %v1412
        %v1557 = vunpack.c.l.b16 %v1413
        %v1558 = vunpack.c.l.b16 %v1414
        %v1559 = vunpack.c.l.b16 %v1415
        %v1560 = vunpack.c.l.b16 %v1416
        %v1561 = vunpack.c.l.b16 %v1417
        %v1562 = vunpack.c.l.b16 %v1418
        %v1563 = vunpack.c.l.b16 %v1419
        %v1564 = vunpack.c.l.b16 %v1420
        %v1565 = vunpack.c.l.b16 %v1421
        %v1566 = vunpack.c.l.b16 %v1422
        %v1567 = vunpack.c.l.b16 %v1423
        %v1568 = vunpack.c.l.b16 %v1424
        %v1569 = vunpack.c.l.b16 %v1425
        %v1570 = vunpack.c.l.b16 %v1426
        %v1571 = vunpack.c.l.b16 %v1427
        %v1572 = vunpack.c.l.b16 %v1428
        %v1573 = vunpack.c.l.b16 %v1429
        %v1574 = vunpack.c.l.b16 %v1430
        %v1575 = vunpack.c.l.b16 %v1431
        %v1576 = vunpack.c.l.b16 %v1432
        %v1577 = vunpack.c.l.b16 %v1433
        %v1578 = vunpack.c.l.b16 %v1434
        %v1579 = vunpack.c.l.b16 %v1435
        %v1580 = vunpack.c.l.b16 %v1436
        %v1581 = vunpack.c.l.b16 %v1437
        %v1582 = vunpack.c.l.b16 %v1438
        %v1583 = vunpack.c.l.b16 %v1439
        %v1584 = vpack.c.b16 %v1513, %v1512
        %v1585 = vpack.c.b16 %v1515, %v1514
        %v1586 = vpack.c.b16 %v1517, %v1516
        %v1587 = vpack.c.b16 %v1519, %v1518
        %v1588 = vpack.c.b16 %v1521, %v1520
        %v1589 = vpack.c.b16 %v1523, %v1522
        %v1590 = vpack.c.b16 %v1525, %v1524
        %v1591 = vpack.c.b16 %v1527, %v1526
        %v1592 = vpack.c.b16 %v1529, %v1528
        %v1593 = vpack.c.b16 %v1531, %v1530
        %v1594 = vpack.c.b16 %v1533, %v1532
        %v1595 = vpack.c.b16 %v1535, %v1534
        %v1596 = vpack.c.b16 %v1537, %v1536
        %v1597 = vpack.c.b16 %v1539, %v1538
        %v1598 = vpack.c.b16 %v1541, %v1540
        %v1599 = vpack.c.b16 %v1543, %v1542
        %v1600 = vpack.c.b16 %v1545, %v1544
        %v1601 = vpack.c.b16 %v1547, %v1546
        %v1602 = vpack.c.b16 %v1549, %v1548
        %v1603 = vpack.c.b16 %v1551, %v1550
        %v1604 = vpack.c.b16 %v1553, %v1552
        %v1605 = vpack.c.b16 %v1555, %v1554
        %v1606 = vpack.c.b16 %v1557, %v1556
        %v1607 = vpack.c.b16 %v1559, %v1558
        %v1608 = vpack.c.b16 %v1561, %v1560
        %v1609 = vpack.c.b16 %v1563, %v1562
        %v1610 = vpack.c.b16 %v1565, %v1564
        %v1611 = vpack.c.b16 %v1567, %v1566
        %v1612 = vpack.c.b16 %v1569, %v1568
        %v1613 = vpack.c.b16 %v1571, %v1570
        %v1614 = vpack.c.b16 %v1573, %v1572
        %v1615 = vpack.c.b16 %v1575, %v1574
        %v1616 = vpack.c.b16 %v1577, %v1576
        %v1617 = vpack.c.b16 %v1579, %v1578
        %v1618 = vpack.c.b16 %v1581, %v1580
        %v1619 = vpack.c.b16 %v1583, %v1582
        %v1657 = vsel %vm677, %v1292, 0
        %v1660 = vsel %vm677, %v1297, 0
        %v1663 = vsel %vm677, %v1302, 0
        %v1666 = vsel %vm677, %v1307, 0
        %v1669 = vsel %vm677, %v1312, 0
        %v1672 = vsel %vm677, %v1317, 0
        %v1675 = vsel %vm677, %v1322, 0
        %v1678 = vsel %vm677, %v1327, 0
        %v1681 = vsel %vm677, %v1332, 0
        %v1684 = vsel %vm677, %v1337, 0
        %v1687 = vsel %vm677, %v1342, 0
        %v1690 = vsel %vm677, %v1347, 0
        %v1693 = vsel %vm677, %v1352, 0
        %v1696 = vsel %vm677, %v1357, 0
        %v1699 = vsel %vm677, %v1362, 0
        %v1702 = vsel %vm677, %v1367, 0
        %1704 = vmatprep.subr.bf16.mxu0 0
        %1705 = vmatpush1.bf16.msra.mxu0 %v1584
        %1706 = vmatprep.subr.bf16.mxu0 0
        %1707 = vmatpush1.bf16.msra.mxu0 %v1585
        %1708 = vmatprep.subr.bf16.mxu0 0
        %1709 = vmatpush1.bf16.msra.mxu0 %v1586
        %1710 = vmatprep.subr.bf16.mxu0 0
        %1711 = vmatpush1.bf16.msra.mxu0 %v1587
        %1712 = vmatprep.subr.bf16.mxu0 0
        %1713 = vmatpush1.bf16.msra.mxu0 %v1588
        %1714 = vmatprep.subr.bf16.mxu0 0
        %1715 = vmatpush1.bf16.msra.mxu0 %v1589
        %1716 = vmatprep.subr.bf16.mxu0 0
        %1717 = vmatpush1.bf16.msra.mxu0 %v1590
        %1718 = vmatprep.subr.bf16.mxu0 0
        %1719 = vmatpush1.bf16.msra.mxu0 %v1591
        %1720 = vmatprep.subr.bf16.mxu0 0
        %1721 = vmatpush1.bf16.msra.mxu0 %v1592
        %1722 = vmatprep.subr.bf16.mxu0 0
        %1723 = vmatpush1.bf16.msra.mxu0 %v1593
        %1724 = vmatprep.subr.bf16.mxu0 0
        %1725 = vmatpush1.bf16.msra.mxu0 %v1594
        %1726 = vmatprep.subr.bf16.mxu0 0
        %1727 = vmatpush1.bf16.msra.mxu0 %v1595
        %1728 = vmatprep.subr.bf16.mxu0 0
        %1729 = vmatpush1.bf16.msra.mxu0 %v1596
        %1730 = vmatprep.subr.bf16.mxu0 0
        %1731 = vmatpush1.bf16.msra.mxu0 %v1597
        %1732 = vmatprep.subr.bf16.mxu0 0
        %1733 = vmatpush1.bf16.msra.mxu0 %v1598
        %1734 = vmatprep.subr.bf16.mxu0 0
        %1735 = vmatpush1.bf16.msra.mxu0 %v1599
        %1736 = vmatprep.mubr.bf16.mxu0 %v1289
        %1737 = vmatmul.mubr.bf16.gmra.mrb[0].mxu0 %v1288
        %v1738 = vpop.f32.mrb[0].mxu0
        %v1739 = vadd.f32 0.0, %v1738
        %v1740 = vpop.f32.mrb[0].mxu0
        %v1741 = vpop.f32.mrb[0].mxu0
        %v1742 = vadd.f32 0.0, %v1741
        %v1743 = vpop.f32.mrb[0].mxu0
        %1744 = vmatprep.mubr.bf16.mxu0 %v1294
        %1745 = vmatmul.mubr.bf16.gmra.mrb[0].mxu0 %v1293
        %v1746 = vpop.f32.mrb[0].mxu0
        %v1747 = vadd.f32 0.0, %v1746
        %v1748 = vpop.f32.mrb[0].mxu0
        %v1749 = vpop.f32.mrb[0].mxu0
        %v1750 = vadd.f32 0.0, %v1749
        %v1751 = vpop.f32.mrb[0].mxu0
        %1752 = vmatprep.mubr.bf16.mxu0 %v1299
        %1753 = vmatmul.mubr.bf16.gmra.mrb[0].mxu0 %v1298
        %v1754 = vpop.f32.mrb[0].mxu0
        %v1755 = vadd.f32 0.0, %v1754
        %v1756 = vpop.f32.mrb[0].mxu0
        %v1757 = vpop.f32.mrb[0].mxu0
        %v1758 = vadd.f32 0.0, %v1757
        %v1759 = vpop.f32.mrb[0].mxu0
        %1760 = vmatprep.mubr.bf16.mxu0 %v1304
        %1761 = vmatmul.mubr.bf16.gmra.mrb[0].mxu0 %v1303
        %v1762 = vpop.f32.mrb[0].mxu0
        %v1763 = vadd.f32 0.0, %v1762
        %v1764 = vpop.f32.mrb[0].mxu0
        %v1765 = vpop.f32.mrb[0].mxu0
        %v1766 = vadd.f32 0.0, %v1765
        %v1767 = vpop.f32.mrb[0].mxu0
        %1768 = vmatprep.mubr.bf16.mxu0 %v1309
        %1769 = vmatmul.mubr.bf16.gmra.mrb[0].mxu0 %v1308
        %v1770 = vpop.f32.mrb[0].mxu0
        %v1771 = vadd.f32 0.0, %v1770
        %v1772 = vpop.f32.mrb[0].mxu0
        %v1773 = vpop.f32.mrb[0].mxu0
        %v1774 = vadd.f32 0.0, %v1773
        %v1775 = vpop.f32.mrb[0].mxu0
        %1776 = vmatprep.mubr.bf16.mxu0 %v1314
        %1777 = vmatmul.mubr.bf16.gmra.mrb[0].mxu0 %v1313
        %v1778 = vpop.f32.mrb[0].mxu0
        %v1779 = vadd.f32 0.0, %v1778
        %v1780 = vpop.f32.mrb[0].mxu0
        %v1781 = vpop.f32.mrb[0].mxu0
        %v1782 = vadd.f32 0.0, %v1781
        %v1783 = vpop.f32.mrb[0].mxu0
        %1784 = vmatprep.mubr.bf16.mxu0 %v1319
        %1785 = vmatmul.mubr.bf16.gmra.mrb[0].mxu0 %v1318
        %v1786 = vpop.f32.mrb[0].mxu0
        %v1787 = vadd.f32 0.0, %v1786
        %v1788 = vpop.f32.mrb[0].mxu0
        %v1789 = vpop.f32.mrb[0].mxu0
        %v1790 = vadd.f32 0.0, %v1789
        %v1791 = vpop.f32.mrb[0].mxu0
        %1792 = vmatprep.mubr.bf16.mxu0 %v1324
        %1793 = vmatmul.mubr.bf16.gmra.mrb[0].mxu0 %v1323
        %v1794 = vpop.f32.mrb[0].mxu0
        %v1795 = vadd.f32 0.0, %v1794
        %v1796 = vpop.f32.mrb[0].mxu0
        %v1797 = vpop.f32.mrb[0].mxu0
        %v1798 = vadd.f32 0.0, %v1797
        %v1799 = vpop.f32.mrb[0].mxu0
        %1800 = vmatprep.mubr.bf16.mxu0 %v1329
        %1801 = vmatmul.mubr.bf16.gmra.mrb[0].mxu0 %v1328
        %v1802 = vpop.f32.mrb[0].mxu0
        %v1803 = vadd.f32 0.0, %v1802
        %v1804 = vpop.f32.mrb[0].mxu0
        %v1805 = vpop.f32.mrb[0].mxu0
        %v1806 = vadd.f32 0.0, %v1805
        %v1807 = vpop.f32.mrb[0].mxu0
        %1808 = vmatprep.mubr.bf16.mxu0 %v1334
        %1809 = vmatmul.mubr.bf16.gmra.mrb[0].mxu0 %v1333
        %v1810 = vpop.f32.mrb[0].mxu0
        %v1811 = vadd.f32 0.0, %v1810
        %v1812 = vpop.f32.mrb[0].mxu0
        %v1813 = vpop.f32.mrb[0].mxu0
        %v1814 = vadd.f32 0.0, %v1813
        %v1815 = vpop.f32.mrb[0].mxu0
        %1816 = vmatprep.mubr.bf16.mxu0 %v1339
        %1817 = vmatmul.mubr.bf16.gmra.mrb[0].mxu0 %v1338
        %v1818 = vpop.f32.mrb[0].mxu0
        %v1819 = vadd.f32 0.0, %v1818
        %v1820 = vpop.f32.mrb[0].mxu0
        %v1821 = vpop.f32.mrb[0].mxu0
        %v1822 = vadd.f32 0.0, %v1821
        %v1823 = vpop.f32.mrb[0].mxu0
        %1824 = vmatprep.mubr.bf16.mxu0 %v1344
        %1825 = vmatmul.mubr.bf16.gmra.mrb[0].mxu0 %v1343
        %v1826 = vpop.f32.mrb[0].mxu0
        %v1827 = vadd.f32 0.0, %v1826
        %v1828 = vpop.f32.mrb[0].mxu0
        %v1829 = vpop.f32.mrb[0].mxu0
        %v1830 = vadd.f32 0.0, %v1829
        %v1831 = vpop.f32.mrb[0].mxu0
        %1832 = vmatprep.mubr.bf16.mxu0 %v1349
        %1833 = vmatmul.mubr.bf16.gmra.mrb[0].mxu0 %v1348
        %v1834 = vpop.f32.mrb[0].mxu0
        %v1835 = vadd.f32 0.0, %v1834
        %v1836 = vpop.f32.mrb[0].mxu0
        %v1837 = vpop.f32.mrb[0].mxu0
        %v1838 = vadd.f32 0.0, %v1837
        %v1839 = vpop.f32.mrb[0].mxu0
        %1840 = vmatprep.mubr.bf16.mxu0 %v1354
        %1841 = vmatmul.mubr.bf16.gmra.mrb[0].mxu0 %v1353
        %v1842 = vpop.f32.mrb[0].mxu0
        %v1843 = vadd.f32 0.0, %v1842
        %v1844 = vpop.f32.mrb[0].mxu0
        %v1845 = vpop.f32.mrb[0].mxu0
        %v1846 = vadd.f32 0.0, %v1845
        %v1847 = vpop.f32.mrb[0].mxu0
        %1848 = vmatprep.mubr.bf16.mxu0 %v1359
        %1849 = vmatmul.mubr.bf16.gmra.mrb[0].mxu0 %v1358
        %v1850 = vpop.f32.mrb[0].mxu0
        %v1851 = vadd.f32 0.0, %v1850
        %v1852 = vpop.f32.mrb[0].mxu0
        %v1853 = vpop.f32.mrb[0].mxu0
        %v1854 = vadd.f32 0.0, %v1853
        %v1855 = vpop.f32.mrb[0].mxu0
        %1856 = vmatprep.mubr.bf16.mxu0 %v1364
        %1857 = vmatmul.mubr.bf16.gmra.mrb[0].mxu0 %v1363
        %v1858 = vpop.f32.mrb[0].mxu0
        %v1859 = vadd.f32 0.0, %v1858
        %v1860 = vpop.f32.mrb[0].mxu0
        %v1861 = vpop.f32.mrb[0].mxu0
        %v1862 = vadd.f32 0.0, %v1861
        %v1863 = vpop.f32.mrb[0].mxu0
        %1864 = vdwg.mxu0
        %1865 = vmatprep.subr.bf16.mxu0 0
        %1866 = vmatpush1.bf16.msra.mxu0 %v1600
        %1867 = vmatprep.subr.bf16.mxu0 0
        %1868 = vmatpush1.bf16.msra.mxu0 %v1601
        %1869 = vmatprep.subr.bf16.mxu0 0
        %1870 = vmatpush1.bf16.msra.mxu0 %v1602
        %1871 = vmatprep.subr.bf16.mxu0 0
        %1872 = vmatpush1.bf16.msra.mxu0 %v1603
        %1873 = vmatprep.subr.bf16.mxu0 0
        %1874 = vmatpush1.bf16.msra.mxu0 %v1604
        %1875 = vmatprep.subr.bf16.mxu0 0
        %1876 = vmatpush1.bf16.msra.mxu0 %v1605
        %1877 = vmatprep.subr.bf16.mxu0 0
        %1878 = vmatpush1.bf16.msra.mxu0 %v1606
        %1879 = vmatprep.subr.bf16.mxu0 0
        %1880 = vmatpush1.bf16.msra.mxu0 %v1607
        %1881 = vmatprep.subr.bf16.mxu0 0
        %1882 = vmatpush1.bf16.msra.mxu0 %v1608
        %1883 = vmatprep.subr.bf16.mxu0 0
        %1884 = vmatpush1.bf16.msra.mxu0 %v1609
        %1885 = vmatprep.subr.bf16.mxu0 0
        %1886 = vmatpush1.bf16.msra.mxu0 %v1610
        %1887 = vmatprep.subr.bf16.mxu0 0
        %1888 = vmatpush1.bf16.msra.mxu0 %v1611
        %1889 = vmatprep.subr.bf16.mxu0 0
        %1890 = vmatpush1.bf16.msra.mxu0 %v1612
        %1891 = vmatprep.subr.bf16.mxu0 0
        %1892 = vmatpush1.bf16.msra.mxu0 %v1613
        %1893 = vmatprep.subr.bf16.mxu0 0
        %1894 = vmatpush1.bf16.msra.mxu0 %v1614
        %1895 = vmatprep.subr.bf16.mxu0 0
        %1896 = vmatpush1.bf16.msra.mxu0 %v1615
        %1897 = vmatprep.mubr.bf16.mxu0 %v1291
        %1898 = vmatmul.mubr.bf16.gmra.mrb[0].mxu0 %v1290
        %v1899 = vpop.f32.mrb[0].mxu0
        %v1900 = vadd.f32 %v1739, %v1899
        %v1901 = vpop.f32.mrb[0].mxu0
        %v1902 = vpop.f32.mrb[0].mxu0
        %v1903 = vadd.f32 %v1742, %v1902
        %v1904 = vpop.f32.mrb[0].mxu0
        %1905 = vmatprep.mubr.bf16.mxu0 %v1296
        %1906 = vmatmul.mubr.bf16.gmra.mrb[0].mxu0 %v1295
        %v1907 = vpop.f32.mrb[0].mxu0
        %v1908 = vadd.f32 %v1747, %v1907
        %v1909 = vpop.f32.mrb[0].mxu0
        %v1910 = vpop.f32.mrb[0].mxu0
        %v1911 = vadd.f32 %v1750, %v1910
        %v1912 = vpop.f32.mrb[0].mxu0
        %1913 = vmatprep.mubr.bf16.mxu0 %v1301
        %1914 = vmatmul.mubr.bf16.gmra.mrb[0].mxu0 %v1300
        %v1915 = vpop.f32.mrb[0].mxu0
        %v1916 = vadd.f32 %v1755, %v1915
        %v1917 = vpop.f32.mrb[0].mxu0
        %v1918 = vpop.f32.mrb[0].mxu0
        %v1919 = vadd.f32 %v1758, %v1918
        %v1920 = vpop.f32.mrb[0].mxu0
        %1921 = vmatprep.mubr.bf16.mxu0 %v1306
        %1922 = vmatmul.mubr.bf16.gmra.mrb[0].mxu0 %v1305
        %v1923 = vpop.f32.mrb[0].mxu0
        %v1924 = vadd.f32 %v1763, %v1923
        %v1925 = vpop.f32.mrb[0].mxu0
        %v1926 = vpop.f32.mrb[0].mxu0
        %v1927 = vadd.f32 %v1766, %v1926
        %v1928 = vpop.f32.mrb[0].mxu0
        %1929 = vmatprep.mubr.bf16.mxu0 %v1311
        %1930 = vmatmul.mubr.bf16.gmra.mrb[0].mxu0 %v1310
        %v1931 = vpop.f32.mrb[0].mxu0
        %v1932 = vadd.f32 %v1771, %v1931
        %v1933 = vpop.f32.mrb[0].mxu0
        %v1934 = vpop.f32.mrb[0].mxu0
        %v1935 = vadd.f32 %v1774, %v1934
        %v1936 = vpop.f32.mrb[0].mxu0
        %1937 = vmatprep.mubr.bf16.mxu0 %v1316
        %1938 = vmatmul.mubr.bf16.gmra.mrb[0].mxu0 %v1315
        %v1939 = vpop.f32.mrb[0].mxu0
        %v1940 = vadd.f32 %v1779, %v1939
        %v1941 = vpop.f32.mrb[0].mxu0
        %v1942 = vpop.f32.mrb[0].mxu0
        %v1943 = vadd.f32 %v1782, %v1942
        %v1944 = vpop.f32.mrb[0].mxu0
        %1945 = vmatprep.mubr.bf16.mxu0 %v1321
        %1946 = vmatmul.mubr.bf16.gmra.mrb[0].mxu0 %v1320
        %v1947 = vpop.f32.mrb[0].mxu0
        %v1948 = vadd.f32 %v1787, %v1947
        %v1949 = vpop.f32.mrb[0].mxu0
        %v1950 = vpop.f32.mrb[0].mxu0
        %v1951 = vadd.f32 %v1790, %v1950
        %v1952 = vpop.f32.mrb[0].mxu0
        %1953 = vmatprep.mubr.bf16.mxu0 %v1326
        %1954 = vmatmul.mubr.bf16.gmra.mrb[0].mxu0 %v1325
        %v1955 = vpop.f32.mrb[0].mxu0
        %v1956 = vadd.f32 %v1795, %v1955
        %v1957 = vpop.f32.mrb[0].mxu0
        %v1958 = vpop.f32.mrb[0].mxu0
        %v1959 = vadd.f32 %v1798, %v1958
        %v1960 = vpop.f32.mrb[0].mxu0
        %1961 = vmatprep.mubr.bf16.mxu0 %v1331
        %1962 = vmatmul.mubr.bf16.gmra.mrb[0].mxu0 %v1330
        %v1963 = vpop.f32.mrb[0].mxu0
        %v1964 = vadd.f32 %v1803, %v1963
        %v1965 = vpop.f32.mrb[0].mxu0
        %v1966 = vpop.f32.mrb[0].mxu0
        %v1967 = vadd.f32 %v1806, %v1966
        %v1968 = vpop.f32.mrb[0].mxu0
        %1969 = vmatprep.mubr.bf16.mxu0 %v1336
        %1970 = vmatmul.mubr.bf16.gmra.mrb[0].mxu0 %v1335
        %v1971 = vpop.f32.mrb[0].mxu0
        %v1972 = vadd.f32 %v1811, %v1971
        %v1973 = vpop.f32.mrb[0].mxu0
        %v1974 = vpop.f32.mrb[0].mxu0
        %v1975 = vadd.f32 %v1814, %v1974
        %v1976 = vpop.f32.mrb[0].mxu0
        %1977 = vmatprep.mubr.bf16.mxu0 %v1341
        %1978 = vmatmul.mubr.bf16.gmra.mrb[0].mxu0 %v1340
        %v1979 = vpop.f32.mrb[0].mxu0
        %v1980 = vadd.f32 %v1819, %v1979
        %v1981 = vpop.f32.mrb[0].mxu0
        %v1982 = vpop.f32.mrb[0].mxu0
        %v1983 = vadd.f32 %v1822, %v1982
        %v1984 = vpop.f32.mrb[0].mxu0
        %1985 = vmatprep.mubr.bf16.mxu0 %v1346
        %1986 = vmatmul.mubr.bf16.gmra.mrb[0].mxu0 %v1345
        %v1987 = vpop.f32.mrb[0].mxu0
        %v1988 = vadd.f32 %v1827, %v1987
        %v1989 = vpop.f32.mrb[0].mxu0
        %v1990 = vpop.f32.mrb[0].mxu0
        %v1991 = vadd.f32 %v1830, %v1990
        %v1992 = vpop.f32.mrb[0].mxu0
        %1993 = vmatprep.mubr.bf16.mxu0 %v1351
        %1994 = vmatmul.mubr.bf16.gmra.mrb[0].mxu0 %v1350
        %v1995 = vpop.f32.mrb[0].mxu0
        %v1996 = vadd.f32 %v1835, %v1995
        %v1997 = vpop.f32.mrb[0].mxu0
        %v1998 = vpop.f32.mrb[0].mxu0
        %v1999 = vadd.f32 %v1838, %v1998
        %v2000 = vpop.f32.mrb[0].mxu0
        %2001 = vmatprep.mubr.bf16.mxu0 %v1356
        %2002 = vmatmul.mubr.bf16.gmra.mrb[0].mxu0 %v1355
        %v2003 = vpop.f32.mrb[0].mxu0
        %v2004 = vadd.f32 %v1843, %v2003
        %v2005 = vpop.f32.mrb[0].mxu0
        %v2006 = vpop.f32.mrb[0].mxu0
        %v2007 = vadd.f32 %v1846, %v2006
        %v2008 = vpop.f32.mrb[0].mxu0
        %2009 = vmatprep.mubr.bf16.mxu0 %v1361
        %2010 = vmatmul.mubr.bf16.gmra.mrb[0].mxu0 %v1360
        %v2011 = vpop.f32.mrb[0].mxu0
        %v2012 = vadd.f32 %v1851, %v2011
        %v2013 = vpop.f32.mrb[0].mxu0
        %v2014 = vpop.f32.mrb[0].mxu0
        %v2015 = vadd.f32 %v1854, %v2014
        %v2016 = vpop.f32.mrb[0].mxu0
        %2017 = vmatprep.mubr.bf16.mxu0 %v1366
        %2018 = vmatmul.mubr.bf16.gmra.mrb[0].mxu0 %v1365
        %v2019 = vpop.f32.mrb[0].mxu0
        %v2020 = vadd.f32 %v1859, %v2019
        %v2021 = vpop.f32.mrb[0].mxu0
        %v2022 = vpop.f32.mrb[0].mxu0
        %v2023 = vadd.f32 %v1862, %v2022
        %v2024 = vpop.f32.mrb[0].mxu0
        %2025 = vdwg.mxu0
        %2026 = vmatprep.subr.bf16.mxu0 0
        %2027 = vmatpush1.bf16.msra.mxu0 %v1616
        %2028 = vmatprep.subr.bf16.mxu0 0
        %2029 = vmatpush1.bf16.msra.mxu0 %v1617
        %2030 = vmatprep.subr.bf16.mxu0 0
        %2031 = vmatpush1.bf16.msra.mxu0 %v1618
        %2032 = vmatprep.subr.bf16.mxu0 0
        %2033 = vmatpush1.bf16.msra.mxu0 %v1619
        %2034 = vmatprep.subr.bf16.mxu0 0
        %2035 = vmatpush1.bf16.msra.mxu0 0
        %2036 = vmatprep.subr.bf16.mxu0 0
        %2037 = vmatpush1.bf16.msra.mxu0 0
        %2038 = vmatprep.subr.bf16.mxu0 0
        %2039 = vmatpush1.bf16.msra.mxu0 0
        %2040 = vmatprep.subr.bf16.mxu0 0
        %2041 = vmatpush1.bf16.msra.mxu0 0
        %2042 = vmatprep.subr.bf16.mxu0 0
        %2043 = vmatpush1.bf16.msra.mxu0 0
        %2044 = vmatprep.subr.bf16.mxu0 0
        %2045 = vmatpush1.bf16.msra.mxu0 0
        %2046 = vmatprep.subr.bf16.mxu0 0
        %2047 = vmatpush1.bf16.msra.mxu0 0
        %2048 = vmatprep.subr.bf16.mxu0 0
        %2049 = vmatpush1.bf16.msra.mxu0 0
        %2050 = vmatprep.subr.bf16.mxu0 0
        %2051 = vmatpush1.bf16.msra.mxu0 0
        %2052 = vmatprep.subr.bf16.mxu0 0
        %2053 = vmatpush1.bf16.msra.mxu0 0
        %2054 = vmatprep.subr.bf16.mxu0 0
        %2055 = vmatpush1.bf16.msra.mxu0 0
        %2056 = vmatprep.subr.bf16.mxu0 0
        %2057 = vmatpush1.bf16.msra.mxu0 0
        %2058 = vmatprep.mubr.bf16.mxu0 0
        %2059 = vmatmul.mubr.bf16.gmra.mrb[0].mxu0 %v1657
        %v2060 = vpop.f32.mrb[0].mxu0
        %v2061 = vadd.f32 %v1900, %v2060
        %v2062 = vpop.f32.mrb[0].mxu0
        %v2063 = vpop.f32.mrb[0].mxu0
        %v2064 = vadd.f32 %v1903, %v2063
        %v2065 = vpop.f32.mrb[0].mxu0
        %2066 = vmatprep.mubr.bf16.mxu0 0
        %2067 = vmatmul.mubr.bf16.gmra.mrb[0].mxu0 %v1660
        %v2068 = vpop.f32.mrb[0].mxu0
        %v2069 = vadd.f32 %v1908, %v2068
        %v2070 = vpop.f32.mrb[0].mxu0
        %v2071 = vpop.f32.mrb[0].mxu0
        %v2072 = vadd.f32 %v1911, %v2071
        %v2073 = vpop.f32.mrb[0].mxu0
        %2074 = vmatprep.mubr.bf16.mxu0 0
        %2075 = vmatmul.mubr.bf16.gmra.mrb[0].mxu0 %v1663
        %v2076 = vpop.f32.mrb[0].mxu0
        %v2077 = vadd.f32 %v1916, %v2076
        %v2078 = vpop.f32.mrb[0].mxu0
        %v2079 = vpop.f32.mrb[0].mxu0
        %v2080 = vadd.f32 %v1919, %v2079
        %v2081 = vpop.f32.mrb[0].mxu0
        %2082 = vmatprep.mubr.bf16.mxu0 0
        %2083 = vmatmul.mubr.bf16.gmra.mrb[0].mxu0 %v1666
        %v2084 = vpop.f32.mrb[0].mxu0
        %v2085 = vadd.f32 %v1924, %v2084
        %v2086 = vpop.f32.mrb[0].mxu0
        %v2087 = vpop.f32.mrb[0].mxu0
        %v2088 = vadd.f32 %v1927, %v2087
        %v2089 = vpop.f32.mrb[0].mxu0
        %2090 = vmatprep.mubr.bf16.mxu0 0
        %2091 = vmatmul.mubr.bf16.gmra.mrb[0].mxu0 %v1669
        %v2092 = vpop.f32.mrb[0].mxu0
        %v2093 = vadd.f32 %v1932, %v2092
        %v2094 = vpop.f32.mrb[0].mxu0
        %v2095 = vpop.f32.mrb[0].mxu0
        %v2096 = vadd.f32 %v1935, %v2095
        %v2097 = vpop.f32.mrb[0].mxu0
        %2098 = vmatprep.mubr.bf16.mxu0 0
        %2099 = vmatmul.mubr.bf16.gmra.mrb[0].mxu0 %v1672
        %v2100 = vpop.f32.mrb[0].mxu0
        %v2101 = vadd.f32 %v1940, %v2100
        %v2102 = vpop.f32.mrb[0].mxu0
        %v2103 = vpop.f32.mrb[0].mxu0
        %v2104 = vadd.f32 %v1943, %v2103
        %v2105 = vpop.f32.mrb[0].mxu0
        %2106 = vmatprep.mubr.bf16.mxu0 0
        %2107 = vmatmul.mubr.bf16.gmra.mrb[0].mxu0 %v1675
        %v2108 = vpop.f32.mrb[0].mxu0
        %v2109 = vadd.f32 %v1948, %v2108
        %v2110 = vpop.f32.mrb[0].mxu0
        %v2111 = vpop.f32.mrb[0].mxu0
        %v2112 = vadd.f32 %v1951, %v2111
        %v2113 = vpop.f32.mrb[0].mxu0
        %2114 = vmatprep.mubr.bf16.mxu0 0
        %2115 = vmatmul.mubr.bf16.gmra.mrb[0].mxu0 %v1678
        %v2116 = vpop.f32.mrb[0].mxu0
        %v2117 = vadd.f32 %v1956, %v2116
        %v2118 = vpop.f32.mrb[0].mxu0
        %v2119 = vpop.f32.mrb[0].mxu0
        %v2120 = vadd.f32 %v1959, %v2119
        %v2121 = vpop.f32.mrb[0].mxu0
        %2122 = vmatprep.mubr.bf16.mxu0 0
        %2123 = vmatmul.mubr.bf16.gmra.mrb[0].mxu0 %v1681
        %v2124 = vpop.f32.mrb[0].mxu0
        %v2125 = vadd.f32 %v1964, %v2124
        %v2126 = vpop.f32.mrb[0].mxu0
        %v2127 = vpop.f32.mrb[0].mxu0
        %v2128 = vadd.f32 %v1967, %v2127
        %v2129 = vpop.f32.mrb[0].mxu0
        %2130 = vmatprep.mubr.bf16.mxu0 0
        %2131 = vmatmul.mubr.bf16.gmra.mrb[0].mxu0 %v1684
        %v2132 = vpop.f32.mrb[0].mxu0
        %v2133 = vadd.f32 %v1972, %v2132
        %v2134 = vpop.f32.mrb[0].mxu0
        %v2135 = vpop.f32.mrb[0].mxu0
        %v2136 = vadd.f32 %v1975, %v2135
        %v2137 = vpop.f32.mrb[0].mxu0
        %2138 = vmatprep.mubr.bf16.mxu0 0
        %2139 = vmatmul.mubr.bf16.gmra.mrb[0].mxu0 %v1687
        %v2140 = vpop.f32.mrb[0].mxu0
        %v2141 = vadd.f32 %v1980, %v2140
        %v2142 = vpop.f32.mrb[0].mxu0
        %v2143 = vpop.f32.mrb[0].mxu0
        %v2144 = vadd.f32 %v1983, %v2143
        %v2145 = vpop.f32.mrb[0].mxu0
        %2146 = vmatprep.mubr.bf16.mxu0 0
        %2147 = vmatmul.mubr.bf16.gmra.mrb[0].mxu0 %v1690
        %v2148 = vpop.f32.mrb[0].mxu0
        %v2149 = vadd.f32 %v1988, %v2148
        %v2150 = vpop.f32.mrb[0].mxu0
        %v2151 = vpop.f32.mrb[0].mxu0
        %v2152 = vadd.f32 %v1991, %v2151
        %v2153 = vpop.f32.mrb[0].mxu0
        %2154 = vmatprep.mubr.bf16.mxu0 0
        %2155 = vmatmul.mubr.bf16.gmra.mrb[0].mxu0 %v1693
        %v2156 = vpop.f32.mrb[0].mxu0
        %v2157 = vadd.f32 %v1996, %v2156
        %v2158 = vpop.f32.mrb[0].mxu0
        %v2159 = vpop.f32.mrb[0].mxu0
        %v2160 = vadd.f32 %v1999, %v2159
        %v2161 = vpop.f32.mrb[0].mxu0
        %2162 = vmatprep.mubr.bf16.mxu0 0
        %2163 = vmatmul.mubr.bf16.gmra.mrb[0].mxu0 %v1696
        %v2164 = vpop.f32.mrb[0].mxu0
        %v2165 = vadd.f32 %v2004, %v2164
        %v2166 = vpop.f32.mrb[0].mxu0
        %v2167 = vpop.f32.mrb[0].mxu0
        %v2168 = vadd.f32 %v2007, %v2167
        %v2169 = vpop.f32.mrb[0].mxu0
        %2170 = vmatprep.mubr.bf16.mxu0 0
        %2171 = vmatmul.mubr.bf16.gmra.mrb[0].mxu0 %v1699
        %v2172 = vpop.f32.mrb[0].mxu0
        %v2173 = vadd.f32 %v2012, %v2172
        %v2174 = vpop.f32.mrb[0].mxu0
        %v2175 = vpop.f32.mrb[0].mxu0
        %v2176 = vadd.f32 %v2015, %v2175
        %v2177 = vpop.f32.mrb[0].mxu0
        %2178 = vmatprep.mubr.bf16.mxu0 0
        %2179 = vmatmul.mubr.bf16.gmra.mrb[0].mxu0 %v1702
        %v2180 = vpop.f32.mrb[0].mxu0
        %v2181 = vadd.f32 %v2020, %v2180
        %v2182 = vpop.f32.mrb[0].mxu0
        %v2183 = vpop.f32.mrb[0].mxu0
        %v2184 = vadd.f32 %v2023, %v2183
        %v2185 = vpop.f32.mrb[0].mxu0
        %2186 = vdwg.mxu0
        %v2187 = vld [vmem:[%s2] sm:$0x1]
        %v2189 = vlaneseq
        %v2190 = vshrl.u32 %v2189, 7
        %v2191 = vsub.s32 0, %v2190
        %v2192 = vrot.slane %v2187, %v2191
        %v2194 = vmul.f32 %v2061, %v2192
        %v2195 = vmul.f32 %v2064, %v2192
        %v2196 = vmul.f32 %v2069, %v2192
        %v2197 = vmul.f32 %v2072, %v2192
        %v2198 = vmul.f32 %v2077, %v2192
        %v2199 = vmul.f32 %v2080, %v2192
        %v2200 = vmul.f32 %v2085, %v2192
        %v2201 = vmul.f32 %v2088, %v2192
        %v2202 = vmul.f32 %v2093, %v2192
        %v2203 = vmul.f32 %v2096, %v2192
        %v2204 = vmul.f32 %v2101, %v2192
        %v2205 = vmul.f32 %v2104, %v2192
        %v2206 = vmul.f32 %v2109, %v2192
        %v2207 = vmul.f32 %v2112, %v2192
        %v2208 = vmul.f32 %v2117, %v2192
        %v2209 = vmul.f32 %v2120, %v2192
        %v2210 = vmul.f32 %v2125, %v2192
        %v2211 = vmul.f32 %v2128, %v2192
        %v2212 = vmul.f32 %v2133, %v2192
        %v2213 = vmul.f32 %v2136, %v2192
        %v2214 = vmul.f32 %v2141, %v2192
        %v2215 = vmul.f32 %v2144, %v2192
        %v2216 = vmul.f32 %v2149, %v2192
        %v2217 = vmul.f32 %v2152, %v2192
        %v2218 = vmul.f32 %v2157, %v2192
        %v2219 = vmul.f32 %v2160, %v2192
        %v2220 = vmul.f32 %v2165, %v2192
        %v2221 = vmul.f32 %v2168, %v2192
        %v2222 = vmul.f32 %v2173, %v2192
        %v2223 = vmul.f32 %v2176, %v2192
        %v2224 = vmul.f32 %v2181, %v2192
        %v2225 = vmul.f32 %v2184, %v2192
        %v2226 = vld [vmem:[%s3] sm:$0x1]
        %v2228 = vlaneseq
        %v2229 = vshrl.u32 %v2228, 7
        %v2230 = vsub.s32 0, %v2229
        %v2231 = vrot.slane %v2226, %v2230
        %v2233 = vadd.f32 %v2194, %v2231
        %v2234 = vadd.f32 %v2195, %v2231
        %v2235 = vadd.f32 %v2196, %v2231
        %v2236 = vadd.f32 %v2197, %v2231
        %v2237 = vadd.f32 %v2198, %v2231
        %v2238 = vadd.f32 %v2199, %v2231
        %v2239 = vadd.f32 %v2200, %v2231
        %v2240 = vadd.f32 %v2201, %v2231
        %v2241 = vadd.f32 %v2202, %v2231
        %v2242 = vadd.f32 %v2203, %v2231
        %v2243 = vadd.f32 %v2204, %v2231
        %v2244 = vadd.f32 %v2205, %v2231
        %v2245 = vadd.f32 %v2206, %v2231
        %v2246 = vadd.f32 %v2207, %v2231
        %v2247 = vadd.f32 %v2208, %v2231
        %v2248 = vadd.f32 %v2209, %v2231
        %v2249 = vadd.f32 %v2210, %v2231
        %v2250 = vadd.f32 %v2211, %v2231
        %v2251 = vadd.f32 %v2212, %v2231
        %v2252 = vadd.f32 %v2213, %v2231
        %v2253 = vadd.f32 %v2214, %v2231
        %v2254 = vadd.f32 %v2215, %v2231
        %v2255 = vadd.f32 %v2216, %v2231
        %v2256 = vadd.f32 %v2217, %v2231
        %v2257 = vadd.f32 %v2218, %v2231
        %v2258 = vadd.f32 %v2219, %v2231
        %v2259 = vadd.f32 %v2220, %v2231
        %v2260 = vadd.f32 %v2221, %v2231
        %v2261 = vadd.f32 %v2222, %v2231
        %v2262 = vadd.f32 %v2223, %v2231
        %v2263 = vadd.f32 %v2224, %v2231
        %v2264 = vadd.f32 %v2225, %v2231
        %v2265 = vmax.f32 %v2233, 0.0
        %v2266 = vmax.f32 %v2234, 0.0
        %v2267 = vmax.f32 %v2235, 0.0
        %v2268 = vmax.f32 %v2236, 0.0
        %v2269 = vmax.f32 %v2237, 0.0
        %v2270 = vmax.f32 %v2238, 0.0
        %v2271 = vmax.f32 %v2239, 0.0
        %v2272 = vmax.f32 %v2240, 0.0
        %v2273 = vmax.f32 %v2241, 0.0
        %v2274 = vmax.f32 %v2242, 0.0
        %v2275 = vmax.f32 %v2243, 0.0
        %v2276 = vmax.f32 %v2244, 0.0
        %v2277 = vmax.f32 %v2245, 0.0
        %v2278 = vmax.f32 %v2246, 0.0
        %v2279 = vmax.f32 %v2247, 0.0
        %v2280 = vmax.f32 %v2248, 0.0
        %v2281 = vmax.f32 %v2249, 0.0
        %v2282 = vmax.f32 %v2250, 0.0
        %v2283 = vmax.f32 %v2251, 0.0
        %v2284 = vmax.f32 %v2252, 0.0
        %v2285 = vmax.f32 %v2253, 0.0
        %v2286 = vmax.f32 %v2254, 0.0
        %v2287 = vmax.f32 %v2255, 0.0
        %v2288 = vmax.f32 %v2256, 0.0
        %v2289 = vmax.f32 %v2257, 0.0
        %v2290 = vmax.f32 %v2258, 0.0
        %v2291 = vmax.f32 %v2259, 0.0
        %v2292 = vmax.f32 %v2260, 0.0
        %v2293 = vmax.f32 %v2261, 0.0
        %v2294 = vmax.f32 %v2262, 0.0
        %v2295 = vmax.f32 %v2263, 0.0
        %v2296 = vmax.f32 %v2264, 0.0
        %v2297 = vpack.c.bf16 %v2266, %v2265
        %v2298 = vpack.c.bf16 %v2268, %v2267
        %v2299 = vpack.c.bf16 %v2270, %v2269
        %v2300 = vpack.c.bf16 %v2272, %v2271
        %v2301 = vpack.c.bf16 %v2274, %v2273
        %v2302 = vpack.c.bf16 %v2276, %v2275
        %v2303 = vpack.c.bf16 %v2278, %v2277
        %v2304 = vpack.c.bf16 %v2280, %v2279
        %v2305 = vpack.c.bf16 %v2282, %v2281
        %v2306 = vpack.c.bf16 %v2284, %v2283
        %v2307 = vpack.c.bf16 %v2286, %v2285
        %v2308 = vpack.c.bf16 %v2288, %v2287
        %v2309 = vpack.c.bf16 %v2290, %v2289
        %v2310 = vpack.c.bf16 %v2292, %v2291
        %v2311 = vpack.c.bf16 %v2294, %v2293
        %v2312 = vpack.c.bf16 %v2296, %v2295
        %v2314 = vshrl.u32 %v2297, 16
        %v2316 = vrot.slane %v2314, 7
        %v2317 = vshll.u32 %v2297, 16
        %v2319 = vor.u32 %v2316, %v2317
        %v2321 = vshrl.u32 %v2298, 16
        %v2323 = vrot.slane %v2321, 7
        %v2324 = vshll.u32 %v2298, 16
        %v2326 = vor.u32 %v2323, %v2324
        %v2328 = vshrl.u32 %v2299, 16
        %v2330 = vrot.slane %v2328, 7
        %v2331 = vshll.u32 %v2299, 16
        %v2333 = vor.u32 %v2330, %v2331
        %v2335 = vshrl.u32 %v2300, 16
        %v2337 = vrot.slane %v2335, 7
        %v2338 = vshll.u32 %v2300, 16
        %v2340 = vor.u32 %v2337, %v2338
        %v2342 = vshrl.u32 %v2301, 16
        %v2344 = vrot.slane %v2342, 7
        %v2345 = vshll.u32 %v2301, 16
        %v2347 = vor.u32 %v2344, %v2345
        %v2349 = vshrl.u32 %v2302, 16
        %v2351 = vrot.slane %v2349, 7
        %v2352 = vshll.u32 %v2302, 16
        %v2354 = vor.u32 %v2351, %v2352
        %v2356 = vshrl.u32 %v2303, 16
        %v2358 = vrot.slane %v2356, 7
        %v2359 = vshll.u32 %v2303, 16
        %v2361 = vor.u32 %v2358, %v2359
        %v2363 = vshrl.u32 %v2304, 16
        %v2365 = vrot.slane %v2363, 7
        %v2366 = vshll.u32 %v2304, 16
        %v2368 = vor.u32 %v2365, %v2366
        %v2370 = vshrl.u32 %v2305, 16
        %v2372 = vrot.slane %v2370, 7
        %v2373 = vshll.u32 %v2305, 16
        %v2375 = vor.u32 %v2372, %v2373
        %v2377 = vshrl.u32 %v2306, 16
        %v2379 = vrot.slane %v2377, 7
        %v2380 = vshll.u32 %v2306, 16
        %v2382 = vor.u32 %v2379, %v2380
        %v2384 = vshrl.u32 %v2307, 16
        %v2386 = vrot.slane %v2384, 7
        %v2387 = vshll.u32 %v2307, 16
        %v2389 = vor.u32 %v2386, %v2387
        %v2391 = vshrl.u32 %v2308, 16
        %v2393 = vrot.slane %v2391, 7
        %v2394 = vshll.u32 %v2308, 16
        %v2396 = vor.u32 %v2393, %v2394
        %v2398 = vshrl.u32 %v2309, 16
        %v2400 = vrot.slane %v2398, 7
        %v2401 = vshll.u32 %v2309, 16
        %v2403 = vor.u32 %v2400, %v2401
        %v2405 = vshrl.u32 %v2310, 16
        %v2407 = vrot.slane %v2405, 7
        %v2408 = vshll.u32 %v2310, 16
        %v2410 = vor.u32 %v2407, %v2408
        %v2412 = vshrl.u32 %v2311, 16
        %v2414 = vrot.slane %v2412, 7
        %v2415 = vshll.u32 %v2311, 16
        %v2417 = vor.u32 %v2414, %v2415
        %v2419 = vshrl.u32 %v2312, 16
        %v2421 = vrot.slane %v2419, 7
        %v2422 = vshll.u32 %v2312, 16
        %v2424 = vor.u32 %v2421, %v2422
        %v2457 = vsel %vm644, 0, %v2319
        %v2458 = vsel %vm644, 0, %v2326
        %v2459 = vsel %vm644, 0, %v2333
        %v2460 = vsel %vm644, 0, %v2340
        %v2461 = vsel %vm644, 0, %v2347
        %v2462 = vsel %vm644, 0, %v2354
        %v2463 = vsel %vm644, 0, %v2361
        %v2464 = vsel %vm644, 0, %v2368
        %v2465 = vsel %vm644, 0, %v2375
        %v2466 = vsel %vm644, 0, %v2382
        %v2467 = vsel %vm644, 0, %v2389
        %v2468 = vsel %vm644, 0, %v2396
        %v2469 = vsel %vm644, 0, %v2403
        %v2470 = vsel %vm644, 0, %v2410
        %v2471 = vsel %vm644, 0, %v2417
        %v2472 = vsel %vm644, 0, %v2424
        %v2473 = vsel %vm644, %v2316, 0
        %v2474 = vsel %vm644, %v2323, 0
        %v2475 = vsel %vm644, %v2330, 0
        %v2476 = vsel %vm644, %v2337, 0
        %v2477 = vsel %vm644, %v2344, 0
        %v2478 = vsel %vm644, %v2351, 0
        %v2479 = vsel %vm644, %v2358, 0
        %v2480 = vsel %vm644, %v2365, 0
        %v2481 = vsel %vm644, %v2372, 0
        %v2482 = vsel %vm644, %v2379, 0
        %v2483 = vsel %vm644, %v2386, 0
        %v2484 = vsel %vm644, %v2393, 0
        %v2485 = vsel %vm644, %v2400, 0
        %v2486 = vsel %vm644, %v2407, 0
        %v2487 = vsel %vm644, %v2414, 0
        %v2488 = vsel %vm644, %v2421, 0
        %2489 = vst.msk [vmem:[#allocation2] sm:$0xff] %vm677, 0
        %2490 = vst.msk [vmem:[#allocation2 + $0x28] sm:$0xff] %vm677, %v2457
        %2491 = vst.msk [vmem:[#allocation2 + $0x50] sm:$0xff] %vm677, %v2458
        %2492 = vst.msk [vmem:[#allocation2 + $0x78] sm:$0xff] %vm677, %v2459
        %2493 = vst.msk [vmem:[#allocation2 + $0xa0] sm:$0xff] %vm677, %v2460
        %2494 = vst.msk [vmem:[#allocation2 + $0xc8] sm:$0xff] %vm677, %v2461
        %2495 = vst.msk [vmem:[#allocation2 + $0xf0] sm:$0xff] %vm677, %v2462
        %2496 = vst.msk [vmem:[#allocation2 + $0x118] sm:$0xff] %vm677, %v2463
        %2497 = vst.msk [vmem:[#allocation2 + $0x140] sm:$0xff] %vm677, %v2464
        %2498 = vst.msk [vmem:[#allocation2 + $0x168] sm:$0xff] %vm677, %v2465
        %2499 = vst.msk [vmem:[#allocation2 + $0x190] sm:$0xff] %vm677, %v2466
        %2500 = vst.msk [vmem:[#allocation2 + $0x1b8] sm:$0xff] %vm677, %v2467
        %2501 = vst.msk [vmem:[#allocation2 + $0x1e0] sm:$0xff] %vm677, %v2468
        %2502 = vst.msk [vmem:[#allocation2 + $0x208] sm:$0xff] %vm677, %v2469
        %2503 = vst.msk [vmem:[#allocation2 + $0x230] sm:$0xff] %vm677, %v2470
        %2504 = vst.msk [vmem:[#allocation2 + $0x258] sm:$0xff] %vm677, %v2471
        %v2506 = vshrl.u32 %v2457, 16
        %v2508 = vshll.u32 %v2457, 16
        %v2510 = vrot.slane %v2508, 1
        %v2511 = vor.u32 %v2506, %v2510
        %v2513 = vshll.u32 %v2473, 16
        %v2515 = vrot.slane %v2513, 1
        %v2516 = vsel %vm694, %v2511, %v2515
        %v2518 = vshrl.u32 %v2458, 16
        %v2520 = vshll.u32 %v2458, 16
        %v2522 = vrot.slane %v2520, 1
        %v2523 = vor.u32 %v2518, %v2522
        %v2525 = vshll.u32 %v2474, 16
        %v2527 = vrot.slane %v2525, 1
        %v2528 = vsel %vm694, %v2523, %v2527
        %v2530 = vshrl.u32 %v2459, 16
        %v2532 = vshll.u32 %v2459, 16
        %v2534 = vrot.slane %v2532, 1
        %v2535 = vor.u32 %v2530, %v2534
        %v2537 = vshll.u32 %v2475, 16
        %v2539 = vrot.slane %v2537, 1
        %v2540 = vsel %vm694, %v2535, %v2539
        %v2542 = vshrl.u32 %v2460, 16
        %v2544 = vshll.u32 %v2460, 16
        %v2546 = vrot.slane %v2544, 1
        %v2547 = vor.u32 %v2542, %v2546
        %v2549 = vshll.u32 %v2476, 16
        %v2551 = vrot.slane %v2549, 1
        %v2552 = vsel %vm694, %v2547, %v2551
        %v2554 = vshrl.u32 %v2461, 16
        %v2556 = vshll.u32 %v2461, 16
        %v2558 = vrot.slane %v2556, 1
        %v2559 = vor.u32 %v2554, %v2558
        %v2561 = vshll.u32 %v2477, 16
        %v2563 = vrot.slane %v2561, 1
        %v2564 = vsel %vm694, %v2559, %v2563
        %v2566 = vshrl.u32 %v2462, 16
        %v2568 = vshll.u32 %v2462, 16
        %v2570 = vrot.slane %v2568, 1
        %v2571 = vor.u32 %v2566, %v2570
        %v2573 = vshll.u32 %v2478, 16
        %v2575 = vrot.slane %v2573, 1
        %v2576 = vsel %vm694, %v2571, %v2575
        %v2578 = vshrl.u32 %v2463, 16
        %v2580 = vshll.u32 %v2463, 16
        %v2582 = vrot.slane %v2580, 1
        %v2583 = vor.u32 %v2578, %v2582
        %v2585 = vshll.u32 %v2479, 16
        %v2587 = vrot.slane %v2585, 1
        %v2588 = vsel %vm694, %v2583, %v2587
        %v2590 = vshrl.u32 %v2464, 16
        %v2592 = vshll.u32 %v2464, 16
        %v2594 = vrot.slane %v2592, 1
        %v2595 = vor.u32 %v2590, %v2594
        %v2597 = vshll.u32 %v2480, 16
        %v2599 = vrot.slane %v2597, 1
        %v2600 = vsel %vm694, %v2595, %v2599
        %v2602 = vshrl.u32 %v2465, 16
        %v2604 = vshll.u32 %v2465, 16
        %v2606 = vrot.slane %v2604, 1
        %v2607 = vor.u32 %v2602, %v2606
        %v2609 = vshll.u32 %v2481, 16
        %v2611 = vrot.slane %v2609, 1
        %v2612 = vsel %vm694, %v2607, %v2611
        %v2614 = vshrl.u32 %v2466, 16
        %v2616 = vshll.u32 %v2466, 16
        %v2618 = vrot.slane %v2616, 1
        %v2619 = vor.u32 %v2614, %v2618
        %v2621 = vshll.u32 %v2482, 16
        %v2623 = vrot.slane %v2621, 1
        %v2624 = vsel %vm694, %v2619, %v2623
        %v2626 = vshrl.u32 %v2467, 16
        %v2628 = vshll.u32 %v2467, 16
        %v2630 = vrot.slane %v2628, 1
        %v2631 = vor.u32 %v2626, %v2630
        %v2633 = vshll.u32 %v2483, 16
        %v2635 = vrot.slane %v2633, 1
        %v2636 = vsel %vm694, %v2631, %v2635
        %v2638 = vshrl.u32 %v2468, 16
        %v2640 = vshll.u32 %v2468, 16
        %v2642 = vrot.slane %v2640, 1
        %v2643 = vor.u32 %v2638, %v2642
        %v2645 = vshll.u32 %v2484, 16
        %v2647 = vrot.slane %v2645, 1
        %v2648 = vsel %vm694, %v2643, %v2647
        %v2650 = vshrl.u32 %v2469, 16
        %v2652 = vshll.u32 %v2469, 16
        %v2654 = vrot.slane %v2652, 1
        %v2655 = vor.u32 %v2650, %v2654
        %v2657 = vshll.u32 %v2485, 16
        %v2659 = vrot.slane %v2657, 1
        %v2660 = vsel %vm694, %v2655, %v2659
        %v2662 = vshrl.u32 %v2470, 16
        %v2664 = vshll.u32 %v2470, 16
        %v2666 = vrot.slane %v2664, 1
        %v2667 = vor.u32 %v2662, %v2666
        %v2669 = vshll.u32 %v2486, 16
        %v2671 = vrot.slane %v2669, 1
        %v2672 = vsel %vm694, %v2667, %v2671
        %v2674 = vshrl.u32 %v2471, 16
        %v2676 = vshll.u32 %v2471, 16
        %v2678 = vrot.slane %v2676, 1
        %v2679 = vor.u32 %v2674, %v2678
        %v2681 = vshll.u32 %v2487, 16
        %v2683 = vrot.slane %v2681, 1
        %v2684 = vsel %vm694, %v2679, %v2683
        %2685 = vrot.lane.b32.xlu0 %v2516, 64
        %v2686 = vpop.permute.xlu0 %2685
        %2687 = vrot.lane.b32.xlu0 %v2528, 64
        %v2688 = vpop.permute.xlu0 %2687
        %2689 = vrot.lane.b32.xlu0 %v2540, 64
        %v2690 = vpop.permute.xlu0 %2689
        %2691 = vrot.lane.b32.xlu0 %v2552, 64
        %v2692 = vpop.permute.xlu0 %2691
        %2693 = vrot.lane.b32.xlu0 %v2564, 64
        %v2694 = vpop.permute.xlu0 %2693
        %2695 = vrot.lane.b32.xlu0 %v2576, 64
        %v2696 = vpop.permute.xlu0 %2695
        %2697 = vrot.lane.b32.xlu0 %v2588, 64
        %v2698 = vpop.permute.xlu0 %2697
        %2699 = vrot.lane.b32.xlu0 %v2600, 64
        %v2700 = vpop.permute.xlu0 %2699
        %2701 = vrot.lane.b32.xlu0 %v2612, 64
        %v2702 = vpop.permute.xlu0 %2701
        %2703 = vrot.lane.b32.xlu0 %v2624, 64
        %v2704 = vpop.permute.xlu0 %2703
        %2705 = vrot.lane.b32.xlu0 %v2636, 64
        %v2706 = vpop.permute.xlu0 %2705
        %2707 = vrot.lane.b32.xlu0 %v2648, 64
        %v2708 = vpop.permute.xlu0 %2707
        %2709 = vrot.lane.b32.xlu0 %v2660, 64
        %v2710 = vpop.permute.xlu0 %2709
        %2711 = vrot.lane.b32.xlu0 %v2672, 64
        %v2712 = vpop.permute.xlu0 %2711
        %2713 = vrot.lane.b32.xlu0 %v2684, 64
        %v2714 = vpop.permute.xlu0 %2713
        %2730 = vst.msk [vmem:[#allocation2] sm:$0xff] %vm931, %v884
        %2731 = vst.msk [vmem:[#allocation2 + $0x28] sm:$0xff] %vm931, %v2686
        %2732 = vst.msk [vmem:[#allocation2 + $0x50] sm:$0xff] %vm931, %v2688
        %2733 = vst.msk [vmem:[#allocation2 + $0x78] sm:$0xff] %vm931, %v2690
        %2734 = vst.msk [vmem:[#allocation2 + $0xa0] sm:$0xff] %vm931, %v2692
        %2735 = vst.msk [vmem:[#allocation2 + $0xc8] sm:$0xff] %vm931, %v2694
        %2736 = vst.msk [vmem:[#allocation2 + $0xf0] sm:$0xff] %vm931, %v2696
        %2737 = vst.msk [vmem:[#allocation2 + $0x118] sm:$0xff] %vm931, %v2698
        %2738 = vst.msk [vmem:[#allocation2 + $0x140] sm:$0xff] %vm931, %v2700
        %2739 = vst.msk [vmem:[#allocation2 + $0x168] sm:$0xff] %vm931, %v2702
        %2740 = vst.msk [vmem:[#allocation2 + $0x190] sm:$0xff] %vm931, %v2704
        %2741 = vst.msk [vmem:[#allocation2 + $0x1b8] sm:$0xff] %vm931, %v2706
        %2742 = vst.msk [vmem:[#allocation2 + $0x1e0] sm:$0xff] %vm931, %v2708
        %2743 = vst.msk [vmem:[#allocation2 + $0x208] sm:$0xff] %vm931, %v2710
        %2744 = vst.msk [vmem:[#allocation2 + $0x230] sm:$0xff] %vm931, %v2712
        %2745 = vst.msk [vmem:[#allocation2 + $0x258] sm:$0xff] %vm931, %v2714
        %v2776 = vrot.slane %v2457, 1
        %v2777 = vrot.slane %v2473, 1
        %v2778 = vsel %vm979, %v2776, %v2777
        %v2779 = vrot.slane %v2458, 1
        %v2780 = vrot.slane %v2474, 1
        %v2781 = vsel %vm979, %v2779, %v2780
        %v2782 = vrot.slane %v2459, 1
        %v2783 = vrot.slane %v2475, 1
        %v2784 = vsel %vm979, %v2782, %v2783
        %v2785 = vrot.slane %v2460, 1
        %v2786 = vrot.slane %v2476, 1
        %v2787 = vsel %vm979, %v2785, %v2786
        %v2788 = vrot.slane %v2461, 1
        %v2789 = vrot.slane %v2477, 1
        %v2790 = vsel %vm979, %v2788, %v2789
        %v2791 = vrot.slane %v2462, 1
        %v2792 = vrot.slane %v2478, 1
        %v2793 = vsel %vm979, %v2791, %v2792
        %v2794 = vrot.slane %v2463, 1
        %v2795 = vrot.slane %v2479, 1
        %v2796 = vsel %vm979, %v2794, %v2795
        %v2797 = vrot.slane %v2464, 1
        %v2798 = vrot.slane %v2480, 1
        %v2799 = vsel %vm979, %v2797, %v2798
        %v2800 = vrot.slane %v2465, 1
        %v2801 = vrot.slane %v2481, 1
        %v2802 = vsel %vm979, %v2800, %v2801
        %v2803 = vrot.slane %v2466, 1
        %v2804 = vrot.slane %v2482, 1
        %v2805 = vsel %vm979, %v2803, %v2804
        %v2806 = vrot.slane %v2467, 1
        %v2807 = vrot.slane %v2483, 1
        %v2808 = vsel %vm979, %v2806, %v2807
        %v2809 = vrot.slane %v2468, 1
        %v2810 = vrot.slane %v2484, 1
        %v2811 = vsel %vm979, %v2809, %v2810
        %v2812 = vrot.slane %v2469, 1
        %v2813 = vrot.slane %v2485, 1
        %v2814 = vsel %vm979, %v2812, %v2813
        %v2815 = vrot.slane %v2470, 1
        %v2816 = vrot.slane %v2486, 1
        %v2817 = vsel %vm979, %v2815, %v2816
        %v2818 = vrot.slane %v2471, 1
        %v2819 = vrot.slane %v2487, 1
        %v2820 = vsel %vm979, %v2818, %v2819
        %2836 = vst.msk [vmem:[#allocation2 + $0x8] sm:$0xff] %vm677, %v981
        %2837 = vst.msk [vmem:[#allocation2 + $0x30] sm:$0xff] %vm677, %v2778
        %2838 = vst.msk [vmem:[#allocation2 + $0x58] sm:$0xff] %vm677, %v2781
        %2839 = vst.msk [vmem:[#allocation2 + $0x80] sm:$0xff] %vm677, %v2784
        %2840 = vst.msk [vmem:[#allocation2 + $0xa8] sm:$0xff] %vm677, %v2787
        %2841 = vst.msk [vmem:[#allocation2 + $0xd0] sm:$0xff] %vm677, %v2790
        %2842 = vst.msk [vmem:[#allocation2 + $0xf8] sm:$0xff] %vm677, %v2793
        %2843 = vst.msk [vmem:[#allocation2 + $0x120] sm:$0xff] %vm677, %v2796
        %2844 = vst.msk [vmem:[#allocation2 + $0x148] sm:$0xff] %vm677, %v2799
        %2845 = vst.msk [vmem:[#allocation2 + $0x170] sm:$0xff] %vm677, %v2802
        %2846 = vst.msk [vmem:[#allocation2 + $0x198] sm:$0xff] %vm677, %v2805
        %2847 = vst.msk [vmem:[#allocation2 + $0x1c0] sm:$0xff] %vm677, %v2808
        %2848 = vst.msk [vmem:[#allocation2 + $0x1e8] sm:$0xff] %vm677, %v2811
        %2849 = vst.msk [vmem:[#allocation2 + $0x210] sm:$0xff] %vm677, %v2814
        %2850 = vst.msk [vmem:[#allocation2 + $0x238] sm:$0xff] %vm677, %v2817
        %2851 = vst.msk [vmem:[#allocation2 + $0x260] sm:$0xff] %vm677, %v2820
        %2853 = vrot.lane.b32.xlu0 %v2457, 64
        %v2854 = vpop.permute.xlu0 %2853
        %2855 = vrot.lane.b32.xlu0 %v2458, 64
        %v2856 = vpop.permute.xlu0 %2855
        %2857 = vrot.lane.b32.xlu0 %v2459, 64
        %v2858 = vpop.permute.xlu0 %2857
        %2859 = vrot.lane.b32.xlu0 %v2460, 64
        %v2860 = vpop.permute.xlu0 %2859
        %2861 = vrot.lane.b32.xlu0 %v2461, 64
        %v2862 = vpop.permute.xlu0 %2861
        %2863 = vrot.lane.b32.xlu0 %v2462, 64
        %v2864 = vpop.permute.xlu0 %2863
        %2865 = vrot.lane.b32.xlu0 %v2463, 64
        %v2866 = vpop.permute.xlu0 %2865
        %2867 = vrot.lane.b32.xlu0 %v2464, 64
        %v2868 = vpop.permute.xlu0 %2867
        %2869 = vrot.lane.b32.xlu0 %v2465, 64
        %v2870 = vpop.permute.xlu0 %2869
        %2871 = vrot.lane.b32.xlu0 %v2466, 64
        %v2872 = vpop.permute.xlu0 %2871
        %2873 = vrot.lane.b32.xlu0 %v2467, 64
        %v2874 = vpop.permute.xlu0 %2873
        %2875 = vrot.lane.b32.xlu0 %v2468, 64
        %v2876 = vpop.permute.xlu0 %2875
        %2877 = vrot.lane.b32.xlu0 %v2469, 64
        %v2878 = vpop.permute.xlu0 %2877
        %2879 = vrot.lane.b32.xlu0 %v2470, 64
        %v2880 = vpop.permute.xlu0 %2879
        %2881 = vrot.lane.b32.xlu0 %v2471, 64
        %v2882 = vpop.permute.xlu0 %2881
        %2883 = vrot.lane.b32.xlu0 %v2472, 64
        %v2884 = vpop.permute.xlu0 %2883
        %2901 = vst.msk [vmem:[#allocation2 + $0x8] sm:$0xff] %vm931, %v2854
        %2902 = vst.msk [vmem:[#allocation2 + $0x30] sm:$0xff] %vm931, %v2856
        %2903 = vst.msk [vmem:[#allocation2 + $0x58] sm:$0xff] %vm931, %v2858
        %2904 = vst.msk [vmem:[#allocation2 + $0x80] sm:$0xff] %vm931, %v2860
        %2905 = vst.msk [vmem:[#allocation2 + $0xa8] sm:$0xff] %vm931, %v2862
        %2906 = vst.msk [vmem:[#allocation2 + $0xd0] sm:$0xff] %vm931, %v2864
        %2907 = vst.msk [vmem:[#allocation2 + $0xf8] sm:$0xff] %vm931, %v2866
        %2908 = vst.msk [vmem:[#allocation2 + $0x120] sm:$0xff] %vm931, %v2868
        %2909 = vst.msk [vmem:[#allocation2 + $0x148] sm:$0xff] %vm931, %v2870
        %2910 = vst.msk [vmem:[#allocation2 + $0x170] sm:$0xff] %vm931, %v2872
        %2911 = vst.msk [vmem:[#allocation2 + $0x198] sm:$0xff] %vm931, %v2874
        %2912 = vst.msk [vmem:[#allocation2 + $0x1c0] sm:$0xff] %vm931, %v2876
        %2913 = vst.msk [vmem:[#allocation2 + $0x1e8] sm:$0xff] %vm931, %v2878
        %2914 = vst.msk [vmem:[#allocation2 + $0x210] sm:$0xff] %vm931, %v2880
        %2915 = vst.msk [vmem:[#allocation2 + $0x238] sm:$0xff] %vm931, %v2882
        %2916 = vst.msk [vmem:[#allocation2 + $0x260] sm:$0xff] %vm931, %v2884
        %v2918 = vshrl.u32 %v2472, 16
        %v2920 = vshll.u32 %v2472, 16
        %v2922 = vrot.slane %v2920, 1
        %v2923 = vor.u32 %v2918, %v2922
        %v2925 = vshll.u32 %v2488, 16
        %v2927 = vrot.slane %v2925, 1
        %v2928 = vsel %vm694, %v2923, %v2927
        %2945 = vst.msk [vmem:[#allocation2 + $0x10] sm:$0xff] %vm677, %v2516
        %2946 = vst.msk [vmem:[#allocation2 + $0x38] sm:$0xff] %vm677, %v2528
        %2947 = vst.msk [vmem:[#allocation2 + $0x60] sm:$0xff] %vm677, %v2540
        %2948 = vst.msk [vmem:[#allocation2 + $0x88] sm:$0xff] %vm677, %v2552
        %2949 = vst.msk [vmem:[#allocation2 + $0xb0] sm:$0xff] %vm677, %v2564
        %2950 = vst.msk [vmem:[#allocation2 + $0xd8] sm:$0xff] %vm677, %v2576
        %2951 = vst.msk [vmem:[#allocation2 + $0x100] sm:$0xff] %vm677, %v2588
        %2952 = vst.msk [vmem:[#allocation2 + $0x128] sm:$0xff] %vm677, %v2600
        %2953 = vst.msk [vmem:[#allocation2 + $0x150] sm:$0xff] %vm677, %v2612
        %2954 = vst.msk [vmem:[#allocation2 + $0x178] sm:$0xff] %vm677, %v2624
        %2955 = vst.msk [vmem:[#allocation2 + $0x1a0] sm:$0xff] %vm677, %v2636
        %2956 = vst.msk [vmem:[#allocation2 + $0x1c8] sm:$0xff] %vm677, %v2648
        %2957 = vst.msk [vmem:[#allocation2 + $0x1f0] sm:$0xff] %vm677, %v2660
        %2958 = vst.msk [vmem:[#allocation2 + $0x218] sm:$0xff] %vm677, %v2672
        %2959 = vst.msk [vmem:[#allocation2 + $0x240] sm:$0xff] %vm677, %v2684
        %2960 = vst.msk [vmem:[#allocation2 + $0x268] sm:$0xff] %vm677, %v2928
        %v2962 = vrot.slane %v2472, 1
        %v2963 = vrot.slane %v2488, 1
        %v2964 = vsel %vm979, %v2962, %v2963
        %2965 = vrot.lane.b32.xlu0 %v2778, 64
        %v2966 = vpop.permute.xlu0 %2965
        %2967 = vrot.lane.b32.xlu0 %v2781, 64
        %v2968 = vpop.permute.xlu0 %2967
        %2969 = vrot.lane.b32.xlu0 %v2784, 64
        %v2970 = vpop.permute.xlu0 %2969
        %2971 = vrot.lane.b32.xlu0 %v2787, 64
        %v2972 = vpop.permute.xlu0 %2971
        %2973 = vrot.lane.b32.xlu0 %v2790, 64
        %v2974 = vpop.permute.xlu0 %2973
        %2975 = vrot.lane.b32.xlu0 %v2793, 64
        %v2976 = vpop.permute.xlu0 %2975
        %2977 = vrot.lane.b32.xlu0 %v2796, 64
        %v2978 = vpop.permute.xlu0 %2977
        %2979 = vrot.lane.b32.xlu0 %v2799, 64
        %v2980 = vpop.permute.xlu0 %2979
        %2981 = vrot.lane.b32.xlu0 %v2802, 64
        %v2982 = vpop.permute.xlu0 %2981
        %2983 = vrot.lane.b32.xlu0 %v2805, 64
        %v2984 = vpop.permute.xlu0 %2983
        %2985 = vrot.lane.b32.xlu0 %v2808, 64
        %v2986 = vpop.permute.xlu0 %2985
        %2987 = vrot.lane.b32.xlu0 %v2811, 64
        %v2988 = vpop.permute.xlu0 %2987
        %2989 = vrot.lane.b32.xlu0 %v2814, 64
        %v2990 = vpop.permute.xlu0 %2989
        %2991 = vrot.lane.b32.xlu0 %v2817, 64
        %v2992 = vpop.permute.xlu0 %2991
        %2993 = vrot.lane.b32.xlu0 %v2820, 64
        %v2994 = vpop.permute.xlu0 %2993
        %2995 = vrot.lane.b32.xlu0 %v2964, 64
        %v2996 = vpop.permute.xlu0 %2995
        %3013 = vst.msk [vmem:[#allocation2 + $0x10] sm:$0xff] %vm931, %v2966
        %3014 = vst.msk [vmem:[#allocation2 + $0x38] sm:$0xff] %vm931, %v2968
        %3015 = vst.msk [vmem:[#allocation2 + $0x60] sm:$0xff] %vm931, %v2970
        %3016 = vst.msk [vmem:[#allocation2 + $0x88] sm:$0xff] %vm931, %v2972
        %3017 = vst.msk [vmem:[#allocation2 + $0xb0] sm:$0xff] %vm931, %v2974
        %3018 = vst.msk [vmem:[#allocation2 + $0xd8] sm:$0xff] %vm931, %v2976
        %3019 = vst.msk [vmem:[#allocation2 + $0x100] sm:$0xff] %vm931, %v2978
        %3020 = vst.msk [vmem:[#allocation2 + $0x128] sm:$0xff] %vm931, %v2980
        %3021 = vst.msk [vmem:[#allocation2 + $0x150] sm:$0xff] %vm931, %v2982
        %3022 = vst.msk [vmem:[#allocation2 + $0x178] sm:$0xff] %vm931, %v2984
        %3023 = vst.msk [vmem:[#allocation2 + $0x1a0] sm:$0xff] %vm931, %v2986
        %3024 = vst.msk [vmem:[#allocation2 + $0x1c8] sm:$0xff] %vm931, %v2988
        %3025 = vst.msk [vmem:[#allocation2 + $0x1f0] sm:$0xff] %vm931, %v2990
        %3026 = vst.msk [vmem:[#allocation2 + $0x218] sm:$0xff] %vm931, %v2992
        %3027 = vst.msk [vmem:[#allocation2 + $0x240] sm:$0xff] %vm931, %v2994
        %3028 = vst.msk [vmem:[#allocation2 + $0x268] sm:$0xff] %vm931, %v2996
        %3029 = vst.msk [vmem:[#allocation2 + $0x18] sm:$0xff] %vm677, %v2458
        %3030 = vst.msk [vmem:[#allocation2 + $0x40] sm:$0xff] %vm677, %v2459
        %3031 = vst.msk [vmem:[#allocation2 + $0x68] sm:$0xff] %vm677, %v2460
        %3032 = vst.msk [vmem:[#allocation2 + $0x90] sm:$0xff] %vm677, %v2461
        %3033 = vst.msk [vmem:[#allocation2 + $0xb8] sm:$0xff] %vm677, %v2462
        %3034 = vst.msk [vmem:[#allocation2 + $0xe0] sm:$0xff] %vm677, %v2463
        %3035 = vst.msk [vmem:[#allocation2 + $0x108] sm:$0xff] %vm677, %v2464
        %3036 = vst.msk [vmem:[#allocation2 + $0x130] sm:$0xff] %vm677, %v2465
        %3037 = vst.msk [vmem:[#allocation2 + $0x158] sm:$0xff] %vm677, %v2466
        %3038 = vst.msk [vmem:[#allocation2 + $0x180] sm:$0xff] %vm677, %v2467
        %3039 = vst.msk [vmem:[#allocation2 + $0x1a8] sm:$0xff] %vm677, %v2468
        %3040 = vst.msk [vmem:[#allocation2 + $0x1d0] sm:$0xff] %vm677, %v2469
        %3041 = vst.msk [vmem:[#allocation2 + $0x1f8] sm:$0xff] %vm677, %v2470
        %3042 = vst.msk [vmem:[#allocation2 + $0x220] sm:$0xff] %vm677, %v2471
        %3043 = vst.msk [vmem:[#allocation2 + $0x248] sm:$0xff] %vm677, %v2472
        %3044 = vst.msk [vmem:[#allocation2 + $0x270] sm:$0xff] %vm677, 0
        %3045 = vrot.lane.b32.xlu0 %v2928, 64
        %v3046 = vpop.permute.xlu0 %3045
        %3048 = vst.msk [vmem:[#allocation2 + $0x18] sm:$0xff] %vm931, %v2688
        %3049 = vst.msk [vmem:[#allocation2 + $0x40] sm:$0xff] %vm931, %v2690
        %3050 = vst.msk [vmem:[#allocation2 + $0x68] sm:$0xff] %vm931, %v2692
        %3051 = vst.msk [vmem:[#allocation2 + $0x90] sm:$0xff] %vm931, %v2694
        %3052 = vst.msk [vmem:[#allocation2 + $0xb8] sm:$0xff] %vm931, %v2696
        %3053 = vst.msk [vmem:[#allocation2 + $0xe0] sm:$0xff] %vm931, %v2698
        %3054 = vst.msk [vmem:[#allocation2 + $0x108] sm:$0xff] %vm931, %v2700
        %3055 = vst.msk [vmem:[#allocation2 + $0x130] sm:$0xff] %vm931, %v2702
        %3056 = vst.msk [vmem:[#allocation2 + $0x158] sm:$0xff] %vm931, %v2704
        %3057 = vst.msk [vmem:[#allocation2 + $0x180] sm:$0xff] %vm931, %v2706
        %3058 = vst.msk [vmem:[#allocation2 + $0x1a8] sm:$0xff] %vm931, %v2708
        %3059 = vst.msk [vmem:[#allocation2 + $0x1d0] sm:$0xff] %vm931, %v2710
        %3060 = vst.msk [vmem:[#allocation2 + $0x1f8] sm:$0xff] %vm931, %v2712
        %3061 = vst.msk [vmem:[#allocation2 + $0x220] sm:$0xff] %vm931, %v2714
        %3062 = vst.msk [vmem:[#allocation2 + $0x248] sm:$0xff] %vm931, %v3046
        %3063 = vst.msk [vmem:[#allocation2 + $0x270] sm:$0xff] %vm931, %v884
        %3065 = vst.msk [vmem:[#allocation2 + $0x20] sm:$0xff] %vm677, %v2781
        %3066 = vst.msk [vmem:[#allocation2 + $0x48] sm:$0xff] %vm677, %v2784
        %3067 = vst.msk [vmem:[#allocation2 + $0x70] sm:$0xff] %vm677, %v2787
        %3068 = vst.msk [vmem:[#allocation2 + $0x98] sm:$0xff] %vm677, %v2790
        %3069 = vst.msk [vmem:[#allocation2 + $0xc0] sm:$0xff] %vm677, %v2793
        %3070 = vst.msk [vmem:[#allocation2 + $0xe8] sm:$0xff] %vm677, %v2796
        %3071 = vst.msk [vmem:[#allocation2 + $0x110] sm:$0xff] %vm677, %v2799
        %3072 = vst.msk [vmem:[#allocation2 + $0x138] sm:$0xff] %vm677, %v2802
        %3073 = vst.msk [vmem:[#allocation2 + $0x160] sm:$0xff] %vm677, %v2805
        %3074 = vst.msk [vmem:[#allocation2 + $0x188] sm:$0xff] %vm677, %v2808
        %3075 = vst.msk [vmem:[#allocation2 + $0x1b0] sm:$0xff] %vm677, %v2811
        %3076 = vst.msk [vmem:[#allocation2 + $0x1d8] sm:$0xff] %vm677, %v2814
        %3077 = vst.msk [vmem:[#allocation2 + $0x200] sm:$0xff] %vm677, %v2817
        %3078 = vst.msk [vmem:[#allocation2 + $0x228] sm:$0xff] %vm677, %v2820
        %3079 = vst.msk [vmem:[#allocation2 + $0x250] sm:$0xff] %vm677, %v2964
        %3080 = vst.msk [vmem:[#allocation2 + $0x278] sm:$0xff] %vm677, %v981
        %v3081 = vld [vmem:[#allocation2] sm:$0xff]
        %v3082 = vld [vmem:[#allocation2 + $0x8] sm:$0xff]
        %v3083 = vld [vmem:[#allocation2 + $0x10] sm:$0xff]
        %v3084 = vld [vmem:[#allocation2 + $0x18] sm:$0xff]
        %v3085 = vld [vmem:[#allocation2 + $0x20] sm:$0xff]
        %v3086 = vld [vmem:[#allocation2 + $0x28] sm:$0xff]
        %v3087 = vld [vmem:[#allocation2 + $0x30] sm:$0xff]
        %v3088 = vld [vmem:[#allocation2 + $0x38] sm:$0xff]
        %v3089 = vld [vmem:[#allocation2 + $0x40] sm:$0xff]
        %v3090 = vld [vmem:[#allocation2 + $0x48] sm:$0xff]
        %v3091 = vld [vmem:[#allocation2 + $0x50] sm:$0xff]
        %v3092 = vld [vmem:[#allocation2 + $0x58] sm:$0xff]
        %v3093 = vld [vmem:[#allocation2 + $0x60] sm:$0xff]
        %v3094 = vld [vmem:[#allocation2 + $0x68] sm:$0xff]
        %v3095 = vld [vmem:[#allocation2 + $0x70] sm:$0xff]
        %v3096 = vld [vmem:[#allocation2 + $0x78] sm:$0xff]
        %v3097 = vld [vmem:[#allocation2 + $0x80] sm:$0xff]
        %v3098 = vld [vmem:[#allocation2 + $0x88] sm:$0xff]
        %v3099 = vld [vmem:[#allocation2 + $0x90] sm:$0xff]
        %v3100 = vld [vmem:[#allocation2 + $0x98] sm:$0xff]
        %v3101 = vld [vmem:[#allocation2 + $0xa0] sm:$0xff]
        %v3102 = vld [vmem:[#allocation2 + $0xa8] sm:$0xff]
        %v3103 = vld [vmem:[#allocation2 + $0xb0] sm:$0xff]
        %v3104 = vld [vmem:[#allocation2 + $0xb8] sm:$0xff]
        %v3105 = vld [vmem:[#allocation2 + $0xc0] sm:$0xff]
        %v3106 = vld [vmem:[#allocation2 + $0xc8] sm:$0xff]
        %v3107 = vld [vmem:[#allocation2 + $0xd0] sm:$0xff]
        %v3108 = vld [vmem:[#allocation2 + $0xd8] sm:$0xff]
        %v3109 = vld [vmem:[#allocation2 + $0xe0] sm:$0xff]
        %v3110 = vld [vmem:[#allocation2 + $0xe8] sm:$0xff]
        %v3111 = vld [vmem:[#allocation2 + $0xf0] sm:$0xff]
        %v3112 = vld [vmem:[#allocation2 + $0xf8] sm:$0xff]
        %v3113 = vld [vmem:[#allocation2 + $0x100] sm:$0xff]
        %v3114 = vld [vmem:[#allocation2 + $0x108] sm:$0xff]
        %v3115 = vld [vmem:[#allocation2 + $0x110] sm:$0xff]
        %v3116 = vld [vmem:[#allocation2 + $0x118] sm:$0xff]
        %v3117 = vld [vmem:[#allocation2 + $0x120] sm:$0xff]
        %v3118 = vld [vmem:[#allocation2 + $0x128] sm:$0xff]
        %v3119 = vld [vmem:[#allocation2 + $0x130] sm:$0xff]
        %v3120 = vld [vmem:[#allocation2 + $0x138] sm:$0xff]
        %v3121 = vld [vmem:[#allocation2 + $0x140] sm:$0xff]
        %v3122 = vld [vmem:[#allocation2 + $0x148] sm:$0xff]
        %v3123 = vld [vmem:[#allocation2 + $0x150] sm:$0xff]
        %v3124 = vld [vmem:[#allocation2 + $0x158] sm:$0xff]
        %v3125 = vld [vmem:[#allocation2 + $0x160] sm:$0xff]
        %v3126 = vld [vmem:[#allocation2 + $0x168] sm:$0xff]
        %v3127 = vld [vmem:[#allocation2 + $0x170] sm:$0xff]
        %v3128 = vld [vmem:[#allocation2 + $0x178] sm:$0xff]
        %v3129 = vld [vmem:[#allocation2 + $0x180] sm:$0xff]
        %v3130 = vld [vmem:[#allocation2 + $0x188] sm:$0xff]
        %v3131 = vld [vmem:[#allocation2 + $0x190] sm:$0xff]
        %v3132 = vld [vmem:[#allocation2 + $0x198] sm:$0xff]
        %v3133 = vld [vmem:[#allocation2 + $0x1a0] sm:$0xff]
        %v3134 = vld [vmem:[#allocation2 + $0x1a8] sm:$0xff]
        %v3135 = vld [vmem:[#allocation2 + $0x1b0] sm:$0xff]
        %v3136 = vld [vmem:[#allocation2 + $0x1b8] sm:$0xff]
        %v3137 = vld [vmem:[#allocation2 + $0x1c0] sm:$0xff]
        %v3138 = vld [vmem:[#allocation2 + $0x1c8] sm:$0xff]
        %v3139 = vld [vmem:[#allocation2 + $0x1d0] sm:$0xff]
        %v3140 = vld [vmem:[#allocation2 + $0x1d8] sm:$0xff]
        %v3141 = vld [vmem:[#allocation2 + $0x1e0] sm:$0xff]
        %v3142 = vld [vmem:[#allocation2 + $0x1e8] sm:$0xff]
        %v3143 = vld [vmem:[#allocation2 + $0x1f0] sm:$0xff]
        %v3144 = vld [vmem:[#allocation2 + $0x1f8] sm:$0xff]
        %v3145 = vld [vmem:[#allocation2 + $0x200] sm:$0xff]
        %v3146 = vld [vmem:[#allocation2 + $0x208] sm:$0xff]
        %v3147 = vld [vmem:[#allocation2 + $0x210] sm:$0xff]
        %v3148 = vld [vmem:[#allocation2 + $0x218] sm:$0xff]
        %v3149 = vld [vmem:[#allocation2 + $0x220] sm:$0xff]
        %v3150 = vld [vmem:[#allocation2 + $0x228] sm:$0xff]
        %v3151 = vld [vmem:[#allocation2 + $0x230] sm:$0xff]
        %v3152 = vld [vmem:[#allocation2 + $0x238] sm:$0xff]
        %v3153 = vld [vmem:[#allocation2 + $0x240] sm:$0xff]
        %v3154 = vld [vmem:[#allocation2 + $0x248] sm:$0xff]
        %v3155 = vld [vmem:[#allocation2 + $0x250] sm:$0xff]
        %v3156 = vld [vmem:[#allocation2 + $0x258] sm:$0xff]
        %v3157 = vld [vmem:[#allocation2 + $0x260] sm:$0xff]
        %v3158 = vld [vmem:[#allocation2 + $0x268] sm:$0xff]
        %v3159 = vld [vmem:[#allocation2 + $0x270] sm:$0xff]
        %v3160 = vld [vmem:[#allocation2 + $0x278] sm:$0xff]
        %v3161 = vld [vmem:[%s4] sm:$0xf]
        %v3162 = vld [vmem:[%s4 + $0x4] sm:$0xf]
        %v3163 = vld [vmem:[%s4 + $0x8] sm:$0xf]
        %v3164 = vld [vmem:[%s4 + $0xc] sm:$0xf]
        %v3165 = vld [vmem:[%s4 + $0x10] sm:$0xf]
        %v3166 = vld [vmem:[%s4 + $0x14] sm:$0xf]
        %v3167 = vld [vmem:[%s4 + $0x18] sm:$0xf]
        %v3168 = vld [vmem:[%s4 + $0x1c] sm:$0xf]
        %v3169 = vld [vmem:[%s4 + $0x20] sm:$0xf]
        %v3170 = vld [vmem:[%s4 + $0x24] sm:$0xf]
        %v3171 = vld [vmem:[%s4 + $0x28] sm:$0xf]
        %v3172 = vld [vmem:[%s4 + $0x2c] sm:$0xf]
        %v3173 = vld [vmem:[%s4 + $0x30] sm:$0xf]
        %v3174 = vld [vmem:[%s4 + $0x34] sm:$0xf]
        %v3175 = vld [vmem:[%s4 + $0x38] sm:$0xf]
        %v3176 = vld [vmem:[%s4 + $0x3c] sm:$0xf]
        %v3177 = vld [vmem:[%s4 + $0x40] sm:$0xf]
        %v3178 = vld [vmem:[%s4 + $0x44] sm:$0xf]
        %v3179 = vld [vmem:[%s4 + $0x48] sm:$0xf]
        %v3180 = vld [vmem:[%s4 + $0x4c] sm:$0xf]
        %v3181 = vld [vmem:[%s4 + $0x50] sm:$0xf]
        %v3182 = vld [vmem:[%s4 + $0x54] sm:$0xf]
        %v3183 = vld [vmem:[%s4 + $0x58] sm:$0xf]
        %v3184 = vld [vmem:[%s4 + $0x5c] sm:$0xf]
        %v3185 = vld [vmem:[%s4 + $0x60] sm:$0xf]
        %v3186 = vld [vmem:[%s4 + $0x64] sm:$0xf]
        %v3187 = vld [vmem:[%s4 + $0x68] sm:$0xf]
        %v3188 = vld [vmem:[%s4 + $0x6c] sm:$0xf]
        %v3189 = vld [vmem:[%s4 + $0x70] sm:$0xf]
        %v3190 = vld [vmem:[%s4 + $0x74] sm:$0xf]
        %v3191 = vld [vmem:[%s4 + $0x78] sm:$0xf]
        %v3192 = vld [vmem:[%s4 + $0x7c] sm:$0xf]
        %v3193 = vld [vmem:[%s4 + $0x80] sm:$0xf]
        %v3194 = vld [vmem:[%s4 + $0x84] sm:$0xf]
        %v3195 = vld [vmem:[%s4 + $0x88] sm:$0xf]
        %v3196 = vld [vmem:[%s4 + $0x8c] sm:$0xf]
        %v3197 = vld [vmem:[%s4 + $0x90] sm:$0xf]
        %v3198 = vld [vmem:[%s4 + $0x94] sm:$0xf]
        %v3199 = vld [vmem:[%s4 + $0x98] sm:$0xf]
        %v3200 = vld [vmem:[%s4 + $0x9c] sm:$0xf]
        %v3201 = vld [vmem:[%s4 + $0xa0] sm:$0xf]
        %v3202 = vld [vmem:[%s4 + $0xa4] sm:$0xf]
        %v3203 = vld [vmem:[%s4 + $0xa8] sm:$0xf]
        %v3204 = vld [vmem:[%s4 + $0xac] sm:$0xf]
        %v3205 = vld [vmem:[%s4 + $0xb0] sm:$0xf]
        %v3206 = vld [vmem:[%s4 + $0xb4] sm:$0xf]
        %v3207 = vld [vmem:[%s4 + $0xb8] sm:$0xf]
        %v3208 = vld [vmem:[%s4 + $0xbc] sm:$0xf]
        %v3209 = vld [vmem:[%s4 + $0xc0] sm:$0xf]
        %v3210 = vld [vmem:[%s4 + $0xc4] sm:$0xf]
        %v3211 = vld [vmem:[%s4 + $0xc8] sm:$0xf]
        %v3212 = vld [vmem:[%s4 + $0xcc] sm:$0xf]
        %v3213 = vld [vmem:[%s4 + $0xd0] sm:$0xf]
        %v3214 = vld [vmem:[%s4 + $0xd4] sm:$0xf]
        %v3215 = vld [vmem:[%s4 + $0xd8] sm:$0xf]
        %v3216 = vld [vmem:[%s4 + $0xdc] sm:$0xf]
        %v3217 = vld [vmem:[%s4 + $0xe0] sm:$0xf]
        %v3218 = vld [vmem:[%s4 + $0xe4] sm:$0xf]
        %v3219 = vld [vmem:[%s4 + $0xe8] sm:$0xf]
        %v3220 = vld [vmem:[%s4 + $0xec] sm:$0xf]
        %v3221 = vld [vmem:[%s4 + $0xf0] sm:$0xf]
        %v3222 = vld [vmem:[%s4 + $0xf4] sm:$0xf]
        %v3223 = vld [vmem:[%s4 + $0xf8] sm:$0xf]
        %v3224 = vld [vmem:[%s4 + $0xfc] sm:$0xf]
        %v3225 = vld [vmem:[%s4 + $0x100] sm:$0xf]
        %v3226 = vld [vmem:[%s4 + $0x104] sm:$0xf]
        %v3227 = vld [vmem:[%s4 + $0x108] sm:$0xf]
        %v3228 = vld [vmem:[%s4 + $0x10c] sm:$0xf]
        %v3229 = vld [vmem:[%s4 + $0x110] sm:$0xf]
        %v3230 = vld [vmem:[%s4 + $0x114] sm:$0xf]
        %v3231 = vld [vmem:[%s4 + $0x118] sm:$0xf]
        %v3232 = vld [vmem:[%s4 + $0x11c] sm:$0xf]
        %v3305 = vunpack.c.l.b16 %v3161
        %v3306 = vunpack.c.l.b16 %v3162
        %v3307 = vunpack.c.l.b16 %v3163
        %v3308 = vunpack.c.l.b16 %v3164
        %v3309 = vunpack.c.l.b16 %v3165
        %v3310 = vunpack.c.l.b16 %v3166
        %v3311 = vunpack.c.l.b16 %v3167
        %v3312 = vunpack.c.l.b16 %v3168
        %v3313 = vunpack.c.l.b16 %v3169
        %v3314 = vunpack.c.l.b16 %v3170
        %v3315 = vunpack.c.l.b16 %v3171
        %v3316 = vunpack.c.l.b16 %v3172
        %v3317 = vunpack.c.l.b16 %v3173
        %v3318 = vunpack.c.l.b16 %v3174
        %v3319 = vunpack.c.l.b16 %v3175
        %v3320 = vunpack.c.l.b16 %v3176
        %v3321 = vunpack.c.l.b16 %v3177
        %v3322 = vunpack.c.l.b16 %v3178
        %v3323 = vunpack.c.l.b16 %v3179
        %v3324 = vunpack.c.l.b16 %v3180
        %v3325 = vunpack.c.l.b16 %v3181
        %v3326 = vunpack.c.l.b16 %v3182
        %v3327 = vunpack.c.l.b16 %v3183
        %v3328 = vunpack.c.l.b16 %v3184
        %v3329 = vunpack.c.l.b16 %v3185
        %v3330 = vunpack.c.l.b16 %v3186
        %v3331 = vunpack.c.l.b16 %v3187
        %v3332 = vunpack.c.l.b16 %v3188
        %v3333 = vunpack.c.l.b16 %v3189
        %v3334 = vunpack.c.l.b16 %v3190
        %v3335 = vunpack.c.l.b16 %v3191
        %v3336 = vunpack.c.l.b16 %v3192
        %v3337 = vunpack.c.l.b16 %v3193
        %v3338 = vunpack.c.l.b16 %v3194
        %v3339 = vunpack.c.l.b16 %v3195
        %v3340 = vunpack.c.l.b16 %v3196
        %v3341 = vunpack.c.l.b16 %v3197
        %v3342 = vunpack.c.l.b16 %v3198
        %v3343 = vunpack.c.l.b16 %v3199
        %v3344 = vunpack.c.l.b16 %v3200
        %v3345 = vunpack.c.l.b16 %v3201
        %v3346 = vunpack.c.l.b16 %v3202
        %v3347 = vunpack.c.l.b16 %v3203
        %v3348 = vunpack.c.l.b16 %v3204
        %v3349 = vunpack.c.l.b16 %v3205
        %v3350 = vunpack.c.l.b16 %v3206
        %v3351 = vunpack.c.l.b16 %v3207
        %v3352 = vunpack.c.l.b16 %v3208
        %v3353 = vunpack.c.l.b16 %v3209
        %v3354 = vunpack.c.l.b16 %v3210
        %v3355 = vunpack.c.l.b16 %v3211
        %v3356 = vunpack.c.l.b16 %v3212
        %v3357 = vunpack.c.l.b16 %v3213
        %v3358 = vunpack.c.l.b16 %v3214
        %v3359 = vunpack.c.l.b16 %v3215
        %v3360 = vunpack.c.l.b16 %v3216
        %v3361 = vunpack.c.l.b16 %v3217
        %v3362 = vunpack.c.l.b16 %v3218
        %v3363 = vunpack.c.l.b16 %v3219
        %v3364 = vunpack.c.l.b16 %v3220
        %v3365 = vunpack.c.l.b16 %v3221
        %v3366 = vunpack.c.l.b16 %v3222
        %v3367 = vunpack.c.l.b16 %v3223
        %v3368 = vunpack.c.l.b16 %v3224
        %v3369 = vunpack.c.l.b16 %v3225
        %v3370 = vunpack.c.l.b16 %v3226
        %v3371 = vunpack.c.l.b16 %v3227
        %v3372 = vunpack.c.l.b16 %v3228
        %v3373 = vunpack.c.l.b16 %v3229
        %v3374 = vunpack.c.l.b16 %v3230
        %v3375 = vunpack.c.l.b16 %v3231
        %v3376 = vunpack.c.l.b16 %v3232
        %v3377 = vpack.c.b16 %v3306, %v3305
        %v3378 = vpack.c.b16 %v3308, %v3307
        %v3379 = vpack.c.b16 %v3310, %v3309
        %v3380 = vpack.c.b16 %v3312, %v3311
        %v3381 = vpack.c.b16 %v3314, %v3313
        %v3382 = vpack.c.b16 %v3316, %v3315
        %v3383 = vpack.c.b16 %v3318, %v3317
        %v3384 = vpack.c.b16 %v3320, %v3319
        %v3385 = vpack.c.b16 %v3322, %v3321
        %v3386 = vpack.c.b16 %v3324, %v3323
        %v3387 = vpack.c.b16 %v3326, %v3325
        %v3388 = vpack.c.b16 %v3328, %v3327
        %v3389 = vpack.c.b16 %v3330, %v3329
        %v3390 = vpack.c.b16 %v3332, %v3331
        %v3391 = vpack.c.b16 %v3334, %v3333
        %v3392 = vpack.c.b16 %v3336, %v3335
        %v3393 = vpack.c.b16 %v3338, %v3337
        %v3394 = vpack.c.b16 %v3340, %v3339
        %v3395 = vpack.c.b16 %v3342, %v3341
        %v3396 = vpack.c.b16 %v3344, %v3343
        %v3397 = vpack.c.b16 %v3346, %v3345
        %v3398 = vpack.c.b16 %v3348, %v3347
        %v3399 = vpack.c.b16 %v3350, %v3349
        %v3400 = vpack.c.b16 %v3352, %v3351
        %v3401 = vpack.c.b16 %v3354, %v3353
        %v3402 = vpack.c.b16 %v3356, %v3355
        %v3403 = vpack.c.b16 %v3358, %v3357
        %v3404 = vpack.c.b16 %v3360, %v3359
        %v3405 = vpack.c.b16 %v3362, %v3361
        %v3406 = vpack.c.b16 %v3364, %v3363
        %v3407 = vpack.c.b16 %v3366, %v3365
        %v3408 = vpack.c.b16 %v3368, %v3367
        %v3409 = vpack.c.b16 %v3370, %v3369
        %v3410 = vpack.c.b16 %v3372, %v3371
        %v3411 = vpack.c.b16 %v3374, %v3373
        %v3412 = vpack.c.b16 %v3376, %v3375
        %v3450 = vsel %vm677, %v3085, 0
        %v3453 = vsel %vm677, %v3090, 0
        %v3456 = vsel %vm677, %v3095, 0
        %v3459 = vsel %vm677, %v3100, 0
        %v3462 = vsel %vm677, %v3105, 0
        %v3465 = vsel %vm677, %v3110, 0
        %v3468 = vsel %vm677, %v3115, 0
        %v3471 = vsel %vm677, %v3120, 0
        %v3474 = vsel %vm677, %v3125, 0
        %v3477 = vsel %vm677, %v3130, 0
        %v3480 = vsel %vm677, %v3135, 0
        %v3483 = vsel %vm677, %v3140, 0
        %v3486 = vsel %vm677, %v3145, 0
        %v3489 = vsel %vm677, %v3150, 0
        %v3492 = vsel %vm677, %v3155, 0
        %v3495 = vsel %vm677, %v3160, 0
        %3497 = vmatprep.subr.bf16.mxu0 0
        %3498 = vmatpush1.bf16.msra.mxu0 %v3377
        %3499 = vmatprep.subr.bf16.mxu0 0
        %3500 = vmatpush1.bf16.msra.mxu0 %v3378
        %3501 = vmatprep.subr.bf16.mxu0 0
        %3502 = vmatpush1.bf16.msra.mxu0 %v3379
        %3503 = vmatprep.subr.bf16.mxu0 0
        %3504 = vmatpush1.bf16.msra.mxu0 %v3380
        %3505 = vmatprep.subr.bf16.mxu0 0
        %3506 = vmatpush1.bf16.msra.mxu0 %v3381
        %3507 = vmatprep.subr.bf16.mxu0 0
        %3508 = vmatpush1.bf16.msra.mxu0 %v3382
        %3509 = vmatprep.subr.bf16.mxu0 0
        %3510 = vmatpush1.bf16.msra.mxu0 %v3383
        %3511 = vmatprep.subr.bf16.mxu0 0
        %3512 = vmatpush1.bf16.msra.mxu0 %v3384
        %3513 = vmatprep.subr.bf16.mxu0 0
        %3514 = vmatpush1.bf16.msra.mxu0 %v3385
        %3515 = vmatprep.subr.bf16.mxu0 0
        %3516 = vmatpush1.bf16.msra.mxu0 %v3386
        %3517 = vmatprep.subr.bf16.mxu0 0
        %3518 = vmatpush1.bf16.msra.mxu0 %v3387
        %3519 = vmatprep.subr.bf16.mxu0 0
        %3520 = vmatpush1.bf16.msra.mxu0 %v3388
        %3521 = vmatprep.subr.bf16.mxu0 0
        %3522 = vmatpush1.bf16.msra.mxu0 %v3389
        %3523 = vmatprep.subr.bf16.mxu0 0
        %3524 = vmatpush1.bf16.msra.mxu0 %v3390
        %3525 = vmatprep.subr.bf16.mxu0 0
        %3526 = vmatpush1.bf16.msra.mxu0 %v3391
        %3527 = vmatprep.subr.bf16.mxu0 0
        %3528 = vmatpush1.bf16.msra.mxu0 %v3392
        %3529 = vmatprep.mubr.bf16.mxu0 %v3082
        %3530 = vmatmul.mubr.bf16.gmra.mrb[0].mxu0 %v3081
        %v3531 = vpop.f32.mrb[0].mxu0
        %v3532 = vadd.f32 0.0, %v3531
        %v3533 = vpop.f32.mrb[0].mxu0
        %v3534 = vpop.f32.mrb[0].mxu0
        %v3535 = vadd.f32 0.0, %v3534
        %v3536 = vpop.f32.mrb[0].mxu0
        %3537 = vmatprep.mubr.bf16.mxu0 %v3087
        %3538 = vmatmul.mubr.bf16.gmra.mrb[0].mxu0 %v3086
        %v3539 = vpop.f32.mrb[0].mxu0
        %v3540 = vadd.f32 0.0, %v3539
        %v3541 = vpop.f32.mrb[0].mxu0
        %v3542 = vpop.f32.mrb[0].mxu0
        %v3543 = vadd.f32 0.0, %v3542
        %v3544 = vpop.f32.mrb[0].mxu0
        %3545 = vmatprep.mubr.bf16.mxu0 %v3092
        %3546 = vmatmul.mubr.bf16.gmra.mrb[0].mxu0 %v3091
        %v3547 = vpop.f32.mrb[0].mxu0
        %v3548 = vadd.f32 0.0, %v3547
        %v3549 = vpop.f32.mrb[0].mxu0
        %v3550 = vpop.f32.mrb[0].mxu0
        %v3551 = vadd.f32 0.0, %v3550
        %v3552 = vpop.f32.mrb[0].mxu0
        %3553 = vmatprep.mubr.bf16.mxu0 %v3097
        %3554 = vmatmul.mubr.bf16.gmra.mrb[0].mxu0 %v3096
        %v3555 = vpop.f32.mrb[0].mxu0
        %v3556 = vadd.f32 0.0, %v3555
        %v3557 = vpop.f32.mrb[0].mxu0
        %v3558 = vpop.f32.mrb[0].mxu0
        %v3559 = vadd.f32 0.0, %v3558
        %v3560 = vpop.f32.mrb[0].mxu0
        %3561 = vmatprep.mubr.bf16.mxu0 %v3102
        %3562 = vmatmul.mubr.bf16.gmra.mrb[0].mxu0 %v3101
        %v3563 = vpop.f32.mrb[0].mxu0
        %v3564 = vadd.f32 0.0, %v3563
        %v3565 = vpop.f32.mrb[0].mxu0
        %v3566 = vpop.f32.mrb[0].mxu0
        %v3567 = vadd.f32 0.0, %v3566
        %v3568 = vpop.f32.mrb[0].mxu0
        %3569 = vmatprep.mubr.bf16.mxu0 %v3107
        %3570 = vmatmul.mubr.bf16.gmra.mrb[0].mxu0 %v3106
        %v3571 = vpop.f32.mrb[0].mxu0
        %v3572 = vadd.f32 0.0, %v3571
        %v3573 = vpop.f32.mrb[0].mxu0
        %v3574 = vpop.f32.mrb[0].mxu0
        %v3575 = vadd.f32 0.0, %v3574
        %v3576 = vpop.f32.mrb[0].mxu0
        %3577 = vmatprep.mubr.bf16.mxu0 %v3112
        %3578 = vmatmul.mubr.bf16.gmra.mrb[0].mxu0 %v3111
        %v3579 = vpop.f32.mrb[0].mxu0
        %v3580 = vadd.f32 0.0, %v3579
        %v3581 = vpop.f32.mrb[0].mxu0
        %v3582 = vpop.f32.mrb[0].mxu0
        %v3583 = vadd.f32 0.0, %v3582
        %v3584 = vpop.f32.mrb[0].mxu0
        %3585 = vmatprep.mubr.bf16.mxu0 %v3117
        %3586 = vmatmul.mubr.bf16.gmra.mrb[0].mxu0 %v3116
        %v3587 = vpop.f32.mrb[0].mxu0
        %v3588 = vadd.f32 0.0, %v3587
        %v3589 = vpop.f32.mrb[0].mxu0
        %v3590 = vpop.f32.mrb[0].mxu0
        %v3591 = vadd.f32 0.0, %v3590
        %v3592 = vpop.f32.mrb[0].mxu0
        %3593 = vmatprep.mubr.bf16.mxu0 %v3122
        %3594 = vmatmul.mubr.bf16.gmra.mrb[0].mxu0 %v3121
        %v3595 = vpop.f32.mrb[0].mxu0
        %v3596 = vadd.f32 0.0, %v3595
        %v3597 = vpop.f32.mrb[0].mxu0
        %v3598 = vpop.f32.mrb[0].mxu0
        %v3599 = vadd.f32 0.0, %v3598
        %v3600 = vpop.f32.mrb[0].mxu0
        %3601 = vmatprep.mubr.bf16.mxu0 %v3127
        %3602 = vmatmul.mubr.bf16.gmra.mrb[0].mxu0 %v3126
        %v3603 = vpop.f32.mrb[0].mxu0
        %v3604 = vadd.f32 0.0, %v3603
        %v3605 = vpop.f32.mrb[0].mxu0
        %v3606 = vpop.f32.mrb[0].mxu0
        %v3607 = vadd.f32 0.0, %v3606
        %v3608 = vpop.f32.mrb[0].mxu0
        %3609 = vmatprep.mubr.bf16.mxu0 %v3132
        %3610 = vmatmul.mubr.bf16.gmra.mrb[0].mxu0 %v3131
        %v3611 = vpop.f32.mrb[0].mxu0
        %v3612 = vadd.f32 0.0, %v3611
        %v3613 = vpop.f32.mrb[0].mxu0
        %v3614 = vpop.f32.mrb[0].mxu0
        %v3615 = vadd.f32 0.0, %v3614
        %v3616 = vpop.f32.mrb[0].mxu0
        %3617 = vmatprep.mubr.bf16.mxu0 %v3137
        %3618 = vmatmul.mubr.bf16.gmra.mrb[0].mxu0 %v3136
        %v3619 = vpop.f32.mrb[0].mxu0
        %v3620 = vadd.f32 0.0, %v3619
        %v3621 = vpop.f32.mrb[0].mxu0
        %v3622 = vpop.f32.mrb[0].mxu0
        %v3623 = vadd.f32 0.0, %v3622
        %v3624 = vpop.f32.mrb[0].mxu0
        %3625 = vmatprep.mubr.bf16.mxu0 %v3142
        %3626 = vmatmul.mubr.bf16.gmra.mrb[0].mxu0 %v3141
        %v3627 = vpop.f32.mrb[0].mxu0
        %v3628 = vadd.f32 0.0, %v3627
        %v3629 = vpop.f32.mrb[0].mxu0
        %v3630 = vpop.f32.mrb[0].mxu0
        %v3631 = vadd.f32 0.0, %v3630
        %v3632 = vpop.f32.mrb[0].mxu0
        %3633 = vmatprep.mubr.bf16.mxu0 %v3147
        %3634 = vmatmul.mubr.bf16.gmra.mrb[0].mxu0 %v3146
        %v3635 = vpop.f32.mrb[0].mxu0
        %v3636 = vadd.f32 0.0, %v3635
        %v3637 = vpop.f32.mrb[0].mxu0
        %v3638 = vpop.f32.mrb[0].mxu0
        %v3639 = vadd.f32 0.0, %v3638
        %v3640 = vpop.f32.mrb[0].mxu0
        %3641 = vmatprep.mubr.bf16.mxu0 %v3152
        %3642 = vmatmul.mubr.bf16.gmra.mrb[0].mxu0 %v3151
        %v3643 = vpop.f32.mrb[0].mxu0
        %v3644 = vadd.f32 0.0, %v3643
        %v3645 = vpop.f32.mrb[0].mxu0
        %v3646 = vpop.f32.mrb[0].mxu0
        %v3647 = vadd.f32 0.0, %v3646
        %v3648 = vpop.f32.mrb[0].mxu0
        %3649 = vmatprep.mubr.bf16.mxu0 %v3157
        %3650 = vmatmul.mubr.bf16.gmra.mrb[0].mxu0 %v3156
        %v3651 = vpop.f32.mrb[0].mxu0
        %v3652 = vadd.f32 0.0, %v3651
        %v3653 = vpop.f32.mrb[0].mxu0
        %v3654 = vpop.f32.mrb[0].mxu0
        %v3655 = vadd.f32 0.0, %v3654
        %v3656 = vpop.f32.mrb[0].mxu0
        %3657 = vdwg.mxu0
        %3658 = vmatprep.subr.bf16.mxu0 0
        %3659 = vmatpush1.bf16.msra.mxu0 %v3393
        %3660 = vmatprep.subr.bf16.mxu0 0
        %3661 = vmatpush1.bf16.msra.mxu0 %v3394
        %3662 = vmatprep.subr.bf16.mxu0 0
        %3663 = vmatpush1.bf16.msra.mxu0 %v3395
        %3664 = vmatprep.subr.bf16.mxu0 0
        %3665 = vmatpush1.bf16.msra.mxu0 %v3396
        %3666 = vmatprep.subr.bf16.mxu0 0
        %3667 = vmatpush1.bf16.msra.mxu0 %v3397
        %3668 = vmatprep.subr.bf16.mxu0 0
        %3669 = vmatpush1.bf16.msra.mxu0 %v3398
        %3670 = vmatprep.subr.bf16.mxu0 0
        %3671 = vmatpush1.bf16.msra.mxu0 %v3399
        %3672 = vmatprep.subr.bf16.mxu0 0
        %3673 = vmatpush1.bf16.msra.mxu0 %v3400
        %3674 = vmatprep.subr.bf16.mxu0 0
        %3675 = vmatpush1.bf16.msra.mxu0 %v3401
        %3676 = vmatprep.subr.bf16.mxu0 0
        %3677 = vmatpush1.bf16.msra.mxu0 %v3402
        %3678 = vmatprep.subr.bf16.mxu0 0
        %3679 = vmatpush1.bf16.msra.mxu0 %v3403
        %3680 = vmatprep.subr.bf16.mxu0 0
        %3681 = vmatpush1.bf16.msra.mxu0 %v3404
        %3682 = vmatprep.subr.bf16.mxu0 0
        %3683 = vmatpush1.bf16.msra.mxu0 %v3405
        %3684 = vmatprep.subr.bf16.mxu0 0
        %3685 = vmatpush1.bf16.msra.mxu0 %v3406
        %3686 = vmatprep.subr.bf16.mxu0 0
        %3687 = vmatpush1.bf16.msra.mxu0 %v3407
        %3688 = vmatprep.subr.bf16.mxu0 0
        %3689 = vmatpush1.bf16.msra.mxu0 %v3408
        %3690 = vmatprep.mubr.bf16.mxu0 %v3084
        %3691 = vmatmul.mubr.bf16.gmra.mrb[0].mxu0 %v3083
        %v3692 = vpop.f32.mrb[0].mxu0
        %v3693 = vadd.f32 %v3532, %v3692
        %v3694 = vpop.f32.mrb[0].mxu0
        %v3695 = vpop.f32.mrb[0].mxu0
        %v3696 = vadd.f32 %v3535, %v3695
        %v3697 = vpop.f32.mrb[0].mxu0
        %3698 = vmatprep.mubr.bf16.mxu0 %v3089
        %3699 = vmatmul.mubr.bf16.gmra.mrb[0].mxu0 %v3088
        %v3700 = vpop.f32.mrb[0].mxu0
        %v3701 = vadd.f32 %v3540, %v3700
        %v3702 = vpop.f32.mrb[0].mxu0
        %v3703 = vpop.f32.mrb[0].mxu0
        %v3704 = vadd.f32 %v3543, %v3703
        %v3705 = vpop.f32.mrb[0].mxu0
        %3706 = vmatprep.mubr.bf16.mxu0 %v3094
        %3707 = vmatmul.mubr.bf16.gmra.mrb[0].mxu0 %v3093
        %v3708 = vpop.f32.mrb[0].mxu0
        %v3709 = vadd.f32 %v3548, %v3708
        %v3710 = vpop.f32.mrb[0].mxu0
        %v3711 = vpop.f32.mrb[0].mxu0
        %v3712 = vadd.f32 %v3551, %v3711
        %v3713 = vpop.f32.mrb[0].mxu0
        %3714 = vmatprep.mubr.bf16.mxu0 %v3099
        %3715 = vmatmul.mubr.bf16.gmra.mrb[0].mxu0 %v3098
        %v3716 = vpop.f32.mrb[0].mxu0
        %v3717 = vadd.f32 %v3556, %v3716
        %v3718 = vpop.f32.mrb[0].mxu0
        %v3719 = vpop.f32.mrb[0].mxu0
        %v3720 = vadd.f32 %v3559, %v3719
        %v3721 = vpop.f32.mrb[0].mxu0
        %3722 = vmatprep.mubr.bf16.mxu0 %v3104
        %3723 = vmatmul.mubr.bf16.gmra.mrb[0].mxu0 %v3103
        %v3724 = vpop.f32.mrb[0].mxu0
        %v3725 = vadd.f32 %v3564, %v3724
        %v3726 = vpop.f32.mrb[0].mxu0
        %v3727 = vpop.f32.mrb[0].mxu0
        %v3728 = vadd.f32 %v3567, %v3727
        %v3729 = vpop.f32.mrb[0].mxu0
        %3730 = vmatprep.mubr.bf16.mxu0 %v3109
        %3731 = vmatmul.mubr.bf16.gmra.mrb[0].mxu0 %v3108
        %v3732 = vpop.f32.mrb[0].mxu0
        %v3733 = vadd.f32 %v3572, %v3732
        %v3734 = vpop.f32.mrb[0].mxu0
        %v3735 = vpop.f32.mrb[0].mxu0
        %v3736 = vadd.f32 %v3575, %v3735
        %v3737 = vpop.f32.mrb[0].mxu0
        %3738 = vmatprep.mubr.bf16.mxu0 %v3114
        %3739 = vmatmul.mubr.bf16.gmra.mrb[0].mxu0 %v3113
        %v3740 = vpop.f32.mrb[0].mxu0
        %v3741 = vadd.f32 %v3580, %v3740
        %v3742 = vpop.f32.mrb[0].mxu0
        %v3743 = vpop.f32.mrb[0].mxu0
        %v3744 = vadd.f32 %v3583, %v3743
        %v3745 = vpop.f32.mrb[0].mxu0
        %3746 = vmatprep.mubr.bf16.mxu0 %v3119
        %3747 = vmatmul.mubr.bf16.gmra.mrb[0].mxu0 %v3118
        %v3748 = vpop.f32.mrb[0].mxu0
        %v3749 = vadd.f32 %v3588, %v3748
        %v3750 = vpop.f32.mrb[0].mxu0
        %v3751 = vpop.f32.mrb[0].mxu0
        %v3752 = vadd.f32 %v3591, %v3751
        %v3753 = vpop.f32.mrb[0].mxu0
        %3754 = vmatprep.mubr.bf16.mxu0 %v3124
        %3755 = vmatmul.mubr.bf16.gmra.mrb[0].mxu0 %v3123
        %v3756 = vpop.f32.mrb[0].mxu0
        %v3757 = vadd.f32 %v3596, %v3756
        %v3758 = vpop.f32.mrb[0].mxu0
        %v3759 = vpop.f32.mrb[0].mxu0
        %v3760 = vadd.f32 %v3599, %v3759
        %v3761 = vpop.f32.mrb[0].mxu0
        %3762 = vmatprep.mubr.bf16.mxu0 %v3129
        %3763 = vmatmul.mubr.bf16.gmra.mrb[0].mxu0 %v3128
        %v3764 = vpop.f32.mrb[0].mxu0
        %v3765 = vadd.f32 %v3604, %v3764
        %v3766 = vpop.f32.mrb[0].mxu0
        %v3767 = vpop.f32.mrb[0].mxu0
        %v3768 = vadd.f32 %v3607, %v3767
        %v3769 = vpop.f32.mrb[0].mxu0
        %3770 = vmatprep.mubr.bf16.mxu0 %v3134
        %3771 = vmatmul.mubr.bf16.gmra.mrb[0].mxu0 %v3133
        %v3772 = vpop.f32.mrb[0].mxu0
        %v3773 = vadd.f32 %v3612, %v3772
        %v3774 = vpop.f32.mrb[0].mxu0
        %v3775 = vpop.f32.mrb[0].mxu0
        %v3776 = vadd.f32 %v3615, %v3775
        %v3777 = vpop.f32.mrb[0].mxu0
        %3778 = vmatprep.mubr.bf16.mxu0 %v3139
        %3779 = vmatmul.mubr.bf16.gmra.mrb[0].mxu0 %v3138
        %v3780 = vpop.f32.mrb[0].mxu0
        %v3781 = vadd.f32 %v3620, %v3780
        %v3782 = vpop.f32.mrb[0].mxu0
        %v3783 = vpop.f32.mrb[0].mxu0
        %v3784 = vadd.f32 %v3623, %v3783
        %v3785 = vpop.f32.mrb[0].mxu0
        %3786 = vmatprep.mubr.bf16.mxu0 %v3144
        %3787 = vmatmul.mubr.bf16.gmra.mrb[0].mxu0 %v3143
        %v3788 = vpop.f32.mrb[0].mxu0
        %v3789 = vadd.f32 %v3628, %v3788
        %v3790 = vpop.f32.mrb[0].mxu0
        %v3791 = vpop.f32.mrb[0].mxu0
        %v3792 = vadd.f32 %v3631, %v3791
        %v3793 = vpop.f32.mrb[0].mxu0
        %3794 = vmatprep.mubr.bf16.mxu0 %v3149
        %3795 = vmatmul.mubr.bf16.gmra.mrb[0].mxu0 %v3148
        %v3796 = vpop.f32.mrb[0].mxu0
        %v3797 = vadd.f32 %v3636, %v3796
        %v3798 = vpop.f32.mrb[0].mxu0
        %v3799 = vpop.f32.mrb[0].mxu0
        %v3800 = vadd.f32 %v3639, %v3799
        %v3801 = vpop.f32.mrb[0].mxu0
        %3802 = vmatprep.mubr.bf16.mxu0 %v3154
        %3803 = vmatmul.mubr.bf16.gmra.mrb[0].mxu0 %v3153
        %v3804 = vpop.f32.mrb[0].mxu0
        %v3805 = vadd.f32 %v3644, %v3804
        %v3806 = vpop.f32.mrb[0].mxu0
        %v3807 = vpop.f32.mrb[0].mxu0
        %v3808 = vadd.f32 %v3647, %v3807
        %v3809 = vpop.f32.mrb[0].mxu0
        %3810 = vmatprep.mubr.bf16.mxu0 %v3159
        %3811 = vmatmul.mubr.bf16.gmra.mrb[0].mxu0 %v3158
        %v3812 = vpop.f32.mrb[0].mxu0
        %v3813 = vadd.f32 %v3652, %v3812
        %v3814 = vpop.f32.mrb[0].mxu0
        %v3815 = vpop.f32.mrb[0].mxu0
        %v3816 = vadd.f32 %v3655, %v3815
        %v3817 = vpop.f32.mrb[0].mxu0
        %3818 = vdwg.mxu0
        %3819 = vmatprep.subr.bf16.mxu0 0
        %3820 = vmatpush1.bf16.msra.mxu0 %v3409
        %3821 = vmatprep.subr.bf16.mxu0 0
        %3822 = vmatpush1.bf16.msra.mxu0 %v3410
        %3823 = vmatprep.subr.bf16.mxu0 0
        %3824 = vmatpush1.bf16.msra.mxu0 %v3411
        %3825 = vmatprep.subr.bf16.mxu0 0
        %3826 = vmatpush1.bf16.msra.mxu0 %v3412
        %3827 = vmatprep.subr.bf16.mxu0 0
        %3828 = vmatpush1.bf16.msra.mxu0 0
        %3829 = vmatprep.subr.bf16.mxu0 0
        %3830 = vmatpush1.bf16.msra.mxu0 0
        %3831 = vmatprep.subr.bf16.mxu0 0
        %3832 = vmatpush1.bf16.msra.mxu0 0
        %3833 = vmatprep.subr.bf16.mxu0 0
        %3834 = vmatpush1.bf16.msra.mxu0 0
        %3835 = vmatprep.subr.bf16.mxu0 0
        %3836 = vmatpush1.bf16.msra.mxu0 0
        %3837 = vmatprep.subr.bf16.mxu0 0
        %3838 = vmatpush1.bf16.msra.mxu0 0
        %3839 = vmatprep.subr.bf16.mxu0 0
        %3840 = vmatpush1.bf16.msra.mxu0 0
        %3841 = vmatprep.subr.bf16.mxu0 0
        %3842 = vmatpush1.bf16.msra.mxu0 0
        %3843 = vmatprep.subr.bf16.mxu0 0
        %3844 = vmatpush1.bf16.msra.mxu0 0
        %3845 = vmatprep.subr.bf16.mxu0 0
        %3846 = vmatpush1.bf16.msra.mxu0 0
        %3847 = vmatprep.subr.bf16.mxu0 0
        %3848 = vmatpush1.bf16.msra.mxu0 0
        %3849 = vmatprep.subr.bf16.mxu0 0
        %3850 = vmatpush1.bf16.msra.mxu0 0
        %3851 = vmatprep.mubr.bf16.mxu0 0
        %3852 = vmatmul.mubr.bf16.gmra.mrb[0].mxu0 %v3450
        %v3853 = vpop.f32.mrb[0].mxu0
        %v3854 = vadd.f32 %v3693, %v3853
        %v3855 = vpop.f32.mrb[0].mxu0
        %v3856 = vpop.f32.mrb[0].mxu0
        %v3857 = vadd.f32 %v3696, %v3856
        %v3858 = vpop.f32.mrb[0].mxu0
        %3859 = vmatprep.mubr.bf16.mxu0 0
        %3860 = vmatmul.mubr.bf16.gmra.mrb[0].mxu0 %v3453
        %v3861 = vpop.f32.mrb[0].mxu0
        %v3862 = vadd.f32 %v3701, %v3861
        %v3863 = vpop.f32.mrb[0].mxu0
        %v3864 = vpop.f32.mrb[0].mxu0
        %v3865 = vadd.f32 %v3704, %v3864
        %v3866 = vpop.f32.mrb[0].mxu0
        %3867 = vmatprep.mubr.bf16.mxu0 0
        %3868 = vmatmul.mubr.bf16.gmra.mrb[0].mxu0 %v3456
        %v3869 = vpop.f32.mrb[0].mxu0
        %v3870 = vadd.f32 %v3709, %v3869
        %v3871 = vpop.f32.mrb[0].mxu0
        %v3872 = vpop.f32.mrb[0].mxu0
        %v3873 = vadd.f32 %v3712, %v3872
        %v3874 = vpop.f32.mrb[0].mxu0
        %3875 = vmatprep.mubr.bf16.mxu0 0
        %3876 = vmatmul.mubr.bf16.gmra.mrb[0].mxu0 %v3459
        %v3877 = vpop.f32.mrb[0].mxu0
        %v3878 = vadd.f32 %v3717, %v3877
        %v3879 = vpop.f32.mrb[0].mxu0
        %v3880 = vpop.f32.mrb[0].mxu0
        %v3881 = vadd.f32 %v3720, %v3880
        %v3882 = vpop.f32.mrb[0].mxu0
        %3883 = vmatprep.mubr.bf16.mxu0 0
        %3884 = vmatmul.mubr.bf16.gmra.mrb[0].mxu0 %v3462
        %v3885 = vpop.f32.mrb[0].mxu0
        %v3886 = vadd.f32 %v3725, %v3885
        %v3887 = vpop.f32.mrb[0].mxu0
        %v3888 = vpop.f32.mrb[0].mxu0
        %v3889 = vadd.f32 %v3728, %v3888
        %v3890 = vpop.f32.mrb[0].mxu0
        %3891 = vmatprep.mubr.bf16.mxu0 0
        %3892 = vmatmul.mubr.bf16.gmra.mrb[0].mxu0 %v3465
        %v3893 = vpop.f32.mrb[0].mxu0
        %v3894 = vadd.f32 %v3733, %v3893
        %v3895 = vpop.f32.mrb[0].mxu0
        %v3896 = vpop.f32.mrb[0].mxu0
        %v3897 = vadd.f32 %v3736, %v3896
        %v3898 = vpop.f32.mrb[0].mxu0
        %3899 = vmatprep.mubr.bf16.mxu0 0
        %3900 = vmatmul.mubr.bf16.gmra.mrb[0].mxu0 %v3468
        %v3901 = vpop.f32.mrb[0].mxu0
        %v3902 = vadd.f32 %v3741, %v3901
        %v3903 = vpop.f32.mrb[0].mxu0
        %v3904 = vpop.f32.mrb[0].mxu0
        %v3905 = vadd.f32 %v3744, %v3904
        %v3906 = vpop.f32.mrb[0].mxu0
        %3907 = vmatprep.mubr.bf16.mxu0 0
        %3908 = vmatmul.mubr.bf16.gmra.mrb[0].mxu0 %v3471
        %v3909 = vpop.f32.mrb[0].mxu0
        %v3910 = vadd.f32 %v3749, %v3909
        %v3911 = vpop.f32.mrb[0].mxu0
        %v3912 = vpop.f32.mrb[0].mxu0
        %v3913 = vadd.f32 %v3752, %v3912
        %v3914 = vpop.f32.mrb[0].mxu0
        %3915 = vmatprep.mubr.bf16.mxu0 0
        %3916 = vmatmul.mubr.bf16.gmra.mrb[0].mxu0 %v3474
        %v3917 = vpop.f32.mrb[0].mxu0
        %v3918 = vadd.f32 %v3757, %v3917
        %v3919 = vpop.f32.mrb[0].mxu0
        %v3920 = vpop.f32.mrb[0].mxu0
        %v3921 = vadd.f32 %v3760, %v3920
        %v3922 = vpop.f32.mrb[0].mxu0
        %3923 = vmatprep.mubr.bf16.mxu0 0
        %3924 = vmatmul.mubr.bf16.gmra.mrb[0].mxu0 %v3477
        %v3925 = vpop.f32.mrb[0].mxu0
        %v3926 = vadd.f32 %v3765, %v3925
        %v3927 = vpop.f32.mrb[0].mxu0
        %v3928 = vpop.f32.mrb[0].mxu0
        %v3929 = vadd.f32 %v3768, %v3928
        %v3930 = vpop.f32.mrb[0].mxu0
        %3931 = vmatprep.mubr.bf16.mxu0 0
        %3932 = vmatmul.mubr.bf16.gmra.mrb[0].mxu0 %v3480
        %v3933 = vpop.f32.mrb[0].mxu0
        %v3934 = vadd.f32 %v3773, %v3933
        %v3935 = vpop.f32.mrb[0].mxu0
        %v3936 = vpop.f32.mrb[0].mxu0
        %v3937 = vadd.f32 %v3776, %v3936
        %v3938 = vpop.f32.mrb[0].mxu0
        %3939 = vmatprep.mubr.bf16.mxu0 0
        %3940 = vmatmul.mubr.bf16.gmra.mrb[0].mxu0 %v3483
        %v3941 = vpop.f32.mrb[0].mxu0
        %v3942 = vadd.f32 %v3781, %v3941
        %v3943 = vpop.f32.mrb[0].mxu0
        %v3944 = vpop.f32.mrb[0].mxu0
        %v3945 = vadd.f32 %v3784, %v3944
        %v3946 = vpop.f32.mrb[0].mxu0
        %3947 = vmatprep.mubr.bf16.mxu0 0
        %3948 = vmatmul.mubr.bf16.gmra.mrb[0].mxu0 %v3486
        %v3949 = vpop.f32.mrb[0].mxu0
        %v3950 = vadd.f32 %v3789, %v3949
        %v3951 = vpop.f32.mrb[0].mxu0
        %v3952 = vpop.f32.mrb[0].mxu0
        %v3953 = vadd.f32 %v3792, %v3952
        %v3954 = vpop.f32.mrb[0].mxu0
        %3955 = vmatprep.mubr.bf16.mxu0 0
        %3956 = vmatmul.mubr.bf16.gmra.mrb[0].mxu0 %v3489
        %v3957 = vpop.f32.mrb[0].mxu0
        %v3958 = vadd.f32 %v3797, %v3957
        %v3959 = vpop.f32.mrb[0].mxu0
        %v3960 = vpop.f32.mrb[0].mxu0
        %v3961 = vadd.f32 %v3800, %v3960
        %v3962 = vpop.f32.mrb[0].mxu0
        %3963 = vmatprep.mubr.bf16.mxu0 0
        %3964 = vmatmul.mubr.bf16.gmra.mrb[0].mxu0 %v3492
        %v3965 = vpop.f32.mrb[0].mxu0
        %v3966 = vadd.f32 %v3805, %v3965
        %v3967 = vpop.f32.mrb[0].mxu0
        %v3968 = vpop.f32.mrb[0].mxu0
        %v3969 = vadd.f32 %v3808, %v3968
        %v3970 = vpop.f32.mrb[0].mxu0
        %3971 = vmatprep.mubr.bf16.mxu0 0
        %3972 = vmatmul.mubr.bf16.gmra.mrb[0].mxu0 %v3495
        %v3973 = vpop.f32.mrb[0].mxu0
        %v3974 = vadd.f32 %v3813, %v3973
        %v3975 = vpop.f32.mrb[0].mxu0
        %v3976 = vpop.f32.mrb[0].mxu0
        %v3977 = vadd.f32 %v3816, %v3976
        %v3978 = vpop.f32.mrb[0].mxu0
        %3979 = vdwg.mxu0
        %v3980 = vld [vmem:[%s5] sm:$0x1]
        %v3982 = vlaneseq
        %v3983 = vshrl.u32 %v3982, 7
        %v3984 = vsub.s32 0, %v3983
        %v3985 = vrot.slane %v3980, %v3984
        %v3987 = vmul.f32 %v3854, %v3985
        %v3988 = vmul.f32 %v3857, %v3985
        %v3989 = vmul.f32 %v3862, %v3985
        %v3990 = vmul.f32 %v3865, %v3985
        %v3991 = vmul.f32 %v3870, %v3985
        %v3992 = vmul.f32 %v3873, %v3985
        %v3993 = vmul.f32 %v3878, %v3985
        %v3994 = vmul.f32 %v3881, %v3985
        %v3995 = vmul.f32 %v3886, %v3985
        %v3996 = vmul.f32 %v3889, %v3985
        %v3997 = vmul.f32 %v3894, %v3985
        %v3998 = vmul.f32 %v3897, %v3985
        %v3999 = vmul.f32 %v3902, %v3985
        %v4000 = vmul.f32 %v3905, %v3985
        %v4001 = vmul.f32 %v3910, %v3985
        %v4002 = vmul.f32 %v3913, %v3985
        %v4003 = vmul.f32 %v3918, %v3985
        %v4004 = vmul.f32 %v3921, %v3985
        %v4005 = vmul.f32 %v3926, %v3985
        %v4006 = vmul.f32 %v3929, %v3985
        %v4007 = vmul.f32 %v3934, %v3985
        %v4008 = vmul.f32 %v3937, %v3985
        %v4009 = vmul.f32 %v3942, %v3985
        %v4010 = vmul.f32 %v3945, %v3985
        %v4011 = vmul.f32 %v3950, %v3985
        %v4012 = vmul.f32 %v3953, %v3985
        %v4013 = vmul.f32 %v3958, %v3985
        %v4014 = vmul.f32 %v3961, %v3985
        %v4015 = vmul.f32 %v3966, %v3985
        %v4016 = vmul.f32 %v3969, %v3985
        %v4017 = vmul.f32 %v3974, %v3985
        %v4018 = vmul.f32 %v3977, %v3985
        %v4019 = vld [vmem:[%s6] sm:$0x1]
        %v4021 = vlaneseq
        %v4022 = vshrl.u32 %v4021, 7
        %v4023 = vsub.s32 0, %v4022
        %v4024 = vrot.slane %v4019, %v4023
        %v4026 = vadd.f32 %v3987, %v4024
        %v4027 = vadd.f32 %v3988, %v4024
        %v4028 = vadd.f32 %v3989, %v4024
        %v4029 = vadd.f32 %v3990, %v4024
        %v4030 = vadd.f32 %v3991, %v4024
        %v4031 = vadd.f32 %v3992, %v4024
        %v4032 = vadd.f32 %v3993, %v4024
        %v4033 = vadd.f32 %v3994, %v4024
        %v4034 = vadd.f32 %v3995, %v4024
        %v4035 = vadd.f32 %v3996, %v4024
        %v4036 = vadd.f32 %v3997, %v4024
        %v4037 = vadd.f32 %v3998, %v4024
        %v4038 = vadd.f32 %v3999, %v4024
        %v4039 = vadd.f32 %v4000, %v4024
        %v4040 = vadd.f32 %v4001, %v4024
        %v4041 = vadd.f32 %v4002, %v4024
        %v4042 = vadd.f32 %v4003, %v4024
        %v4043 = vadd.f32 %v4004, %v4024
        %v4044 = vadd.f32 %v4005, %v4024
        %v4045 = vadd.f32 %v4006, %v4024
        %v4046 = vadd.f32 %v4007, %v4024
        %v4047 = vadd.f32 %v4008, %v4024
        %v4048 = vadd.f32 %v4009, %v4024
        %v4049 = vadd.f32 %v4010, %v4024
        %v4050 = vadd.f32 %v4011, %v4024
        %v4051 = vadd.f32 %v4012, %v4024
        %v4052 = vadd.f32 %v4013, %v4024
        %v4053 = vadd.f32 %v4014, %v4024
        %v4054 = vadd.f32 %v4015, %v4024
        %v4055 = vadd.f32 %v4016, %v4024
        %v4056 = vadd.f32 %v4017, %v4024
        %v4057 = vadd.f32 %v4018, %v4024
        %v4058 = vmax.f32 %v4026, 0.0
        %v4059 = vmax.f32 %v4027, 0.0
        %v4060 = vmax.f32 %v4028, 0.0
        %v4061 = vmax.f32 %v4029, 0.0
        %v4062 = vmax.f32 %v4030, 0.0
        %v4063 = vmax.f32 %v4031, 0.0
        %v4064 = vmax.f32 %v4032, 0.0
        %v4065 = vmax.f32 %v4033, 0.0
        %v4066 = vmax.f32 %v4034, 0.0
        %v4067 = vmax.f32 %v4035, 0.0
        %v4068 = vmax.f32 %v4036, 0.0
        %v4069 = vmax.f32 %v4037, 0.0
        %v4070 = vmax.f32 %v4038, 0.0
        %v4071 = vmax.f32 %v4039, 0.0
        %v4072 = vmax.f32 %v4040, 0.0
        %v4073 = vmax.f32 %v4041, 0.0
        %v4074 = vmax.f32 %v4042, 0.0
        %v4075 = vmax.f32 %v4043, 0.0
        %v4076 = vmax.f32 %v4044, 0.0
        %v4077 = vmax.f32 %v4045, 0.0
        %v4078 = vmax.f32 %v4046, 0.0
        %v4079 = vmax.f32 %v4047, 0.0
        %v4080 = vmax.f32 %v4048, 0.0
        %v4081 = vmax.f32 %v4049, 0.0
        %v4082 = vmax.f32 %v4050, 0.0
        %v4083 = vmax.f32 %v4051, 0.0
        %v4084 = vmax.f32 %v4052, 0.0
        %v4085 = vmax.f32 %v4053, 0.0
        %v4086 = vmax.f32 %v4054, 0.0
        %v4087 = vmax.f32 %v4055, 0.0
        %v4088 = vmax.f32 %v4056, 0.0
        %v4089 = vmax.f32 %v4057, 0.0
        %v4090 = vsel %vm677, %v4058, 0.0
        %v4091 = vsel %vm677, %v4059, 0.0
        %v4092 = vadd.f32 %v4090, %v4091
        %v4093 = vsel %vm677, %v4060, 0.0
        %v4094 = vadd.f32 %v4092, %v4093
        %v4095 = vsel %vm677, %v4061, 0.0
        %v4096 = vadd.f32 %v4094, %v4095
        %v4097 = vsel %vm677, %v4062, 0.0
        %v4098 = vadd.f32 %v4096, %v4097
        %v4099 = vsel %vm677, %v4063, 0.0
        %v4100 = vadd.f32 %v4098, %v4099
        %v4101 = vsel %vm677, %v4064, 0.0
        %v4102 = vadd.f32 %v4100, %v4101
        %v4103 = vsel %vm677, %v4065, 0.0
        %v4104 = vadd.f32 %v4102, %v4103
        %v4105 = vsel %vm677, %v4066, 0.0
        %v4106 = vadd.f32 %v4104, %v4105
        %v4107 = vsel %vm677, %v4067, 0.0
        %v4108 = vadd.f32 %v4106, %v4107
        %v4109 = vsel %vm677, %v4068, 0.0
        %v4110 = vadd.f32 %v4108, %v4109
        %v4111 = vsel %vm677, %v4069, 0.0
        %v4112 = vadd.f32 %v4110, %v4111
        %v4113 = vsel %vm677, %v4070, 0.0
        %v4114 = vadd.f32 %v4112, %v4113
        %v4115 = vsel %vm677, %v4071, 0.0
        %v4116 = vadd.f32 %v4114, %v4115
        %v4117 = vsel %vm677, %v4072, 0.0
        %v4118 = vadd.f32 %v4116, %v4117
        %v4119 = vsel %vm677, %v4073, 0.0
        %v4120 = vadd.f32 %v4118, %v4119
        %v4121 = vsel %vm677, %v4074, 0.0
        %v4122 = vadd.f32 %v4120, %v4121
        %v4123 = vsel %vm677, %v4075, 0.0
        %v4124 = vadd.f32 %v4122, %v4123
        %v4125 = vsel %vm677, %v4076, 0.0
        %v4126 = vadd.f32 %v4124, %v4125
        %v4127 = vsel %vm677, %v4077, 0.0
        %v4128 = vadd.f32 %v4126, %v4127
        %v4129 = vsel %vm677, %v4078, 0.0
        %v4130 = vadd.f32 %v4128, %v4129
        %v4131 = vsel %vm677, %v4079, 0.0
        %v4132 = vadd.f32 %v4130, %v4131
        %v4133 = vsel %vm677, %v4080, 0.0
        %v4134 = vadd.f32 %v4132, %v4133
        %v4135 = vsel %vm677, %v4081, 0.0
        %v4136 = vadd.f32 %v4134, %v4135
        %v4137 = vsel %vm677, %v4082, 0.0
        %v4138 = vadd.f32 %v4136, %v4137
        %v4139 = vsel %vm677, %v4083, 0.0
        %v4140 = vadd.f32 %v4138, %v4139
        %v4141 = vsel %vm677, %v4084, 0.0
        %v4142 = vadd.f32 %v4140, %v4141
        %v4143 = vsel %vm677, %v4085, 0.0
        %v4144 = vadd.f32 %v4142, %v4143
        %v4145 = vsel %vm677, %v4086, 0.0
        %v4146 = vadd.f32 %v4144, %v4145
        %v4147 = vsel %vm677, %v4087, 0.0
        %v4148 = vadd.f32 %v4146, %v4147
        %v4149 = vsel %vm677, %v4088, 0.0
        %v4150 = vadd.f32 %v4148, %v4149
        %v4151 = vsel %vm677, %v4089, 0.0
        %v4152 = vadd.f32 %v4150, %v4151
        %v4153 = vrot.slane %v4152, 4
        %v4154 = vadd.f32 %v4152, %v4153
        %v4155 = vrot.slane %v4154, 2
        %v4156 = vadd.f32 %v4154, %v4155
        %v4157 = vrot.slane %v4156, 1
        %v4158 = vadd.f32 %v4156, %v4157
        %v4159 = vrcp.pop 256.0
        %v4160 = vmul.f32 %v4158, %v4159
        %v4161 = vld [vmem:[%s7] sm:$0xff]
        %v4162 = vld [vmem:[%s7 + $0x8] sm:$0xff]
        %v4163 = vld [vmem:[%s7 + $0x10] sm:$0xff]
        %v4164 = vld [vmem:[%s7 + $0x18] sm:$0xff]
        %v4165 = vld [vmem:[%s7 + $0x20] sm:$0xff]
        %v4166 = vld [vmem:[%s7 + $0x28] sm:$0xff]
        %v4167 = vld [vmem:[%s7 + $0x30] sm:$0xff]
        %v4168 = vld [vmem:[%s7 + $0x38] sm:$0xff]
        %v4169 = vld [vmem:[%s8] sm:$0x1]
        %v4171 = vsel %vm677, %v4160, 0
        %4173 = vmatprep.subr.mxu0 0.0
        %4174 = vmatpush1.msra.mxu0 %v4161
        %4175 = vmatprep.subr.mxu0 0.0
        %4176 = vmatpush1.msra.mxu0 %v4162
        %4177 = vmatprep.subr.mxu0 0.0
        %4178 = vmatpush1.msra.mxu0 %v4163
        %4179 = vmatprep.subr.mxu0 0.0
        %4180 = vmatpush1.msra.mxu0 %v4164
        %4181 = vmatprep.subr.mxu0 0.0
        %4182 = vmatpush1.msra.mxu0 %v4165
        %4183 = vmatprep.subr.mxu0 0.0
        %4184 = vmatpush1.msra.mxu0 %v4166
        %4185 = vmatprep.subr.mxu0 0.0
        %4186 = vmatpush1.msra.mxu0 %v4167
        %4187 = vmatprep.subr.mxu0 0.0
        %4188 = vmatpush1.msra.mxu0 %v4168
        %4189 = vmatprep.subr.mxu0 0.0
        %4190 = vmatpush1.msra.mxu0 0.0
        %4191 = vmatprep.subr.mxu0 0.0
        %4192 = vmatpush1.msra.mxu0 0.0
        %4193 = vmatprep.subr.mxu0 0.0
        %4194 = vmatpush1.msra.mxu0 0.0
        %4195 = vmatprep.subr.mxu0 0.0
        %4196 = vmatpush1.msra.mxu0 0.0
        %4197 = vmatprep.subr.mxu0 0.0
        %4198 = vmatpush1.msra.mxu0 0.0
        %4199 = vmatprep.subr.mxu0 0.0
        %4200 = vmatpush1.msra.mxu0 0.0
        %4201 = vmatprep.subr.mxu0 0.0
        %4202 = vmatpush1.msra.mxu0 0.0
        %4203 = vmatprep.subr.mxu0 0.0
        %4204 = vmatpush1.msra.mxu0 0.0
        %4205 = vmatprep.subr.mxu0 0.0
        %4206 = vmatpush1.msra.mxu0 0.0
        %4207 = vmatprep.subr.mxu0 0.0
        %4208 = vmatpush1.msra.mxu0 0.0
        %4209 = vmatprep.subr.mxu0 0.0
        %4210 = vmatpush1.msra.mxu0 0.0
        %4211 = vmatprep.subr.mxu0 0.0
        %4212 = vmatpush1.msra.mxu0 0.0
        %4213 = vmatprep.subr.mxu0 0.0
        %4214 = vmatpush1.msra.mxu0 0.0
        %4215 = vmatprep.subr.mxu0 0.0
        %4216 = vmatpush1.msra.mxu0 0.0
        %4217 = vmatprep.subr.mxu0 0.0
        %4218 = vmatpush1.msra.mxu0 0.0
        %4219 = vmatprep.subr.mxu0 0.0
        %4220 = vmatpush1.msra.mxu0 0.0
        %4221 = vmatprep.subr.mxu0 0.0
        %4222 = vmatpush1.msra.mxu0 0.0
        %4223 = vmatprep.subr.mxu0 0.0
        %4224 = vmatpush1.msra.mxu0 0.0
        %4225 = vmatprep.subr.mxu0 0.0
        %4226 = vmatpush1.msra.mxu0 0.0
        %4227 = vmatprep.subr.mxu0 0.0
        %4228 = vmatpush1.msra.mxu0 0.0
        %4229 = vmatprep.subr.mxu0 0.0
        %4230 = vmatpush1.msra.mxu0 0.0
        %4231 = vmatprep.subr.mxu0 0.0
        %4232 = vmatpush1.msra.mxu0 0.0
        %4233 = vmatprep.subr.mxu0 0.0
        %4234 = vmatpush1.msra.mxu0 0.0
        %4235 = vmatprep.subr.mxu0 0.0
        %4236 = vmatpush1.msra.mxu0 0.0
        %4237 = vmatprep.mubr.f32.mxu0 0.0
        %4238 = vmatmul.mubr.f32.gmra.mrb[0].mxu0 %v4171
        %v4239 = vpop.f32.mrb[0].mxu0
        %v4240 = vadd.f32 %v4169, %v4239
        %v4241 = vpop.f32.mrb[0].mxu0
        %4242 = vdwg.mxu0
        %v4243 = vmax.f32 %v4240, 0.0
        %v4244 = vld [vmem:[%s9] sm:$0xf]
        %v4245 = vld [vmem:[%s10] sm:$0x1]
        %vm4246 = vcmask 31744
        %v4248 = vsel %vm4246, %v4243, 0
        %vm4250 = vcmask 1043456
        %v4252 = vsel %vm4250, %v4244, 0
        %4254 = vmatprep.subr.mxu0 0.0
        %4255 = vmatpush1.msra.mxu0 %v4252
        %4256 = vmatprep.subr.mxu0 0.0
        %4257 = vmatpush1.msra.mxu0 0.0
        %4258 = vmatprep.subr.mxu0 0.0
        %4259 = vmatpush1.msra.mxu0 0.0
        %4260 = vmatprep.subr.mxu0 0.0
        %4261 = vmatpush1.msra.mxu0 0.0
        %4262 = vmatprep.subr.mxu0 0.0
        %4263 = vmatpush1.msra.mxu0 0.0
        %4264 = vmatprep.subr.mxu0 0.0
        %4265 = vmatpush1.msra.mxu0 0.0
        %4266 = vmatprep.subr.mxu0 0.0
        %4267 = vmatpush1.msra.mxu0 0.0
        %4268 = vmatprep.subr.mxu0 0.0
        %4269 = vmatpush1.msra.mxu0 0.0
        %4270 = vmatprep.subr.mxu0 0.0
        %4271 = vmatpush1.msra.mxu0 0.0
        %4272 = vmatprep.subr.mxu0 0.0
        %4273 = vmatpush1.msra.mxu0 0.0
        %4274 = vmatprep.subr.mxu0 0.0
        %4275 = vmatpush1.msra.mxu0 0.0
        %4276 = vmatprep.subr.mxu0 0.0
        %4277 = vmatpush1.msra.mxu0 0.0
        %4278 = vmatprep.subr.mxu0 0.0
        %4279 = vmatpush1.msra.mxu0 0.0
        %4280 = vmatprep.subr.mxu0 0.0
        %4281 = vmatpush1.msra.mxu0 0.0
        %4282 = vmatprep.subr.mxu0 0.0
        %4283 = vmatpush1.msra.mxu0 0.0
        %4284 = vmatprep.subr.mxu0 0.0
        %4285 = vmatpush1.msra.mxu0 0.0
        %4286 = vmatprep.subr.mxu0 0.0
        %4287 = vmatpush1.msra.mxu0 0.0
        %4288 = vmatprep.subr.mxu0 0.0
        %4289 = vmatpush1.msra.mxu0 0.0
        %4290 = vmatprep.subr.mxu0 0.0
        %4291 = vmatpush1.msra.mxu0 0.0
        %4292 = vmatprep.subr.mxu0 0.0
        %4293 = vmatpush1.msra.mxu0 0.0
        %4294 = vmatprep.subr.mxu0 0.0
        %4295 = vmatpush1.msra.mxu0 0.0
        %4296 = vmatprep.subr.mxu0 0.0
        %4297 = vmatpush1.msra.mxu0 0.0
        %4298 = vmatprep.subr.mxu0 0.0
        %4299 = vmatpush1.msra.mxu0 0.0
        %4300 = vmatprep.subr.mxu0 0.0
        %4301 = vmatpush1.msra.mxu0 0.0
        %4302 = vmatprep.subr.mxu0 0.0
        %4303 = vmatpush1.msra.mxu0 0.0
        %4304 = vmatprep.subr.mxu0 0.0
        %4305 = vmatpush1.msra.mxu0 0.0
        %4306 = vmatprep.subr.mxu0 0.0
        %4307 = vmatpush1.msra.mxu0 0.0
        %4308 = vmatprep.subr.mxu0 0.0
        %4309 = vmatpush1.msra.mxu0 0.0
        %4310 = vmatprep.subr.mxu0 0.0
        %4311 = vmatpush1.msra.mxu0 0.0
        %4312 = vmatprep.subr.mxu0 0.0
        %4313 = vmatpush1.msra.mxu0 0.0
        %4314 = vmatprep.subr.mxu0 0.0
        %4315 = vmatpush1.msra.mxu0 0.0
        %4316 = vmatprep.subr.mxu0 0.0
        %4317 = vmatpush1.msra.mxu0 0.0
        %4318 = vmatprep.mubr.f32.mxu0 0.0
        %4319 = vmatmul.mubr.f32.gmra.mrb[0].mxu0 %v4248
        %v4320 = vpop.f32.mrb[0].mxu0
        %v4321 = vadd.f32 %v4245, %v4320
        %v4322 = vpop.f32.mrb[0].mxu0
        %4323 = vdwg.mxu0
        %v4324 = vxor.u32 %v4321, 2147483648
        %v4325 = vmul.f32 %v4324, 1.442695
        %v4326 = vpow.pop %v4325
        %v4327 = vadd.f32 %v4326, 1.0
        %v4328 = vrcp.pop %v4327
        %v4329 = vmul.f32 1.0, %v4328
        %v4330 = vld [vmem:[%s384] sm:$0xf]
        %v4331 = vld [vmem:[%s384 + $0x4] sm:$0xf]
        %v4332 = vld [vmem:[%s384 + $0x8] sm:$0xf]
        %v4333 = vld [vmem:[%s384 + $0xc] sm:$0xf]
        %v4334 = vld [vmem:[%s384 + $0x10] sm:$0xf]
        %v4335 = vld [vmem:[%s384 + $0x14] sm:$0xf]
        %v4336 = vld [vmem:[%s384 + $0x18] sm:$0xf]
        %v4337 = vld [vmem:[%s384 + $0x1c] sm:$0xf]
        %v4338 = vld [vmem:[%s384 + $0x20] sm:$0xf]
        %v4339 = vld [vmem:[%s384 + $0x24] sm:$0xf]
        %v4340 = vld [vmem:[%s384 + $0x28] sm:$0xf]
        %v4341 = vld [vmem:[%s384 + $0x2c] sm:$0xf]
        %v4342 = vld [vmem:[%s384 + $0x30] sm:$0xf]
        %v4343 = vld [vmem:[%s384 + $0x34] sm:$0xf]
        %v4344 = vld [vmem:[%s384 + $0x38] sm:$0xf]
        %v4345 = vld [vmem:[%s384 + $0x3c] sm:$0xf]
        %v4346 = vld [vmem:[%s384 + $0x40] sm:$0xf]
        %v4347 = vld [vmem:[%s384 + $0x44] sm:$0xf]
        %v4348 = vld [vmem:[%s384 + $0x48] sm:$0xf]
        %v4349 = vld [vmem:[%s384 + $0x4c] sm:$0xf]
        %v4350 = vld [vmem:[%s384 + $0x50] sm:$0xf]
        %v4351 = vld [vmem:[%s384 + $0x54] sm:$0xf]
        %v4352 = vld [vmem:[%s384 + $0x58] sm:$0xf]
        %v4353 = vld [vmem:[%s384 + $0x5c] sm:$0xf]
        %v4354 = vld [vmem:[%s384 + $0x60] sm:$0xf]
        %v4355 = vld [vmem:[%s384 + $0x64] sm:$0xf]
        %v4356 = vld [vmem:[%s384 + $0x68] sm:$0xf]
        %v4357 = vld [vmem:[%s384 + $0x6c] sm:$0xf]
        %v4358 = vld [vmem:[%s384 + $0x70] sm:$0xf]
        %v4359 = vld [vmem:[%s384 + $0x74] sm:$0xf]
        %v4360 = vld [vmem:[%s384 + $0x78] sm:$0xf]
        %v4361 = vld [vmem:[%s384 + $0x7c] sm:$0xf]
        %v4362 = vunpack.c.l.bf16 %v4330
        %v4363 = vunpack.c.l.bf16 %v4331
        %v4364 = vunpack.c.l.bf16 %v4332
        %v4365 = vunpack.c.l.bf16 %v4333
        %v4366 = vunpack.c.l.bf16 %v4334
        %v4367 = vunpack.c.l.bf16 %v4335
        %v4368 = vunpack.c.l.bf16 %v4336
        %v4369 = vunpack.c.l.bf16 %v4337
        %v4370 = vunpack.c.l.bf16 %v4338
        %v4371 = vunpack.c.l.bf16 %v4339
        %v4372 = vunpack.c.l.bf16 %v4340
        %v4373 = vunpack.c.l.bf16 %v4341
        %v4374 = vunpack.c.l.bf16 %v4342
        %v4375 = vunpack.c.l.bf16 %v4343
        %v4376 = vunpack.c.l.bf16 %v4344
        %v4377 = vunpack.c.l.bf16 %v4345
        %v4378 = vunpack.c.l.bf16 %v4346
        %v4379 = vunpack.c.l.bf16 %v4347
        %v4380 = vunpack.c.l.bf16 %v4348
        %v4381 = vunpack.c.l.bf16 %v4349
        %v4382 = vunpack.c.l.bf16 %v4350
        %v4383 = vunpack.c.l.bf16 %v4351
        %v4384 = vunpack.c.l.bf16 %v4352
        %v4385 = vunpack.c.l.bf16 %v4353
        %v4386 = vunpack.c.l.bf16 %v4354
        %v4387 = vunpack.c.l.bf16 %v4355
        %v4388 = vunpack.c.l.bf16 %v4356
        %v4389 = vunpack.c.l.bf16 %v4357
        %v4390 = vunpack.c.l.bf16 %v4358
        %v4391 = vunpack.c.l.bf16 %v4359
        %v4392 = vunpack.c.l.bf16 %v4360
        %v4393 = vunpack.c.l.bf16 %v4361
        %v4394 = vlaneseq
        %v4395 = vshrl.u32 %v4394, 7
        %v4396 = vsub.s32 0, %v4395
        %v4397 = vrot.slane %v4329, %v4396
        %v4398 = vmul.f32 %v4058, %v4397
        %v4399 = vmul.f32 %v4059, %v4397
        %v4400 = vmul.f32 %v4060, %v4397
        %v4401 = vmul.f32 %v4061, %v4397
        %v4402 = vmul.f32 %v4062, %v4397
        %v4403 = vmul.f32 %v4063, %v4397
        %v4404 = vmul.f32 %v4064, %v4397
        %v4405 = vmul.f32 %v4065, %v4397
        %v4406 = vmul.f32 %v4066, %v4397
        %v4407 = vmul.f32 %v4067, %v4397
        %v4408 = vmul.f32 %v4068, %v4397
        %v4409 = vmul.f32 %v4069, %v4397
        %v4410 = vmul.f32 %v4070, %v4397
        %v4411 = vmul.f32 %v4071, %v4397
        %v4412 = vmul.f32 %v4072, %v4397
        %v4413 = vmul.f32 %v4073, %v4397
        %v4414 = vmul.f32 %v4074, %v4397
        %v4415 = vmul.f32 %v4075, %v4397
        %v4416 = vmul.f32 %v4076, %v4397
        %v4417 = vmul.f32 %v4077, %v4397
        %v4418 = vmul.f32 %v4078, %v4397
        %v4419 = vmul.f32 %v4079, %v4397
        %v4420 = vmul.f32 %v4080, %v4397
        %v4421 = vmul.f32 %v4081, %v4397
        %v4422 = vmul.f32 %v4082, %v4397
        %v4423 = vmul.f32 %v4083, %v4397
        %v4424 = vmul.f32 %v4084, %v4397
        %v4425 = vmul.f32 %v4085, %v4397
        %v4426 = vmul.f32 %v4086, %v4397
        %v4427 = vmul.f32 %v4087, %v4397
        %v4428 = vmul.f32 %v4088, %v4397
        %v4429 = vmul.f32 %v4089, %v4397
        %v4430 = vadd.f32 %v4398, %v4362
        %v4431 = vadd.f32 %v4399, %v4363
        %v4432 = vadd.f32 %v4400, %v4364
        %v4433 = vadd.f32 %v4401, %v4365
        %v4434 = vadd.f32 %v4402, %v4366
        %v4435 = vadd.f32 %v4403, %v4367
        %v4436 = vadd.f32 %v4404, %v4368
        %v4437 = vadd.f32 %v4405, %v4369
        %v4438 = vadd.f32 %v4406, %v4370
        %v4439 = vadd.f32 %v4407, %v4371
        %v4440 = vadd.f32 %v4408, %v4372
        %v4441 = vadd.f32 %v4409, %v4373
        %v4442 = vadd.f32 %v4410, %v4374
        %v4443 = vadd.f32 %v4411, %v4375
        %v4444 = vadd.f32 %v4412, %v4376
        %v4445 = vadd.f32 %v4413, %v4377
        %v4446 = vadd.f32 %v4414, %v4378
        %v4447 = vadd.f32 %v4415, %v4379
        %v4448 = vadd.f32 %v4416, %v4380
        %v4449 = vadd.f32 %v4417, %v4381
        %v4450 = vadd.f32 %v4418, %v4382
        %v4451 = vadd.f32 %v4419, %v4383
        %v4452 = vadd.f32 %v4420, %v4384
        %v4453 = vadd.f32 %v4421, %v4385
        %v4454 = vadd.f32 %v4422, %v4386
        %v4455 = vadd.f32 %v4423, %v4387
        %v4456 = vadd.f32 %v4424, %v4388
        %v4457 = vadd.f32 %v4425, %v4389
        %v4458 = vadd.f32 %v4426, %v4390
        %v4459 = vadd.f32 %v4427, %v4391
        %v4460 = vadd.f32 %v4428, %v4392
        %v4461 = vadd.f32 %v4429, %v4393
        %v4462 = vmax.f32 %v4430, 0.0
        %v4463 = vmax.f32 %v4431, 0.0
        %v4464 = vmax.f32 %v4432, 0.0
        %v4465 = vmax.f32 %v4433, 0.0
        %v4466 = vmax.f32 %v4434, 0.0
        %v4467 = vmax.f32 %v4435, 0.0
        %v4468 = vmax.f32 %v4436, 0.0
        %v4469 = vmax.f32 %v4437, 0.0
        %v4470 = vmax.f32 %v4438, 0.0
        %v4471 = vmax.f32 %v4439, 0.0
        %v4472 = vmax.f32 %v4440, 0.0
        %v4473 = vmax.f32 %v4441, 0.0
        %v4474 = vmax.f32 %v4442, 0.0
        %v4475 = vmax.f32 %v4443, 0.0
        %v4476 = vmax.f32 %v4444, 0.0
        %v4477 = vmax.f32 %v4445, 0.0
        %v4478 = vmax.f32 %v4446, 0.0
        %v4479 = vmax.f32 %v4447, 0.0
        %v4480 = vmax.f32 %v4448, 0.0
        %v4481 = vmax.f32 %v4449, 0.0
        %v4482 = vmax.f32 %v4450, 0.0
        %v4483 = vmax.f32 %v4451, 0.0
        %v4484 = vmax.f32 %v4452, 0.0
        %v4485 = vmax.f32 %v4453, 0.0
        %v4486 = vmax.f32 %v4454, 0.0
        %v4487 = vmax.f32 %v4455, 0.0
        %v4488 = vmax.f32 %v4456, 0.0
        %v4489 = vmax.f32 %v4457, 0.0
        %v4490 = vmax.f32 %v4458, 0.0
        %v4491 = vmax.f32 %v4459, 0.0
        %v4492 = vmax.f32 %v4460, 0.0
        %v4493 = vmax.f32 %v4461, 0.0
        %4494 = vst.msk [vmem:[%s379] sm:$0xff] %vm677, %v4462
        %4495 = vst.msk [vmem:[%s379 + $0x8] sm:$0xff] %vm677, %v4463
        %4496 = vst.msk [vmem:[%s379 + $0x10] sm:$0xff] %vm677, %v4464
        %4497 = vst.msk [vmem:[%s379 + $0x18] sm:$0xff] %vm677, %v4465
        %4498 = vst.msk [vmem:[%s379 + $0x20] sm:$0xff] %vm677, %v4466
        %4499 = vst.msk [vmem:[%s379 + $0x28] sm:$0xff] %vm677, %v4467
        %4500 = vst.msk [vmem:[%s379 + $0x30] sm:$0xff] %vm677, %v4468
        %4501 = vst.msk [vmem:[%s379 + $0x38] sm:$0xff] %vm677, %v4469
        %4502 = vst.msk [vmem:[%s379 + $0x40] sm:$0xff] %vm677, %v4470
        %4503 = vst.msk [vmem:[%s379 + $0x48] sm:$0xff] %vm677, %v4471
        %4504 = vst.msk [vmem:[%s379 + $0x50] sm:$0xff] %vm677, %v4472
        %4505 = vst.msk [vmem:[%s379 + $0x58] sm:$0xff] %vm677, %v4473
        %4506 = vst.msk [vmem:[%s379 + $0x60] sm:$0xff] %vm677, %v4474
        %4507 = vst.msk [vmem:[%s379 + $0x68] sm:$0xff] %vm677, %v4475
        %4508 = vst.msk [vmem:[%s379 + $0x70] sm:$0xff] %vm677, %v4476
        %4509 = vst.msk [vmem:[%s379 + $0x78] sm:$0xff] %vm677, %v4477
        %4510 = vst.msk [vmem:[%s379 + $0x80] sm:$0xff] %vm677, %v4478
        %4511 = vst.msk [vmem:[%s379 + $0x88] sm:$0xff] %vm677, %v4479
        %4512 = vst.msk [vmem:[%s379 + $0x90] sm:$0xff] %vm677, %v4480
        %4513 = vst.msk [vmem:[%s379 + $0x98] sm:$0xff] %vm677, %v4481
        %4514 = vst.msk [vmem:[%s379 + $0xa0] sm:$0xff] %vm677, %v4482
        %4515 = vst.msk [vmem:[%s379 + $0xa8] sm:$0xff] %vm677, %v4483
        %4516 = vst.msk [vmem:[%s379 + $0xb0] sm:$0xff] %vm677, %v4484
        %4517 = vst.msk [vmem:[%s379 + $0xb8] sm:$0xff] %vm677, %v4485
        %4518 = vst.msk [vmem:[%s379 + $0xc0] sm:$0xff] %vm677, %v4486
        %4519 = vst.msk [vmem:[%s379 + $0xc8] sm:$0xff] %vm677, %v4487
        %4520 = vst.msk [vmem:[%s379 + $0xd0] sm:$0xff] %vm677, %v4488
        %4521 = vst.msk [vmem:[%s379 + $0xd8] sm:$0xff] %vm677, %v4489
        %4522 = vst.msk [vmem:[%s379 + $0xe0] sm:$0xff] %vm677, %v4490
        %4523 = vst.msk [vmem:[%s379 + $0xe8] sm:$0xff] %vm677, %v4491
        %4524 = vst.msk [vmem:[%s379 + $0xf0] sm:$0xff] %vm677, %v4492
        %4525 = vst.msk [vmem:[%s379 + $0xf8] sm:$0xff] %vm677, %v4493
        %s4526 = sand.u32 %s269, 1
        %s4527 = scalar_lea.sflag [#allocation4], %s4526
        %s4528 = sand.u32 %s269, 1
        %s4529 = smul.addr %s4528, 256
        %s4530 = scalar_lea.vmem [#allocation3], %s4529
        // Predicated region
        $region65: #{resnet_basic_block.1} parent=63 // pred_check
          %p4531 = pneg %p279
        $region66: #{resnet_basic_block.1} parent=63 // pred_check_branch
          %4533 = sbr.rel (%p4531) target = $region68
        $region67: #{resnet_basic_block.1} parent=63 // pred_region
          %s4535 = ssub.s32 4096, 4096
          %4536 = vsyncadd %s4527, %s4535
          %s4537 = smul.addr %s25, 32
          %s4538 = smul.addr %s4537, 128
          %s4539 = scalar_lea.hbm %s11, %s4538
          %s4540 = sshll.u32 %s4530, 4
          %s4541 = int_to_ptr.vmem [resolvable:$true] %s4540
          %4546 = dma.vmem_to_hbm [thread:$0]  %s4541, 4096, %s4539, %s4527, 128, 128, 8
        $region68: #{resnet_basic_block.1} parent=63 // pred_fallthru
          _
      $region64: #{resnet_basic_block.1} parent=5 // pred_fallthru
        _
      %p4547 = scmp.le.s32.totalorder 2, %s20
      // Predicated region
      $region69: #{resnet_basic_block.1} parent=5 // pred_check
        %p4548 = pneg %p4547
      $region70: #{resnet_basic_block.1} parent=5 // pred_check_branch
        %4550 = sbr.rel (%p4548) target = $region72
      $region71: #{resnet_basic_block.1} parent=5 // pred_region
        %s4551 = ssub.s32 %s20, 2
        // Predicated region
        $region73: #{resnet_basic_block.1} parent=71 // pred_check
          %p4552 = pneg %p285
        $region74: #{resnet_basic_block.1} parent=71 // pred_check_branch
          %4554 = sbr.rel (%p4552) target = $region76
        $region75: #{resnet_basic_block.1} parent=71 // pred_region
          %s4555 = sand.u32 %s270, 1
          %s4556 = scalar_lea.sflag [#allocation4], %s4555
          %s4557 = sand.u32 %s270, 1
          %s4558 = smul.addr %s4557, 256
          %s4559 = scalar_lea.vmem [#allocation3], %s4558
          %4560 = dma.done %s4556, 4096
        $region76: #{resnet_basic_block.1} parent=71 // pred_fallthru
          _
      $region72: #{resnet_basic_block.1} parent=5 // pred_fallthru
        _
    $region6: #{resnet_basic_block.1} parent=1 // loop_footer
      %s24 = sadd.s32 1, %s20
    $region7: #{resnet_basic_block.1} parent=1 // loop_footer_branch
      %19 = sbr.rel target = $region3
    $region8: #{resnet_basic_block.1} parent=1 // loop_exit
      _
    %4561 = vsyncpa [#allocation4], 1
    %s4562 = scalar_lea.sflag [#allocation4], 1
    %4563 = vsyncpa %s4562, 1

</llo_original>
